<compile_context>
chip_gen: v6e
topology: v6e:2x2x1
jax: 0.10.0
libtpu: 0.0.40
codegen_flags: <defaults>
</compile_context>

<pallas_src>
import functools
import numpy as np
import jax
import jax.numpy as jnp
from jax.experimental import pallas as pl
from jax.experimental.pallas import tpu as pltpu


def _feature_attention_kernel(shape_ref, x_ref, const_ref, w2_ref, out_ref, v_scr,
                              *, H, W, Cg, G, K):
    HW = H * W
    KHW = K * HW
    CK = G * K * Cg
    CKp = v_scr.shape[0]                       # row-padded (multiple of 8)

    # zero the padded tail rows so the final matmul's contraction sees zeros
    if CKp > CK:
        v_scr[CK:CKp, :] = jnp.zeros((CKp - CK, HW), jnp.float32)

    # per-batch shape map, pre-tiled K times along lanes in the wrapper: (2, K*HW)
    shp = shape_ref[0]
    s0 = shp[0:1, :]                           # (1, KHW)
    s1 = shp[1:2, :]

    ybase = const_ref[0]                       # (G, KHW) base sample row per (tap, pixel)
    xbase = const_ref[1]                       # (G, KHW) base sample col
    wdy0 = const_ref[2]                        # 1x1 offset-conv coeffs, broadcast over pixels
    wdy1 = const_ref[3]
    wdx0 = const_ref[4]
    wdx1 = const_ref[5]

    # 1x1 offset conv (contraction dim is only 2) on the VPU + absolute sample coords
    y_s = ybase + wdy0 * s0 + wdy1 * s1        # (G, KHW)
    x_s = xbase + wdx0 * s0 + wdx1 * s1        # (G, KHW)

    # input row / col index grids, shared by every group (hoisted out of the loop)
    r_idx = jax.lax.broadcasted_iota(jnp.int32, (H, KHW), 0).astype(jnp.float32)
    c_idx = jax.lax.broadcasted_iota(jnp.int32, (W, KHW), 0).astype(jnp.float32)

    x_all = x_ref[0]                           # (C_in*H, W) bf16, row = ci*H + r

    for g in range(G):                         # G is tiny & static -> straight-line code
        # separable bilinear "hat" weights for this group's K taps, column-stacked.
        # max(0, 1 - |pos - idx|) == mmcv bilinear with zero padding (out-of-bounds
        # rows/cols simply never receive weight).
        wy_g = jnp.maximum(1.0 - jnp.abs(y_s[g:g + 1, :] - r_idx), 0.0)   # (H, KHW) f32
        wx_g = jnp.maximum(1.0 - jnp.abs(x_s[g:g + 1, :] - c_idx), 0.0)   # (W, KHW) f32

        # x-direction sampling: ONE MXU matmul per group (contraction = W, N = K*HW)
        xg = x_all[g * Cg * H:(g + 1) * Cg * H, :]                        # (Cg*H, W) bf16
        r_g = jnp.dot(xg, wx_g.astype(jnp.bfloat16),
                      preferred_element_type=jnp.float32)                 # (Cg*H, KHW) f32

        # y-direction sampling on the VPU: multiply by wy and reduce over H
        v_g = jnp.sum(r_g.reshape(Cg, H, KHW) * wy_g[None, :, :], axis=1)  # (Cg, KHW)

        # scatter the per-tap lane blocks into rows of the sampled-value panel
        for k in range(K):
            row = (g * K + k) * Cg
            v_scr[row:row + Cg, :] = v_g[:, k * HW:(k + 1) * HW]

    # channel/tap mixing: one matmul with contraction C_in*K, then fused ReLU
    out = jnp.dot(w2_ref[...], v_scr[...], preferred_element_type=jnp.float32)
    out_ref[0] = jnp.maximum(out, 0.0).astype(out_ref.dtype)


def feature_attention_forward(x, shape, w_offset, w_deform, *,
                              kernel_size=3, deform_groups=4):
    """x: (B, C_in, H, W); shape: (B, 2, H, W) NCHW. Returns (B, C_out, H, W) f32."""
    B, C_in, H, W = x.shape
    C_out = w_deform.shape[0]
    KH = KW = kernel_size
    K = KH * KW
    G = deform_groups
    assert C_in % G == 0
    Cg = C_in // G
    pad = (kernel_size - 1) // 2
    HW = H * W
    KHW = K * HW
    CK = G * K * Cg
    CKp = ((CK + 7) // 8) * 8                  # pad contraction dim of the mix matmul

    # per-batch data: rows = (channel, input-row) so each group's matmul LHS is a
    # contiguous row block; shape map pre-tiled over the K taps (k-major, q-minor)
    x_rows = x.reshape(B, C_in * H, W).astype(jnp.bfloat16)
    shape_t = (jnp.tile(shape.reshape(B, 2, 1, HW), (1, 1, K, 1))
               .reshape(B, 2, KHW).astype(jnp.float32))

    # 1x1 offset-conv weights broadcast over output pixels -> lane-dense (G, K*HW)
    woff = w_offset.reshape(G, K, 2, 2).astype(jnp.float32)   # [g, k, {dy,dx}, in_ch]

    def _b(a):                                 # (G, K) -> (G, K*HW), k-major
        return jnp.repeat(a, HW, axis=1)

    wdy0, wdy1 = _b(woff[:, :, 0, 0]), _b(woff[:, :, 0, 1])
    wdx0, wdx1 = _b(woff[:, :, 1, 0]), _b(woff[:, :, 1, 1])

    # base sample coordinates: output pixel + kernel-tap displacement - pad
    base_y = jnp.repeat(jnp.arange(H, dtype=jnp.float32), W)   # (HW,)  q // W
    base_x = jnp.tile(jnp.arange(W, dtype=jnp.float32), H)     # (HW,)  q %  W
    kk = jnp.arange(K)
    ky = (kk // KW - pad).astype(jnp.float32)
    kx = (kk % KW - pad).astype(jnp.float32)
    ybase = jnp.broadcast_to((ky[:, None] + base_y[None, :]).reshape(1, KHW), (G, KHW))
    xbase = jnp.broadcast_to((kx[:, None] + base_x[None, :]).reshape(1, KHW), (G, KHW))

    tap_const = jnp.stack([ybase, xbase, wdy0, wdy1, wdx0, wdx1], axis=0)  # (6, G, KHW)

    # deform-conv weights for the final mix; columns ordered (g, k, ci) to match the
    # sampled-value panel rows, zero-padded to the tile-aligned contraction length
    w2 = (w_deform.reshape(C_out, G, Cg, K)
          .transpose(0, 1, 3, 2)
          .reshape(C_out, CK)
          .astype(jnp.float32))
    if CKp != CK:
        w2 = jnp.pad(w2, ((0, 0), (0, CKp - CK)))

    kernel = functools.partial(_feature_attention_kernel,
                               H=H, W=W, Cg=Cg, G=G, K=K)

    out_flat = pl.pallas_call(
        kernel,
        out_shape=jax.ShapeDtypeStruct((B, C_out, HW), jnp.float32),
        grid=(B,),
        in_specs=[
            pl.BlockSpec((1, 2, KHW), lambda b: (b, 0, 0)),
            pl.BlockSpec((1, C_in * H, W), lambda b: (b, 0, 0)),
            pl.BlockSpec((6, G, KHW), lambda b: (0, 0, 0)),
            pl.BlockSpec((C_out, CKp), lambda b: (0, 0)),
        ],
        out_specs=pl.BlockSpec((1, C_out, HW), lambda b: (b, 0, 0)),
        scratch_shapes=[
            pltpu.VMEM((CKp, HW), jnp.float32),   # sampled values, all (group, tap, ch)
        ],
        compiler_params=pltpu.CompilerParams(
            dimension_semantics=("parallel",)),   # batch elems independent -> 2 TCs on v7x
    )(shape_t, x_rows, tap_const, w2)

    return out_flat.reshape(B, C_out, H, W)


def reference_forward(x, shape, w_offset, w_deform, *, kernel_size=3, deform_groups=4):
    """Independent pure-JAX reference (gather-based bilinear deform conv), f32."""
    hp = jax.lax.Precision.HIGHEST
    B, C_in, H, W = x.shape
    C_out = w_deform.shape[0]
    K = kernel_size * kernel_size
    pad = (kernel_size - 1) // 2
    G = deform_groups
    Cg = C_in // G

    offsets = jnp.einsum('oc,bchw->bohw', w_offset.reshape(-1, 2), shape, precision=hp)
    offsets = offsets.reshape(B, G, K, 2, H, W)
    hh = jnp.arange(H, dtype=jnp.float32)[:, None]
    ww = jnp.arange(W, dtype=jnp.float32)[None, :]
    out = jnp.zeros((B, C_out, H, W), jnp.float32)
    for g in range(G):
        x_g = x[:, g * Cg:(g + 1) * Cg].reshape(B, Cg, H * W)
        for k in range(K):
            kh, kw = k // kernel_size, k % kernel_size
            y = hh - pad + kh + offsets[:, g, k, 0]
            xx = ww - pad + kw + offsets[:, g, k, 1]
            y0 = jnp.floor(y)
            x0 = jnp.floor(xx)
            fy = y - y0
            fx = xx - x0
            val = jnp.zeros((B, Cg, H, W), jnp.float32)
            corners = [(0, 0, (1 - fy) * (1 - fx)), (0, 1, (1 - fy) * fx),
                       (1, 0, fy * (1 - fx)), (1, 1, fy * fx)]
            for dyc, dxc, wgt in corners:
                yi = y0.astype(jnp.int32) + dyc
                xi = x0.astype(jnp.int32) + dxc
                valid = (yi >= 0) & (yi < H) & (xi >= 0) & (xi < W)
                yc = jnp.clip(yi, 0, H - 1)
                xc = jnp.clip(xi, 0, W - 1)
                flat = (yc * W + xc).reshape(B, 1, H * W)
                gathered = jnp.take_along_axis(
                    x_g, jnp.broadcast_to(flat, (B, Cg, H * W)), axis=2
                ).reshape(B, Cg, H, W)
                val = val + jnp.where(valid[:, None], wgt[:, None] * gathered, 0.0)
            out = out + jnp.einsum('oc,bchw->bohw',
                                   w_deform[:, g * Cg:(g + 1) * Cg, kh, kw], val,
                                   precision=hp)
    return jnp.maximum(out, 0.0)


if __name__ == "__main__":
    key = jax.random.PRNGKey(0)
    B, C_in, C_out, H, W = 2, 4, 8, 16, 16
    kernel_size, deform_groups = 3, 4
    k1, k2, k3, k4 = jax.random.split(key, 4)

    x = jax.random.normal(k1, (B, C_in, H, W), jnp.float32)
    shape_map = jax.random.normal(k2, (B, 2, H, W), jnp.float32)
    # conv_offset: Conv2d(2, deform_groups * k*k*2, 1, bias=False), normal_init std=0.1
    w_offset = 0.1 * jax.random.normal(
        k3, (deform_groups * kernel_size * kernel_size * 2, 2, 1, 1), jnp.float32)
    # conv_adaption: DeformConv2d(C_in, C_out, 3, pad=1, deform_groups=4) (no bias), std=0.01
    w_deform = 0.01 * jax.random.normal(
        k4, (C_out, C_in, kernel_size, kernel_size), jnp.float32)

    out = feature_attention_forward(x, shape_map, w_offset, w_deform,
                                    kernel_size=kernel_size,
                                    deform_groups=deform_groups)
    out = jax.block_until_ready(out)

    ref = jax.block_until_ready(
        reference_forward(x, shape_map, w_offset, w_deform,
                          kernel_size=kernel_size, deform_groups=deform_groups))
    # tolerance accounts for bf16 MXU operands (x, wx) with f32 accumulation
    np.testing.assert_allclose(np.asarray(out), np.asarray(ref), atol=2e-3, rtol=2e-2)
    print("KERNEL_OK")
</pallas_src>

<mosaic_0001>
module attributes {stable_mosaic.version = 11 : i64} {
  func.func @_feature_attention_kernel(%arg0: i32, %arg1: memref<1x2x2304xf32, #tpu.memory_space<vmem>>, %arg2: memref<1x64x16xbf16, #tpu.memory_space<vmem>>, %arg3: memref<6x4x2304xf32, #tpu.memory_space<vmem>>, %arg4: memref<8x40xf32, #tpu.memory_space<vmem>>, %arg5: memref<1x8x256xf32, #tpu.memory_space<vmem>>, %arg6: memref<40x256xf32, #tpu.memory_space<vmem>>) attributes {dimension_semantics = [#tpu.dimension_semantics<parallel>], iteration_bounds = array<i64: 2>, scalar_prefetch = 0 : i64, scratch_operands = 1 : i64, tpu.core_type = #tpu.core_type<tc>, window_params = [{transform_indices = @transform_0, window_bounds = array<i64: 1, 2, 2304>}, {transform_indices = @transform_1, window_bounds = array<i64: 1, 64, 16>}, {pipeline_mode = #tpu.pipeline_mode<synchronous>, transform_indices = @transform_2, window_bounds = array<i64: 6, 4, 2304>}, {pipeline_mode = #tpu.pipeline_mode<synchronous>, transform_indices = @transform_3, window_bounds = array<i64: 8, 40>}, {transform_indices = @transform_4, window_bounds = array<i64: 1, 8, 256>}]} {
    %cst = arith.constant 0.000000e+00 : f32
    %0 = vector.broadcast %cst : f32 to vector<4x256xf32>
    %c36 = arith.constant 36 : index
    %c0 = arith.constant 0 : index
    %1 = vector.load %arg6[%c36, %c0] : memref<40x256xf32, #tpu.memory_space<vmem>>, vector<4x256xf32>
    tpu.vector_store %arg6[%c36, %c0], %0 {strides = array<i32>} : memref<40x256xf32, #tpu.memory_space<vmem>>, vector<4x256xf32>,
    %c0_0 = arith.constant 0 : index
    %c0_1 = arith.constant 0 : index
    %c0_2 = arith.constant 0 : index
    %2 = vector.load %arg1[%c0_0, %c0_1, %c0_2] : memref<1x2x2304xf32, #tpu.memory_space<vmem>>, vector<1x2x2304xf32>
    %3 = vector.shape_cast %2 : vector<1x2x2304xf32> to vector<2x2304xf32>
    %4 = vector.extract_strided_slice %3 {offsets = [0, 0], sizes = [1, 2304], strides = [1, 1]} : vector<2x2304xf32> to vector<1x2304xf32>
    %5 = vector.extract_strided_slice %3 {offsets = [1, 0], sizes = [1, 2304], strides = [1, 1]} : vector<2x2304xf32> to vector<1x2304xf32>
    %c0_3 = arith.constant 0 : index
    %c0_4 = arith.constant 0 : index
    %c0_5 = arith.constant 0 : index
    %6 = vector.load %arg3[%c0_3, %c0_4, %c0_5] : memref<6x4x2304xf32, #tpu.memory_space<vmem>>, vector<1x4x2304xf32>
    %7 = vector.shape_cast %6 : vector<1x4x2304xf32> to vector<4x2304xf32>
    %c1 = arith.constant 1 : index
    %c0_6 = arith.constant 0 : index
    %c0_7 = arith.constant 0 : index
    %8 = vector.load %arg3[%c1, %c0_6, %c0_7] : memref<6x4x2304xf32, #tpu.memory_space<vmem>>, vector<1x4x2304xf32>
    %9 = vector.shape_cast %8 : vector<1x4x2304xf32> to vector<4x2304xf32>
    %c2 = arith.constant 2 : index
    %c0_8 = arith.constant 0 : index
    %c0_9 = arith.constant 0 : index
    %10 = vector.load %arg3[%c2, %c0_8, %c0_9] : memref<6x4x2304xf32, #tpu.memory_space<vmem>>, vector<1x4x2304xf32>
    %11 = vector.shape_cast %10 : vector<1x4x2304xf32> to vector<4x2304xf32>
    %c3 = arith.constant 3 : index
    %c0_10 = arith.constant 0 : index
    %c0_11 = arith.constant 0 : index
    %12 = vector.load %arg3[%c3, %c0_10, %c0_11] : memref<6x4x2304xf32, #tpu.memory_space<vmem>>, vector<1x4x2304xf32>
    %13 = vector.shape_cast %12 : vector<1x4x2304xf32> to vector<4x2304xf32>
    %c4 = arith.constant 4 : index
    %c0_12 = arith.constant 0 : index
    %c0_13 = arith.constant 0 : index
    %14 = vector.load %arg3[%c4, %c0_12, %c0_13] : memref<6x4x2304xf32, #tpu.memory_space<vmem>>, vector<1x4x2304xf32>
    %15 = vector.shape_cast %14 : vector<1x4x2304xf32> to vector<4x2304xf32>
    %c5 = arith.constant 5 : index
    %c0_14 = arith.constant 0 : index
    %c0_15 = arith.constant 0 : index
    %16 = vector.load %arg3[%c5, %c0_14, %c0_15] : memref<6x4x2304xf32, #tpu.memory_space<vmem>>, vector<1x4x2304xf32>
    %17 = vector.shape_cast %16 : vector<1x4x2304xf32> to vector<4x2304xf32>
    %18 = vector.broadcast %4 : vector<1x2304xf32> to vector<4x2304xf32>
    %19 = arith.mulf %11, %18 : vector<4x2304xf32>
    %20 = arith.addf %7, %19 : vector<4x2304xf32>
    %21 = vector.broadcast %5 : vector<1x2304xf32> to vector<4x2304xf32>
    %22 = arith.mulf %13, %21 : vector<4x2304xf32>
    %23 = arith.addf %20, %22 : vector<4x2304xf32>
    %24 = vector.broadcast %4 : vector<1x2304xf32> to vector<4x2304xf32>
    %25 = arith.mulf %15, %24 : vector<4x2304xf32>
    %26 = arith.addf %9, %25 : vector<4x2304xf32>
    %27 = vector.broadcast %5 : vector<1x2304xf32> to vector<4x2304xf32>
    %28 = arith.mulf %17, %27 : vector<4x2304xf32>
    %29 = arith.addf %26, %28 : vector<4x2304xf32>
    %30 = tpu.iota {dimensions = array<i32: 0>} : vector<16x2304xi32>
    %31 = arith.sitofp %30 : vector<16x2304xi32> to vector<16x2304xf32>
    %32 = tpu.iota {dimensions = array<i32: 0>} : vector<16x2304xi32>
    %33 = arith.sitofp %32 : vector<16x2304xi32> to vector<16x2304xf32>
    %c0_16 = arith.constant 0 : index
    %c0_17 = arith.constant 0 : index
    %c0_18 = arith.constant 0 : index
    %34 = vector.load %arg2[%c0_16, %c0_17, %c0_18] : memref<1x64x16xbf16, #tpu.memory_space<vmem>>, vector<1x64x16xbf16>
    %35 = vector.shape_cast %34 : vector<1x64x16xbf16> to vector<64x16xbf16>
    %36 = vector.extract_strided_slice %23 {offsets = [0, 0], sizes = [1, 2304], strides = [1, 1]} : vector<4x2304xf32> to vector<1x2304xf32>
    %37 = vector.broadcast %36 : vector<1x2304xf32> to vector<16x2304xf32>
    %38 = arith.subf %37, %31 : vector<16x2304xf32>
    %39 = math.absf %38 : vector<16x2304xf32>
    %cst_19 = arith.constant 1.000000e+00 : f32
    %40 = vector.broadcast %cst_19 : f32 to vector<16x2304xf32>
    %41 = arith.subf %40, %39 : vector<16x2304xf32>
    %cst_20 = arith.constant 0.000000e+00 : f32
    %42 = vector.broadcast %cst_20 : f32 to vector<16x2304xf32>
    %43 = arith.maximumf %41, %42 : vector<16x2304xf32>
    %44 = vector.extract_strided_slice %29 {offsets = [0, 0], sizes = [1, 2304], strides = [1, 1]} : vector<4x2304xf32> to vector<1x2304xf32>
    %45 = vector.broadcast %44 : vector<1x2304xf32> to vector<16x2304xf32>
    %46 = arith.subf %45, %33 : vector<16x2304xf32>
    %47 = math.absf %46 : vector<16x2304xf32>
    %cst_21 = arith.constant 1.000000e+00 : f32
    %48 = vector.broadcast %cst_21 : f32 to vector<16x2304xf32>
    %49 = arith.subf %48, %47 : vector<16x2304xf32>
    %cst_22 = arith.constant 0.000000e+00 : f32
    %50 = vector.broadcast %cst_22 : f32 to vector<16x2304xf32>
    %51 = arith.maximumf %49, %50 : vector<16x2304xf32>
    %52 = vector.extract_strided_slice %35 {offsets = [0, 0], sizes = [16, 16], strides = [1, 1]} : vector<64x16xbf16> to vector<16x16xbf16>
    %53 = arith.truncf %51 : vector<16x2304xf32> to vector<16x2304xbf16>
    %cst_23 = arith.constant dense<0.000000e+00> : vector<16x2304xf32>
    %54 = tpu.matmul %52, %53, %cst_23 {dimension_numbers = #tpu.dot_dimension_numbers<[1], [0], [0], [1], [0, 0, 1, 1], [], []>} : vector<16x16xbf16>, vector<16x2304xbf16>, vector<16x2304xf32> -> vector<16x2304xf32>
    %55 = vector.shape_cast %54 : vector<16x2304xf32> to vector<1x16x2304xf32>
    %56 = vector.shape_cast %43 : vector<16x2304xf32> to vector<1x16x2304xf32>
    %57 = arith.mulf %55, %56 : vector<1x16x2304xf32>
    %cst_24 = arith.constant dense<0.000000e+00> : vector<1x2304xf32>
    %58 = vector.multi_reduction <add>, %57, %cst_24 [1] : vector<1x16x2304xf32> to vector<1x2304xf32>
    %59 = vector.extract_strided_slice %58 {offsets = [0, 0], sizes = [1, 256], strides = [1, 1]} : vector<1x2304xf32> to vector<1x256xf32>
    %c0_25 = arith.constant 0 : index
    %c0_26 = arith.constant 0 : index
    %60 = vector.load %arg6[%c0_25, %c0_26] : memref<40x256xf32, #tpu.memory_space<vmem>>, vector<1x256xf32>
    tpu.vector_store %arg6[%c0_25, %c0_26], %59 {strides = array<i32>} : memref<40x256xf32, #tpu.memory_space<vmem>>, vector<1x256xf32>,
    %61 = vector.extract_strided_slice %58 {offsets = [0, 256], sizes = [1, 256], strides = [1, 1]} : vector<1x2304xf32> to vector<1x256xf32>
    %c1_27 = arith.constant 1 : index
    %c0_28 = arith.constant 0 : index
    %62 = vector.load %arg6[%c1_27, %c0_28] : memref<40x256xf32, #tpu.memory_space<vmem>>, vector<1x256xf32>
    tpu.vector_store %arg6[%c1_27, %c0_28], %61 {strides = array<i32>} : memref<40x256xf32, #tpu.memory_space<vmem>>, vector<1x256xf32>,
    %63 = vector.extract_strided_slice %58 {offsets = [0, 512], sizes = [1, 256], strides = [1, 1]} : vector<1x2304xf32> to vector<1x256xf32>
    %c2_29 = arith.constant 2 : index
    %c0_30 = arith.constant 0 : index
    %64 = vector.load %arg6[%c2_29, %c0_30] : memref<40x256xf32, #tpu.memory_space<vmem>>, vector<1x256xf32>
    tpu.vector_store %arg6[%c2_29, %c0_30], %63 {strides = array<i32>} : memref<40x256xf32, #tpu.memory_space<vmem>>, vector<1x256xf32>,
    %65 = vector.extract_strided_slice %58 {offsets = [0, 768], sizes = [1, 256], strides = [1, 1]} : vector<1x2304xf32> to vector<1x256xf32>
    %c3_31 = arith.constant 3 : index
    %c0_32 = arith.constant 0 : index
    %66 = vector.load %arg6[%c3_31, %c0_32] : memref<40x256xf32, #tpu.memory_space<vmem>>, vector<1x256xf32>
    tpu.vector_store %arg6[%c3_31, %c0_32], %65 {strides = array<i32>} : memref<40x256xf32, #tpu.memory_space<vmem>>, vector<1x256xf32>,
    %67 = vector.extract_strided_slice %58 {offsets = [0, 1024], sizes = [1, 256], strides = [1, 1]} : vector<1x2304xf32> to vector<1x256xf32>
    %c4_33 = arith.constant 4 : index
    %c0_34 = arith.constant 0 : index
    %68 = vector.load %arg6[%c4_33, %c0_34] : memref<40x256xf32, #tpu.memory_space<vmem>>, vector<1x256xf32>
    tpu.vector_store %arg6[%c4_33, %c0_34], %67 {strides = array<i32>} : memref<40x256xf32, #tpu.memory_space<vmem>>, vector<1x256xf32>,
    %69 = vector.extract_strided_slice %58 {offsets = [0, 1280], sizes = [1, 256], strides = [1, 1]} : vector<1x2304xf32> to vector<1x256xf32>
    %c5_35 = arith.constant 5 : index
    %c0_36 = arith.constant 0 : index
    %70 = vector.load %arg6[%c5_35, %c0_36] : memref<40x256xf32, #tpu.memory_space<vmem>>, vector<1x256xf32>
    tpu.vector_store %arg6[%c5_35, %c0_36], %69 {strides = array<i32>} : memref<40x256xf32, #tpu.memory_space<vmem>>, vector<1x256xf32>,
    %71 = vector.extract_strided_slice %58 {offsets = [0, 1536], sizes = [1, 256], strides = [1, 1]} : vector<1x2304xf32> to vector<1x256xf32>
    %c6 = arith.constant 6 : index
    %c0_37 = arith.constant 0 : index
    %72 = vector.load %arg6[%c6, %c0_37] : memref<40x256xf32, #tpu.memory_space<vmem>>, vector<1x256xf32>
    tpu.vector_store %arg6[%c6, %c0_37], %71 {strides = array<i32>} : memref<40x256xf32, #tpu.memory_space<vmem>>, vector<1x256xf32>,
    %73 = vector.extract_strided_slice %58 {offsets = [0, 1792], sizes = [1, 256], strides = [1, 1]} : vector<1x2304xf32> to vector<1x256xf32>
    %c7 = arith.constant 7 : index
    %c0_38 = arith.constant 0 : index
    %74 = vector.load %arg6[%c7, %c0_38] : memref<40x256xf32, #tpu.memory_space<vmem>>, vector<1x256xf32>
    tpu.vector_store %arg6[%c7, %c0_38], %73 {strides = array<i32>} : memref<40x256xf32, #tpu.memory_space<vmem>>, vector<1x256xf32>,
    %75 = vector.extract_strided_slice %58 {offsets = [0, 2048], sizes = [1, 256], strides = [1, 1]} : vector<1x2304xf32> to vector<1x256xf32>
    %c8 = arith.constant 8 : index
    %c0_39 = arith.constant 0 : index
    %76 = vector.load %arg6[%c8, %c0_39] : memref<40x256xf32, #tpu.memory_space<vmem>>, vector<1x256xf32>
    tpu.vector_store %arg6[%c8, %c0_39], %75 {strides = array<i32>} : memref<40x256xf32, #tpu.memory_space<vmem>>, vector<1x256xf32>,
    %77 = vector.extract_strided_slice %23 {offsets = [1, 0], sizes = [1, 2304], strides = [1, 1]} : vector<4x2304xf32> to vector<1x2304xf32>
    %78 = vector.broadcast %77 : vector<1x2304xf32> to vector<16x2304xf32>
    %79 = arith.subf %78, %31 : vector<16x2304xf32>
    %80 = math.absf %79 : vector<16x2304xf32>
    %cst_40 = arith.constant 1.000000e+00 : f32
    %81 = vector.broadcast %cst_40 : f32 to vector<16x2304xf32>
    %82 = arith.subf %81, %80 : vector<16x2304xf32>
    %cst_41 = arith.constant 0.000000e+00 : f32
    %83 = vector.broadcast %cst_41 : f32 to vector<16x2304xf32>
    %84 = arith.maximumf %82, %83 : vector<16x2304xf32>
    %85 = vector.extract_strided_slice %29 {offsets = [1, 0], sizes = [1, 2304], strides = [1, 1]} : vector<4x2304xf32> to vector<1x2304xf32>
    %86 = vector.broadcast %85 : vector<1x2304xf32> to vector<16x2304xf32>
    %87 = arith.subf %86, %33 : vector<16x2304xf32>
    %88 = math.absf %87 : vector<16x2304xf32>
    %cst_42 = arith.constant 1.000000e+00 : f32
    %89 = vector.broadcast %cst_42 : f32 to vector<16x2304xf32>
    %90 = arith.subf %89, %88 : vector<16x2304xf32>
    %cst_43 = arith.constant 0.000000e+00 : f32
    %91 = vector.broadcast %cst_43 : f32 to vector<16x2304xf32>
    %92 = arith.maximumf %90, %91 : vector<16x2304xf32>
    %93 = vector.extract_strided_slice %35 {offsets = [16, 0], sizes = [16, 16], strides = [1, 1]} : vector<64x16xbf16> to vector<16x16xbf16>
    %94 = arith.truncf %92 : vector<16x2304xf32> to vector<16x2304xbf16>
    %cst_44 = arith.constant dense<0.000000e+00> : vector<16x2304xf32>
    %95 = tpu.matmul %93, %94, %cst_44 {dimension_numbers = #tpu.dot_dimension_numbers<[1], [0], [0], [1], [0, 0, 1, 1], [], []>} : vector<16x16xbf16>, vector<16x2304xbf16>, vector<16x2304xf32> -> vector<16x2304xf32>
    %96 = vector.shape_cast %95 : vector<16x2304xf32> to vector<1x16x2304xf32>
    %97 = vector.shape_cast %84 : vector<16x2304xf32> to vector<1x16x2304xf32>
    %98 = arith.mulf %96, %97 : vector<1x16x2304xf32>
    %cst_45 = arith.constant dense<0.000000e+00> : vector<1x2304xf32>
    %99 = vector.multi_reduction <add>, %98, %cst_45 [1] : vector<1x16x2304xf32> to vector<1x2304xf32>
    %100 = vector.extract_strided_slice %99 {offsets = [0, 0], sizes = [1, 256], strides = [1, 1]} : vector<1x2304xf32> to vector<1x256xf32>
    %c9 = arith.constant 9 : index
    %c0_46 = arith.constant 0 : index
    %101 = vector.load %arg6[%c9, %c0_46] : memref<40x256xf32, #tpu.memory_space<vmem>>, vector<1x256xf32>
    tpu.vector_store %arg6[%c9, %c0_46], %100 {strides = array<i32>} : memref<40x256xf32, #tpu.memory_space<vmem>>, vector<1x256xf32>,
    %102 = vector.extract_strided_slice %99 {offsets = [0, 256], sizes = [1, 256], strides = [1, 1]} : vector<1x2304xf32> to vector<1x256xf32>
    %c10 = arith.constant 10 : index
    %c0_47 = arith.constant 0 : index
    %103 = vector.load %arg6[%c10, %c0_47] : memref<40x256xf32, #tpu.memory_space<vmem>>, vector<1x256xf32>
    tpu.vector_store %arg6[%c10, %c0_47], %102 {strides = array<i32>} : memref<40x256xf32, #tpu.memory_space<vmem>>, vector<1x256xf32>,
    %104 = vector.extract_strided_slice %99 {offsets = [0, 512], sizes = [1, 256], strides = [1, 1]} : vector<1x2304xf32> to vector<1x256xf32>
    %c11 = arith.constant 11 : index
    %c0_48 = arith.constant 0 : index
    %105 = vector.load %arg6[%c11, %c0_48] : memref<40x256xf32, #tpu.memory_space<vmem>>, vector<1x256xf32>
    tpu.vector_store %arg6[%c11, %c0_48], %104 {strides = array<i32>} : memref<40x256xf32, #tpu.memory_space<vmem>>, vector<1x256xf32>,
    %106 = vector.extract_strided_slice %99 {offsets = [0, 768], sizes = [1, 256], strides = [1, 1]} : vector<1x2304xf32> to vector<1x256xf32>
    %c12 = arith.constant 12 : index
    %c0_49 = arith.constant 0 : index
    %107 = vector.load %arg6[%c12, %c0_49] : memref<40x256xf32, #tpu.memory_space<vmem>>, vector<1x256xf32>
    tpu.vector_store %arg6[%c12, %c0_49], %106 {strides = array<i32>} : memref<40x256xf32, #tpu.memory_space<vmem>>, vector<1x256xf32>,
    %108 = vector.extract_strided_slice %99 {offsets = [0, 1024], sizes = [1, 256], strides = [1, 1]} : vector<1x2304xf32> to vector<1x256xf32>
    %c13 = arith.constant 13 : index
    %c0_50 = arith.constant 0 : index
    %109 = vector.load %arg6[%c13, %c0_50] : memref<40x256xf32, #tpu.memory_space<vmem>>, vector<1x256xf32>
    tpu.vector_store %arg6[%c13, %c0_50], %108 {strides = array<i32>} : memref<40x256xf32, #tpu.memory_space<vmem>>, vector<1x256xf32>,
    %110 = vector.extract_strided_slice %99 {offsets = [0, 1280], sizes = [1, 256], strides = [1, 1]} : vector<1x2304xf32> to vector<1x256xf32>
    %c14 = arith.constant 14 : index
    %c0_51 = arith.constant 0 : index
    %111 = vector.load %arg6[%c14, %c0_51] : memref<40x256xf32, #tpu.memory_space<vmem>>, vector<1x256xf32>
    tpu.vector_store %arg6[%c14, %c0_51], %110 {strides = array<i32>} : memref<40x256xf32, #tpu.memory_space<vmem>>, vector<1x256xf32>,
    %112 = vector.extract_strided_slice %99 {offsets = [0, 1536], sizes = [1, 256], strides = [1, 1]} : vector<1x2304xf32> to vector<1x256xf32>
    %c15 = arith.constant 15 : index
    %c0_52 = arith.constant 0 : index
    %113 = vector.load %arg6[%c15, %c0_52] : memref<40x256xf32, #tpu.memory_space<vmem>>, vector<1x256xf32>
    tpu.vector_store %arg6[%c15, %c0_52], %112 {strides = array<i32>} : memref<40x256xf32, #tpu.memory_space<vmem>>, vector<1x256xf32>,
    %114 = vector.extract_strided_slice %99 {offsets = [0, 1792], sizes = [1, 256], strides = [1, 1]} : vector<1x2304xf32> to vector<1x256xf32>
    %c16 = arith.constant 16 : index
    %c0_53 = arith.constant 0 : index
    %115 = vector.load %arg6[%c16, %c0_53] : memref<40x256xf32, #tpu.memory_space<vmem>>, vector<1x256xf32>
    tpu.vector_store %arg6[%c16, %c0_53], %114 {strides = array<i32>} : memref<40x256xf32, #tpu.memory_space<vmem>>, vector<1x256xf32>,
    %116 = vector.extract_strided_slice %99 {offsets = [0, 2048], sizes = [1, 256], strides = [1, 1]} : vector<1x2304xf32> to vector<1x256xf32>
    %c17 = arith.constant 17 : index
    %c0_54 = arith.constant 0 : index
    %117 = vector.load %arg6[%c17, %c0_54] : memref<40x256xf32, #tpu.memory_space<vmem>>, vector<1x256xf32>
    tpu.vector_store %arg6[%c17, %c0_54], %116 {strides = array<i32>} : memref<40x256xf32, #tpu.memory_space<vmem>>, vector<1x256xf32>,
    %118 = vector.extract_strided_slice %23 {offsets = [2, 0], sizes = [1, 2304], strides = [1, 1]} : vector<4x2304xf32> to vector<1x2304xf32>
    %119 = vector.broadcast %118 : vector<1x2304xf32> to vector<16x2304xf32>
    %120 = arith.subf %119, %31 : vector<16x2304xf32>
    %121 = math.absf %120 : vector<16x2304xf32>
    %cst_55 = arith.constant 1.000000e+00 : f32
    %122 = vector.broadcast %cst_55 : f32 to vector<16x2304xf32>
    %123 = arith.subf %122, %121 : vector<16x2304xf32>
    %cst_56 = arith.constant 0.000000e+00 : f32
    %124 = vector.broadcast %cst_56 : f32 to vector<16x2304xf32>
    %125 = arith.maximumf %123, %124 : vector<16x2304xf32>
    %126 = vector.extract_strided_slice %29 {offsets = [2, 0], sizes = [1, 2304], strides = [1, 1]} : vector<4x2304xf32> to vector<1x2304xf32>
    %127 = vector.broadcast %126 : vector<1x2304xf32> to vector<16x2304xf32>
    %128 = arith.subf %127, %33 : vector<16x2304xf32>
    %129 = math.absf %128 : vector<16x2304xf32>
    %cst_57 = arith.constant 1.000000e+00 : f32
    %130 = vector.broadcast %cst_57 : f32 to vector<16x2304xf32>
    %131 = arith.subf %130, %129 : vector<16x2304xf32>
    %cst_58 = arith.constant 0.000000e+00 : f32
    %132 = vector.broadcast %cst_58 : f32 to vector<16x2304xf32>
    %133 = arith.maximumf %131, %132 : vector<16x2304xf32>
    %134 = vector.extract_strided_slice %35 {offsets = [32, 0], sizes = [16, 16], strides = [1, 1]} : vector<64x16xbf16> to vector<16x16xbf16>
    %135 = arith.truncf %133 : vector<16x2304xf32> to vector<16x2304xbf16>
    %cst_59 = arith.constant dense<0.000000e+00> : vector<16x2304xf32>
    %136 = tpu.matmul %134, %135, %cst_59 {dimension_numbers = #tpu.dot_dimension_numbers<[1], [0], [0], [1], [0, 0, 1, 1], [], []>} : vector<16x16xbf16>, vector<16x2304xbf16>, vector<16x2304xf32> -> vector<16x2304xf32>
    %137 = vector.shape_cast %136 : vector<16x2304xf32> to vector<1x16x2304xf32>
    %138 = vector.shape_cast %125 : vector<16x2304xf32> to vector<1x16x2304xf32>
    %139 = arith.mulf %137, %138 : vector<1x16x2304xf32>
    %cst_60 = arith.constant dense<0.000000e+00> : vector<1x2304xf32>
    %140 = vector.multi_reduction <add>, %139, %cst_60 [1] : vector<1x16x2304xf32> to vector<1x2304xf32>
    %141 = vector.extract_strided_slice %140 {offsets = [0, 0], sizes = [1, 256], strides = [1, 1]} : vector<1x2304xf32> to vector<1x256xf32>
    %c18 = arith.constant 18 : index
    %c0_61 = arith.constant 0 : index
    %142 = vector.load %arg6[%c18, %c0_61] : memref<40x256xf32, #tpu.memory_space<vmem>>, vector<1x256xf32>
    tpu.vector_store %arg6[%c18, %c0_61], %141 {strides = array<i32>} : memref<40x256xf32, #tpu.memory_space<vmem>>, vector<1x256xf32>,
    %143 = vector.extract_strided_slice %140 {offsets = [0, 256], sizes = [1, 256], strides = [1, 1]} : vector<1x2304xf32> to vector<1x256xf32>
    %c19 = arith.constant 19 : index
    %c0_62 = arith.constant 0 : index
    %144 = vector.load %arg6[%c19, %c0_62] : memref<40x256xf32, #tpu.memory_space<vmem>>, vector<1x256xf32>
    tpu.vector_store %arg6[%c19, %c0_62], %143 {strides = array<i32>} : memref<40x256xf32, #tpu.memory_space<vmem>>, vector<1x256xf32>,
    %145 = vector.extract_strided_slice %140 {offsets = [0, 512], sizes = [1, 256], strides = [1, 1]} : vector<1x2304xf32> to vector<1x256xf32>
    %c20 = arith.constant 20 : index
    %c0_63 = arith.constant 0 : index
    %146 = vector.load %arg6[%c20, %c0_63] : memref<40x256xf32, #tpu.memory_space<vmem>>, vector<1x256xf32>
    tpu.vector_store %arg6[%c20, %c0_63], %145 {strides = array<i32>} : memref<40x256xf32, #tpu.memory_space<vmem>>, vector<1x256xf32>,
    %147 = vector.extract_strided_slice %140 {offsets = [0, 768], sizes = [1, 256], strides = [1, 1]} : vector<1x2304xf32> to vector<1x256xf32>
    %c21 = arith.constant 21 : index
    %c0_64 = arith.constant 0 : index
    %148 = vector.load %arg6[%c21, %c0_64] : memref<40x256xf32, #tpu.memory_space<vmem>>, vector<1x256xf32>
    tpu.vector_store %arg6[%c21, %c0_64], %147 {strides = array<i32>} : memref<40x256xf32, #tpu.memory_space<vmem>>, vector<1x256xf32>,
    %149 = vector.extract_strided_slice %140 {offsets = [0, 1024], sizes = [1, 256], strides = [1, 1]} : vector<1x2304xf32> to vector<1x256xf32>
    %c22 = arith.constant 22 : index
    %c0_65 = arith.constant 0 : index
    %150 = vector.load %arg6[%c22, %c0_65] : memref<40x256xf32, #tpu.memory_space<vmem>>, vector<1x256xf32>
    tpu.vector_store %arg6[%c22, %c0_65], %149 {strides = array<i32>} : memref<40x256xf32, #tpu.memory_space<vmem>>, vector<1x256xf32>,
    %151 = vector.extract_strided_slice %140 {offsets = [0, 1280], sizes = [1, 256], strides = [1, 1]} : vector<1x2304xf32> to vector<1x256xf32>
    %c23 = arith.constant 23 : index
    %c0_66 = arith.constant 0 : index
    %152 = vector.load %arg6[%c23, %c0_66] : memref<40x256xf32, #tpu.memory_space<vmem>>, vector<1x256xf32>
    tpu.vector_store %arg6[%c23, %c0_66], %151 {strides = array<i32>} : memref<40x256xf32, #tpu.memory_space<vmem>>, vector<1x256xf32>,
    %153 = vector.extract_strided_slice %140 {offsets = [0, 1536], sizes = [1, 256], strides = [1, 1]} : vector<1x2304xf32> to vector<1x256xf32>
    %c24 = arith.constant 24 : index
    %c0_67 = arith.constant 0 : index
    %154 = vector.load %arg6[%c24, %c0_67] : memref<40x256xf32, #tpu.memory_space<vmem>>, vector<1x256xf32>
    tpu.vector_store %arg6[%c24, %c0_67], %153 {strides = array<i32>} : memref<40x256xf32, #tpu.memory_space<vmem>>, vector<1x256xf32>,
    %155 = vector.extract_strided_slice %140 {offsets = [0, 1792], sizes = [1, 256], strides = [1, 1]} : vector<1x2304xf32> to vector<1x256xf32>
    %c25 = arith.constant 25 : index
    %c0_68 = arith.constant 0 : index
    %156 = vector.load %arg6[%c25, %c0_68] : memref<40x256xf32, #tpu.memory_space<vmem>>, vector<1x256xf32>
    tpu.vector_store %arg6[%c25, %c0_68], %155 {strides = array<i32>} : memref<40x256xf32, #tpu.memory_space<vmem>>, vector<1x256xf32>,
    %157 = vector.extract_strided_slice %140 {offsets = [0, 2048], sizes = [1, 256], strides = [1, 1]} : vector<1x2304xf32> to vector<1x256xf32>
    %c26 = arith.constant 26 : index
    %c0_69 = arith.constant 0 : index
    %158 = vector.load %arg6[%c26, %c0_69] : memref<40x256xf32, #tpu.memory_space<vmem>>, vector<1x256xf32>
    tpu.vector_store %arg6[%c26, %c0_69], %157 {strides = array<i32>} : memref<40x256xf32, #tpu.memory_space<vmem>>, vector<1x256xf32>,
    %159 = vector.extract_strided_slice %23 {offsets = [3, 0], sizes = [1, 2304], strides = [1, 1]} : vector<4x2304xf32> to vector<1x2304xf32>
    %160 = vector.broadcast %159 : vector<1x2304xf32> to vector<16x2304xf32>
    %161 = arith.subf %160, %31 : vector<16x2304xf32>
    %162 = math.absf %161 : vector<16x2304xf32>
    %cst_70 = arith.constant 1.000000e+00 : f32
    %163 = vector.broadcast %cst_70 : f32 to vector<16x2304xf32>
    %164 = arith.subf %163, %162 : vector<16x2304xf32>
    %cst_71 = arith.constant 0.000000e+00 : f32
    %165 = vector.broadcast %cst_71 : f32 to vector<16x2304xf32>
    %166 = arith.maximumf %164, %165 : vector<16x2304xf32>
    %167 = vector.extract_strided_slice %29 {offsets = [3, 0], sizes = [1, 2304], strides = [1, 1]} : vector<4x2304xf32> to vector<1x2304xf32>
    %168 = vector.broadcast %167 : vector<1x2304xf32> to vector<16x2304xf32>
    %169 = arith.subf %168, %33 : vector<16x2304xf32>
    %170 = math.absf %169 : vector<16x2304xf32>
    %cst_72 = arith.constant 1.000000e+00 : f32
    %171 = vector.broadcast %cst_72 : f32 to vector<16x2304xf32>
    %172 = arith.subf %171, %170 : vector<16x2304xf32>
    %cst_73 = arith.constant 0.000000e+00 : f32
    %173 = vector.broadcast %cst_73 : f32 to vector<16x2304xf32>
    %174 = arith.maximumf %172, %173 : vector<16x2304xf32>
    %175 = vector.extract_strided_slice %35 {offsets = [48, 0], sizes = [16, 16], strides = [1, 1]} : vector<64x16xbf16> to vector<16x16xbf16>
    %176 = arith.truncf %174 : vector<16x2304xf32> to vector<16x2304xbf16>
    %cst_74 = arith.constant dense<0.000000e+00> : vector<16x2304xf32>
    %177 = tpu.matmul %175, %176, %cst_74 {dimension_numbers = #tpu.dot_dimension_numbers<[1], [0], [0], [1], [0, 0, 1, 1], [], []>} : vector<16x16xbf16>, vector<16x2304xbf16>, vector<16x2304xf32> -> vector<16x2304xf32>
    %178 = vector.shape_cast %177 : vector<16x2304xf32> to vector<1x16x2304xf32>
    %179 = vector.shape_cast %166 : vector<16x2304xf32> to vector<1x16x2304xf32>
    %180 = arith.mulf %178, %179 : vector<1x16x2304xf32>
    %cst_75 = arith.constant dense<0.000000e+00> : vector<1x2304xf32>
    %181 = vector.multi_reduction <add>, %180, %cst_75 [1] : vector<1x16x2304xf32> to vector<1x2304xf32>
    %182 = vector.extract_strided_slice %181 {offsets = [0, 0], sizes = [1, 256], strides = [1, 1]} : vector<1x2304xf32> to vector<1x256xf32>
    %c27 = arith.constant 27 : index
    %c0_76 = arith.constant 0 : index
    %183 = vector.load %arg6[%c27, %c0_76] : memref<40x256xf32, #tpu.memory_space<vmem>>, vector<1x256xf32>
    tpu.vector_store %arg6[%c27, %c0_76], %182 {strides = array<i32>} : memref<40x256xf32, #tpu.memory_space<vmem>>, vector<1x256xf32>,
    %184 = vector.extract_strided_slice %181 {offsets = [0, 256], sizes = [1, 256], strides = [1, 1]} : vector<1x2304xf32> to vector<1x256xf32>
    %c28 = arith.constant 28 : index
    %c0_77 = arith.constant 0 : index
    %185 = vector.load %arg6[%c28, %c0_77] : memref<40x256xf32, #tpu.memory_space<vmem>>, vector<1x256xf32>
    tpu.vector_store %arg6[%c28, %c0_77], %184 {strides = array<i32>} : memref<40x256xf32, #tpu.memory_space<vmem>>, vector<1x256xf32>,
    %186 = vector.extract_strided_slice %181 {offsets = [0, 512], sizes = [1, 256], strides = [1, 1]} : vector<1x2304xf32> to vector<1x256xf32>
    %c29 = arith.constant 29 : index
    %c0_78 = arith.constant 0 : index
    %187 = vector.load %arg6[%c29, %c0_78] : memref<40x256xf32, #tpu.memory_space<vmem>>, vector<1x256xf32>
    tpu.vector_store %arg6[%c29, %c0_78], %186 {strides = array<i32>} : memref<40x256xf32, #tpu.memory_space<vmem>>, vector<1x256xf32>,
    %188 = vector.extract_strided_slice %181 {offsets = [0, 768], sizes = [1, 256], strides = [1, 1]} : vector<1x2304xf32> to vector<1x256xf32>
    %c30 = arith.constant 30 : index
    %c0_79 = arith.constant 0 : index
    %189 = vector.load %arg6[%c30, %c0_79] : memref<40x256xf32, #tpu.memory_space<vmem>>, vector<1x256xf32>
    tpu.vector_store %arg6[%c30, %c0_79], %188 {strides = array<i32>} : memref<40x256xf32, #tpu.memory_space<vmem>>, vector<1x256xf32>,
    %190 = vector.extract_strided_slice %181 {offsets = [0, 1024], sizes = [1, 256], strides = [1, 1]} : vector<1x2304xf32> to vector<1x256xf32>
    %c31 = arith.constant 31 : index
    %c0_80 = arith.constant 0 : index
    %191 = vector.load %arg6[%c31, %c0_80] : memref<40x256xf32, #tpu.memory_space<vmem>>, vector<1x256xf32>
    tpu.vector_store %arg6[%c31, %c0_80], %190 {strides = array<i32>} : memref<40x256xf32, #tpu.memory_space<vmem>>, vector<1x256xf32>,
    %192 = vector.extract_strided_slice %181 {offsets = [0, 1280], sizes = [1, 256], strides = [1, 1]} : vector<1x2304xf32> to vector<1x256xf32>
    %c32 = arith.constant 32 : index
    %c0_81 = arith.constant 0 : index
    %193 = vector.load %arg6[%c32, %c0_81] : memref<40x256xf32, #tpu.memory_space<vmem>>, vector<1x256xf32>
    tpu.vector_store %arg6[%c32, %c0_81], %192 {strides = array<i32>} : memref<40x256xf32, #tpu.memory_space<vmem>>, vector<1x256xf32>,
    %194 = vector.extract_strided_slice %181 {offsets = [0, 1536], sizes = [1, 256], strides = [1, 1]} : vector<1x2304xf32> to vector<1x256xf32>
    %c33 = arith.constant 33 : index
    %c0_82 = arith.constant 0 : index
    %195 = vector.load %arg6[%c33, %c0_82] : memref<40x256xf32, #tpu.memory_space<vmem>>, vector<1x256xf32>
    tpu.vector_store %arg6[%c33, %c0_82], %194 {strides = array<i32>} : memref<40x256xf32, #tpu.memory_space<vmem>>, vector<1x256xf32>,
    %196 = vector.extract_strided_slice %181 {offsets = [0, 1792], sizes = [1, 256], strides = [1, 1]} : vector<1x2304xf32> to vector<1x256xf32>
    %c34 = arith.constant 34 : index
    %c0_83 = arith.constant 0 : index
    %197 = vector.load %arg6[%c34, %c0_83] : memref<40x256xf32, #tpu.memory_space<vmem>>, vector<1x256xf32>
    tpu.vector_store %arg6[%c34, %c0_83], %196 {strides = array<i32>} : memref<40x256xf32, #tpu.memory_space<vmem>>, vector<1x256xf32>,
    %198 = vector.extract_strided_slice %181 {offsets = [0, 2048], sizes = [1, 256], strides = [1, 1]} : vector<1x2304xf32> to vector<1x256xf32>
    %c35 = arith.constant 35 : index
    %c0_84 = arith.constant 0 : index
    %199 = vector.load %arg6[%c35, %c0_84] : memref<40x256xf32, #tpu.memory_space<vmem>>, vector<1x256xf32>
    tpu.vector_store %arg6[%c35, %c0_84], %198 {strides = array<i32>} : memref<40x256xf32, #tpu.memory_space<vmem>>, vector<1x256xf32>,
    %c0_85 = arith.constant 0 : index
    %c0_86 = arith.constant 0 : index
    %200 = vector.load %arg4[%c0_85, %c0_86] : memref<8x40xf32, #tpu.memory_space<vmem>>, vector<8x40xf32>
    %c0_87 = arith.constant 0 : index
    %c0_88 = arith.constant 0 : index
    %201 = vector.load %arg6[%c0_87, %c0_88] : memref<40x256xf32, #tpu.memory_space<vmem>>, vector<40x256xf32>
    %cst_89 = arith.constant dense<0.000000e+00> : vector<8x256xf32>
    %202 = tpu.matmul %200, %201, %cst_89 {dimension_numbers = #tpu.dot_dimension_numbers<[1], [0], [0], [1], [0, 0, 1, 1], [], []>} : vector<8x40xf32>, vector<40x256xf32>, vector<8x256xf32> -> vector<8x256xf32>
    %cst_90 = arith.constant 0.000000e+00 : f32
    %203 = vector.broadcast %cst_90 : f32 to vector<8x256xf32>
    %204 = arith.maximumf %202, %203 : vector<8x256xf32>
    %c0_91 = arith.constant 0 : index
    %c0_92 = arith.constant 0 : index
    %c0_93 = arith.constant 0 : index
    %205 = vector.load %arg5[%c0_91, %c0_92, %c0_93] : memref<1x8x256xf32, #tpu.memory_space<vmem>>, vector<1x8x256xf32>
    %206 = vector.shape_cast %205 : vector<1x8x256xf32> to vector<8x256xf32>
    %207 = vector.shape_cast %204 : vector<8x256xf32> to vector<1x8x256xf32>
    tpu.vector_store %arg5[%c0_91, %c0_92, %c0_93], %207 {strides = array<i32>} : memref<1x8x256xf32, #tpu.memory_space<vmem>>, vector<1x8x256xf32>,
    return
  }
  func.func @transform_0(%arg0: i32) -> (i32, i32, i32) {
    %c0_i32 = arith.constant 0 : i32
    %c0_i32_0 = arith.constant 0 : i32
    %c0_i32_1 = arith.constant 0 : i32
    return %arg0, %c0_i32, %c0_i32_0 : i32, i32, i32
  }
  func.func @transform_1(%arg0: i32) -> (i32, i32, i32) {
    %c0_i32 = arith.constant 0 : i32
    %c0_i32_0 = arith.constant 0 : i32
    %c0_i32_1 = arith.constant 0 : i32
    return %arg0, %c0_i32, %c0_i32_0 : i32, i32, i32
  }
  func.func @transform_2(%arg0: i32) -> (i32, i32, i32) {
    %c0_i32 = arith.constant 0 : i32
    %c0_i32_0 = arith.constant 0 : i32
    %c0_i32_1 = arith.constant 0 : i32
    %c0_i32_2 = arith.constant 0 : i32
    return %c0_i32, %c0_i32_0, %c0_i32_1 : i32, i32, i32
  }
  func.func @transform_3(%arg0: i32) -> (i32, i32) {
    %c0_i32 = arith.constant 0 : i32
    %c0_i32_0 = arith.constant 0 : i32
    %c0_i32_1 = arith.constant 0 : i32
    return %c0_i32, %c0_i32_0 : i32, i32
  }
  func.func @transform_4(%arg0: i32) -> (i32, i32, i32) {
    %c0_i32 = arith.constant 0 : i32
    %c0_i32_0 = arith.constant 0 : i32
    %c0_i32_1 = arith.constant 0 : i32
    return %arg0, %c0_i32, %c0_i32_0 : i32, i32, i32
  }
}

</mosaic_0001>

<llo_original>
// kernel: tpu_custom_call.1
$region0: #{tpu_custom_call.1}
  #allocation0 [shape = 'u32[]', space=smem, size = 0x4, offset = 0x4, fixed_abs, tag = 'smem constant byte address 0x4 - core index']
  #allocation1 [shape = 'u32[144,128]{1,0:T(1,128)}', space=vmem, size = 0x12000, scoped, tag = 'internal scratch']
  #allocation2 [shape = 'f32[40,256]{1,0:T(8,128)}', space=vmem, size = 0xa000, scoped, tag = 'scratch operand']
  %s0 = inlined_call_operand.vmem [shape: f32[2,2,2304], index: 0, kind: input, shape index: {}]
  %s1 = inlined_call_operand.vmem [shape: bf16[2,64,16], index: 1, kind: input, shape index: {}]
  %s2 = inlined_call_operand.hbm [shape: f32[6,4,2304], index: 2, kind: input, shape index: {}]
  %s3 = inlined_call_operand.vmem [shape: f32[8,40], index: 3, kind: input, shape index: {}]
  %s4 = inlined_call_operand.hbm [shape: f32[2,8,256], index: 4, kind: output, shape index: {}]
  %s5 = sld [smem:[#allocation0]]
  $region53: #{tpu_custom_call.1} parent=0
    _
  %s7 = ssub.s32 1, %s5
  %s8 = scalar_select 0, %s7, %s5
  $region1: #{tpu_custom_call.1} parent=0
    #allocation3 [shape = 'u8[221184]{0}', space=vmem, size = 0x36000, scoped, tag = 'input window, operand 2, single buffered']
    #allocation4 [shape = 's32[2]{0}', space=sflag, size = 0x8, scoped, tag = 'scoped memory for tpu_custom_call.1']
    #allocation5 [shape = 's32[2]{0}', space=sflag, size = 0x8, scoped, tag = 'scoped memory for tpu_custom_call.1']
    #allocation6 [shape = 'u8[16384]{0}', space=vmem, size = 0x4000, scoped, tag = 'output window, operand 0']
    %9 = vsyncpa [#allocation4], 0
    %10 = vsyncpa [#allocation5], 0
    %s11 = scalar_lea.sflag [#allocation5], 1
    %12 = vsyncpa %s11, 0
    loop: start=0, step=1, limit=4
    $region2: #{tpu_custom_call.1} parent=1 // loop_pre_header
      _
    $region3: #{tpu_custom_call.1} parent=1 // loop_header
      %s14 = sphi 0, %s18
      %p15 = scmp.ge.s32.totalorder %s14, 4
      %s24 = sphi 0, %s26
      %s27 = sphi 0, %s24
      %s28 = sphi 0, %s27
      %s44 = sphi 0, %s28
      %s50 = sphi 0, %s52
      %s53 = sphi 0, %s50
      %s54 = sphi 0, %s53
      %s70 = sphi 0, %s54
      %s74 = sphi 0, %s74
      %s76 = sphi 0, %s74
      %s77 = sphi 0, %s76
      %s91 = sphi 0, %s77
      %s95 = sphi 0, %s95
      %s97 = sphi 0, %s95
      %s98 = sphi 0, %s97
      %s112 = sphi 0, %s98
      %s118 = sphi 0, %s120
      %s121 = sphi 0, %s118
      %s122 = sphi 0, %s121
      %s138 = sphi 0, %s122
    $region4: #{tpu_custom_call.1} parent=1 // loop_header_branch
      %17 = sbr.rel (%p15) target = $region8
    $region5: #{tpu_custom_call.1} parent=1 // loop_body
      %s19 = ssub.s32 %s14, 1
      %s20 = ssub.s32 %s14, 2
      %s21 = sadd.s32 %s14, 1
      %s22 = ssub.s32 %s14, %s21
      %p23 = scmp.eq.s32.totalorder %s22, 0
      %s25 = sadd.s32 %s24, 1
      %s26 = scalar_select %p23, %s24, %s25
      %p29 = pneg %p23
      %p30 = scmp.eq.s32.totalorder %s14, 1
      %p31 = por %p29, %p30
      %p32 = scmp.ne.s32.totalorder %s24, %s27
      %p33 = scmp.eq.s32.totalorder %s14, 0
      %p34 = por %p32, %p33
      %p35 = scmp.ne.s32.totalorder %s24, %s27
      %p36 = scmp.eq.s32.totalorder %s19, 1
      %p37 = por %p35, %p36
      %p38 = scmp.ne.s32.totalorder %s27, %s28
      %p39 = scmp.eq.s32.totalorder %s19, 0
      %p40 = por %p38, %p39
      %p41 = scmp.ne.s32.totalorder %s27, %s28
      %p42 = scmp.eq.s32.totalorder %s20, 1
      %p43 = por %p41, %p42
      %p45 = scmp.ne.s32.totalorder %s28, %s44
      %p46 = scmp.eq.s32.totalorder %s20, 0
      %p47 = por %p45, %p46
      %s48 = ssub.s32 %s14, %s21
      %p49 = scmp.eq.s32.totalorder %s48, 0
      %s51 = sadd.s32 %s50, 1
      %s52 = scalar_select %p49, %s50, %s51
      %p55 = pneg %p49
      %p56 = scmp.eq.s32.totalorder %s14, 1
      %p57 = por %p55, %p56
      %p58 = scmp.ne.s32.totalorder %s50, %s53
      %p59 = scmp.eq.s32.totalorder %s14, 0
      %p60 = por %p58, %p59
      %p61 = scmp.ne.s32.totalorder %s50, %s53
      %p62 = scmp.eq.s32.totalorder %s19, 1
      %p63 = por %p61, %p62
      %p64 = scmp.ne.s32.totalorder %s53, %s54
      %p65 = scmp.eq.s32.totalorder %s19, 0
      %p66 = por %p64, %p65
      %p67 = scmp.ne.s32.totalorder %s53, %s54
      %p68 = scmp.eq.s32.totalorder %s20, 1
      %p69 = por %p67, %p68
      %p71 = scmp.ne.s32.totalorder %s54, %s70
      %p72 = scmp.eq.s32.totalorder %s20, 0
      %p73 = por %p71, %p72
      %s75 = sadd.s32 %s74, 1
      %p78 = scmp.eq.s32.totalorder %s14, 1
      %p79 = scmp.ne.s32.totalorder %s74, %s76
      %p80 = scmp.eq.s32.totalorder %s14, 0
      %p81 = por %p79, %p80
      %p82 = scmp.ne.s32.totalorder %s74, %s76
      %p83 = scmp.eq.s32.totalorder %s19, 1
      %p84 = por %p82, %p83
      %p85 = scmp.ne.s32.totalorder %s76, %s77
      %p86 = scmp.eq.s32.totalorder %s19, 0
      %p87 = por %p85, %p86
      %p88 = scmp.ne.s32.totalorder %s76, %s77
      %p89 = scmp.eq.s32.totalorder %s20, 1
      %p90 = por %p88, %p89
      %p92 = scmp.ne.s32.totalorder %s77, %s91
      %p93 = scmp.eq.s32.totalorder %s20, 0
      %p94 = por %p92, %p93
      %s96 = sadd.s32 %s95, 1
      %p99 = scmp.eq.s32.totalorder %s14, 1
      %p100 = scmp.ne.s32.totalorder %s95, %s97
      %p101 = scmp.eq.s32.totalorder %s14, 0
      %p102 = por %p100, %p101
      %p103 = scmp.ne.s32.totalorder %s95, %s97
      %p104 = scmp.eq.s32.totalorder %s19, 1
      %p105 = por %p103, %p104
      %p106 = scmp.ne.s32.totalorder %s97, %s98
      %p107 = scmp.eq.s32.totalorder %s19, 0
      %p108 = por %p106, %p107
      %p109 = scmp.ne.s32.totalorder %s97, %s98
      %p110 = scmp.eq.s32.totalorder %s20, 1
      %p111 = por %p109, %p110
      %p113 = scmp.ne.s32.totalorder %s98, %s112
      %p114 = scmp.eq.s32.totalorder %s20, 0
      %p115 = por %p113, %p114
      %s116 = ssub.s32 %s14, %s21
      %p117 = scmp.eq.s32.totalorder %s116, 0
      %s119 = sadd.s32 %s118, 1
      %s120 = scalar_select %p117, %s118, %s119
      %p123 = pneg %p117
      %p124 = scmp.eq.s32.totalorder %s14, 1
      %p125 = por %p123, %p124
      %p126 = scmp.ne.s32.totalorder %s118, %s121
      %p127 = scmp.eq.s32.totalorder %s14, 0
      %p128 = por %p126, %p127
      %p129 = scmp.ne.s32.totalorder %s118, %s121
      %p130 = scmp.eq.s32.totalorder %s19, 1
      %p131 = por %p129, %p130
      %p132 = scmp.ne.s32.totalorder %s121, %s122
      %p133 = scmp.eq.s32.totalorder %s19, 0
      %p134 = por %p132, %p133
      %p135 = scmp.ne.s32.totalorder %s121, %s122
      %p136 = scmp.eq.s32.totalorder %s20, 1
      %p137 = por %p135, %p136
      %p139 = scmp.ne.s32.totalorder %s122, %s138
      %p140 = scmp.eq.s32.totalorder %s20, 0
      %p141 = por %p139, %p140
      %p142 = scmp.le.s32.totalorder 1, %s14
      %p143 = scmp.lt.s32.totalorder %s14, 3
      %p144 = pnand %p142, %p143
      %p145 = pneg %p144
      // Predicated region
      $region9: #{tpu_custom_call.1} parent=5 // pred_check
        _
      $region10: #{tpu_custom_call.1} parent=5 // pred_check_branch
        %147 = sbr.rel (%p144) target = $region12
      $region11: #{tpu_custom_call.1} parent=5 // pred_region
        %s148 = ssub.s32 %s14, 1
        // Predicated region
        $region13: #{tpu_custom_call.1} parent=11 // pred_check
          %p149 = pneg %p87
        $region14: #{tpu_custom_call.1} parent=11 // pred_check_branch
          %151 = sbr.rel (%p149) target = $region16
        $region15: #{tpu_custom_call.1} parent=11 // pred_region
          %s153 = ssub.s32 6912, 6912
          %154 = vsyncadd [#allocation4], %s153
          %s155 = sshll.u32 [#allocation3], 4
          %s156 = int_to_ptr.vmem [resolvable:$true] %s155
          %161 = dma.hbm_to_vmem [thread:$0]  %s2, 6912, %s156, [#allocation4], 1152, 1152, 72
        $region16: #{tpu_custom_call.1} parent=11 // pred_fallthru
          _
        // Predicated region
        $region17: #{tpu_custom_call.1} parent=11 // pred_check
          %p162 = pneg %p108
        $region18: #{tpu_custom_call.1} parent=11 // pred_check_branch
          %164 = sbr.rel (%p162) target = $region20
        $region19: #{tpu_custom_call.1} parent=11 // pred_region
          _
        $region20: #{tpu_custom_call.1} parent=11 // pred_fallthru
          _
      $region12: #{tpu_custom_call.1} parent=5 // pred_fallthru
        _
      %p165 = scmp.lt.s32.totalorder %s14, 2
      // Predicated region
      $region21: #{tpu_custom_call.1} parent=5 // pred_check
        %p166 = pneg %p165
      $region22: #{tpu_custom_call.1} parent=5 // pred_check_branch
        %168 = sbr.rel (%p166) target = $region24
      $region23: #{tpu_custom_call.1} parent=5 // pred_region
        // Predicated region
        $region25: #{tpu_custom_call.1} parent=23 // pred_check
          %p169 = pneg %p34
        $region26: #{tpu_custom_call.1} parent=23 // pred_check_branch
          %171 = sbr.rel (%p169) target = $region28
        $region27: #{tpu_custom_call.1} parent=23 // pred_region
          %p172 = scmp.lt.s32.totalorder %s14, 1
          %s173 = scalar_select %p172, %s14, 1
          %s174 = smul.addr %s173, 18
          %s175 = smul.addr %s174, 2
          %s176 = scalar_lea.vmem %s0, %s175
        $region28: #{tpu_custom_call.1} parent=23 // pred_fallthru
          _
        // Predicated region
        $region29: #{tpu_custom_call.1} parent=23 // pred_check
          %p177 = pneg %p60
        $region30: #{tpu_custom_call.1} parent=23 // pred_check_branch
          %179 = sbr.rel (%p177) target = $region32
        $region31: #{tpu_custom_call.1} parent=23 // pred_region
          %p180 = scmp.lt.s32.totalorder %s14, 1
          %s181 = scalar_select %p180, %s14, 1
          %s182 = smul.addr %s181, 8
          %s183 = smul.addr %s182, 4
          %s184 = scalar_lea.vmem %s1, %s183
        $region32: #{tpu_custom_call.1} parent=23 // pred_fallthru
          _
      $region24: #{tpu_custom_call.1} parent=5 // pred_fallthru
        _
      %p185 = scmp.le.s32.totalorder 1, %s14
      %p186 = scmp.lt.s32.totalorder %s14, 3
      %p187 = pnand %p185, %p186
      %p188 = pneg %p187
      // Predicated region
      $region33: #{tpu_custom_call.1} parent=5 // pred_check
        _
      $region34: #{tpu_custom_call.1} parent=5 // pred_check_branch
        %190 = sbr.rel (%p187) target = $region36
      $region35: #{tpu_custom_call.1} parent=5 // pred_region
        %s191 = ssub.s32 %s14, 1
        // Predicated region
        $region37: #{tpu_custom_call.1} parent=35 // pred_check
          %p192 = pneg %p87
        $region38: #{tpu_custom_call.1} parent=35 // pred_check_branch
          %194 = sbr.rel (%p192) target = $region40
        $region39: #{tpu_custom_call.1} parent=35 // pred_region
          %195 = dma.done [#allocation4], 6912
        $region40: #{tpu_custom_call.1} parent=35 // pred_fallthru
          _
        %p196 = scmp.lt.s32.totalorder %s19, 1
        %s197 = scalar_select %p196, %s19, 1
        %s198 = smul.addr %s197, 18
        %s199 = smul.addr %s198, 2
        %s200 = scalar_lea.vmem %s0, %s199
        %p201 = pneg %p40
        %p202 = pneg %p37
        %p203 = scmp.lt.s32.totalorder %s19, 1
        %s204 = scalar_select %p203, %s19, 1
        %s205 = smul.addr %s204, 8
        %s206 = smul.addr %s205, 4
        %s207 = scalar_lea.vmem %s1, %s206
        %p208 = pneg %p66
        %p209 = pneg %p63
        %p210 = pneg %p87
        %p211 = pneg %p84
        %p212 = pneg %p108
        %p213 = pneg %p105
        %p214 = pneg %p134
        %p215 = pneg %p131
        %s216 = sand.u32 %s121, 1
        %s217 = scalar_lea.sflag [#allocation5], %s216
        %s218 = sand.u32 %s121, 1
        %s219 = smul.addr %s218, 16
        %s220 = scalar_lea.vmem [#allocation6], %s219
        %p221 = scmp.lt.s32.totalorder %s19, 1
        %s222 = scalar_select %p221, %s19, 1
        %s223 = smul.addr %s222, 18
        %s224 = smul.addr %s223, 2
        %s225 = scalar_lea.vmem %s0, %s224
        %p226 = scmp.lt.s32.totalorder %s19, 1
        %s227 = scalar_select %p226, %s19, 1
        %s228 = smul.addr %s227, 8
        %s229 = smul.addr %s228, 4
        %s230 = scalar_lea.vmem %s1, %s229
        %232 = vst [vmem:[#allocation2 + $0x40] sm:$0xf0] 0.0
        %233 = vst [vmem:[#allocation2 + $0x48] sm:$0xf0] 0.0
        %v234 = vld [vmem:[%s225] sm:$0xff]
        %v235 = vld [vmem:[%s225 + $0x8] sm:$0xff]
        %v236 = vld [vmem:[%s225 + $0x10] sm:$0xff]
        %v237 = vld [vmem:[%s225 + $0x18] sm:$0xff]
        %v238 = vld [vmem:[%s225 + $0x20] sm:$0xf]
        %v239 = vld [vmem:[#allocation3] sm:$0xff]
        %v240 = vld [vmem:[#allocation3 + $0x8] sm:$0xff]
        %v241 = vld [vmem:[#allocation3 + $0x10] sm:$0xff]
        %v242 = vld [vmem:[#allocation3 + $0x18] sm:$0xff]
        %v243 = vld [vmem:[#allocation3 + $0x20] sm:$0xff]
        %v244 = vld [vmem:[#allocation3 + $0x28] sm:$0xff]
        %v245 = vld [vmem:[#allocation3 + $0x30] sm:$0xff]
        %v246 = vld [vmem:[#allocation3 + $0x38] sm:$0xff]
        %v247 = vld [vmem:[#allocation3 + $0x40] sm:$0xff]
        %s248 = scalar_lea.vmem [#allocation3], 72
        %v249 = vld [vmem:[%s248] sm:$0xff]
        %v250 = vld [vmem:[%s248 + $0x8] sm:$0xff]
        %v251 = vld [vmem:[%s248 + $0x10] sm:$0xff]
        %v252 = vld [vmem:[%s248 + $0x18] sm:$0xff]
        %v253 = vld [vmem:[%s248 + $0x20] sm:$0xff]
        %v254 = vld [vmem:[%s248 + $0x28] sm:$0xff]
        %v255 = vld [vmem:[%s248 + $0x30] sm:$0xff]
        %v256 = vld [vmem:[%s248 + $0x38] sm:$0xff]
        %v257 = vld [vmem:[%s248 + $0x40] sm:$0xff]
        %s258 = scalar_lea.vmem [#allocation3], 144
        %v259 = vld [vmem:[%s258] sm:$0xff]
        %v260 = vld [vmem:[%s258 + $0x8] sm:$0xff]
        %v261 = vld [vmem:[%s258 + $0x10] sm:$0xff]
        %v262 = vld [vmem:[%s258 + $0x18] sm:$0xff]
        %v263 = vld [vmem:[%s258 + $0x20] sm:$0xff]
        %v264 = vld [vmem:[%s258 + $0x28] sm:$0xff]
        %v265 = vld [vmem:[%s258 + $0x30] sm:$0xff]
        %v266 = vld [vmem:[%s258 + $0x38] sm:$0xff]
        %v267 = vld [vmem:[%s258 + $0x40] sm:$0xff]
        %s268 = scalar_lea.vmem [#allocation3], 216
        %v269 = vld [vmem:[%s268] sm:$0xff]
        %v270 = vld [vmem:[%s268 + $0x8] sm:$0xff]
        %v271 = vld [vmem:[%s268 + $0x10] sm:$0xff]
        %v272 = vld [vmem:[%s268 + $0x18] sm:$0xff]
        %v273 = vld [vmem:[%s268 + $0x20] sm:$0xff]
        %v274 = vld [vmem:[%s268 + $0x28] sm:$0xff]
        %v275 = vld [vmem:[%s268 + $0x30] sm:$0xff]
        %v276 = vld [vmem:[%s268 + $0x38] sm:$0xff]
        %v277 = vld [vmem:[%s268 + $0x40] sm:$0xff]
        %s278 = scalar_lea.vmem [#allocation3], 288
        %v279 = vld [vmem:[%s278] sm:$0xff]
        %v280 = vld [vmem:[%s278 + $0x8] sm:$0xff]
        %v281 = vld [vmem:[%s278 + $0x10] sm:$0xff]
        %v282 = vld [vmem:[%s278 + $0x18] sm:$0xff]
        %v283 = vld [vmem:[%s278 + $0x20] sm:$0xff]
        %v284 = vld [vmem:[%s278 + $0x28] sm:$0xff]
        %v285 = vld [vmem:[%s278 + $0x30] sm:$0xff]
        %v286 = vld [vmem:[%s278 + $0x38] sm:$0xff]
        %v287 = vld [vmem:[%s278 + $0x40] sm:$0xff]
        %s288 = scalar_lea.vmem [#allocation3], 360
        %v289 = vld [vmem:[%s288] sm:$0xff]
        %v290 = vld [vmem:[%s288 + $0x8] sm:$0xff]
        %v291 = vld [vmem:[%s288 + $0x10] sm:$0xff]
        %v292 = vld [vmem:[%s288 + $0x18] sm:$0xff]
        %v293 = vld [vmem:[%s288 + $0x20] sm:$0xff]
        %v294 = vld [vmem:[%s288 + $0x28] sm:$0xff]
        %v295 = vld [vmem:[%s288 + $0x30] sm:$0xff]
        %v296 = vld [vmem:[%s288 + $0x38] sm:$0xff]
        %v297 = vld [vmem:[%s288 + $0x40] sm:$0xff]
        %v303 = vlaneseq
        %v304 = vshrl.u32 %v303, 7
        %v305 = vsub.s32 0, %v304
        %v306 = vrot.slane %v234, %v305
        %v307 = vlaneseq
        %v308 = vshrl.u32 %v307, 7
        %v309 = vsub.s32 2, %v308
        %v310 = vrot.slane %v234, %v309
        %v311 = vlaneseq
        %v312 = vshrl.u32 %v311, 7
        %v313 = vsub.s32 4, %v312
        %v314 = vrot.slane %v234, %v313
        %v315 = vlaneseq
        %v316 = vshrl.u32 %v315, 7
        %v317 = vsub.s32 6, %v316
        %v318 = vrot.slane %v234, %v317
        %v319 = vlaneseq
        %v320 = vshrl.u32 %v319, 7
        %v321 = vsub.s32 0, %v320
        %v322 = vrot.slane %v235, %v321
        %v323 = vlaneseq
        %v324 = vshrl.u32 %v323, 7
        %v325 = vsub.s32 2, %v324
        %v326 = vrot.slane %v235, %v325
        %v327 = vlaneseq
        %v328 = vshrl.u32 %v327, 7
        %v329 = vsub.s32 4, %v328
        %v330 = vrot.slane %v235, %v329
        %v331 = vlaneseq
        %v332 = vshrl.u32 %v331, 7
        %v333 = vsub.s32 6, %v332
        %v334 = vrot.slane %v235, %v333
        %v335 = vlaneseq
        %v336 = vshrl.u32 %v335, 7
        %v337 = vsub.s32 0, %v336
        %v338 = vrot.slane %v236, %v337
        %v339 = vlaneseq
        %v340 = vshrl.u32 %v339, 7
        %v341 = vsub.s32 2, %v340
        %v342 = vrot.slane %v236, %v341
        %v343 = vlaneseq
        %v344 = vshrl.u32 %v343, 7
        %v345 = vsub.s32 4, %v344
        %v346 = vrot.slane %v236, %v345
        %v347 = vlaneseq
        %v348 = vshrl.u32 %v347, 7
        %v349 = vsub.s32 6, %v348
        %v350 = vrot.slane %v236, %v349
        %v351 = vlaneseq
        %v352 = vshrl.u32 %v351, 7
        %v353 = vsub.s32 0, %v352
        %v354 = vrot.slane %v237, %v353
        %v355 = vlaneseq
        %v356 = vshrl.u32 %v355, 7
        %v357 = vsub.s32 2, %v356
        %v358 = vrot.slane %v237, %v357
        %v359 = vlaneseq
        %v360 = vshrl.u32 %v359, 7
        %v361 = vsub.s32 4, %v360
        %v362 = vrot.slane %v237, %v361
        %v363 = vlaneseq
        %v364 = vshrl.u32 %v363, 7
        %v365 = vsub.s32 6, %v364
        %v366 = vrot.slane %v237, %v365
        %v367 = vlaneseq
        %v368 = vshrl.u32 %v367, 7
        %v369 = vsub.s32 0, %v368
        %v370 = vrot.slane %v238, %v369
        %v371 = vlaneseq
        %v372 = vshrl.u32 %v371, 7
        %v373 = vsub.s32 2, %v372
        %v374 = vrot.slane %v238, %v373
        %v393 = vlaneseq
        %v394 = vshrl.u32 %v393, 7
        %v395 = vsub.s32 0, %v394
        %v396 = vrot.slane %v306, %v395
        %v397 = vlaneseq
        %v398 = vshrl.u32 %v397, 7
        %v399 = vsub.s32 0, %v398
        %v400 = vrot.slane %v310, %v399
        %v401 = vlaneseq
        %v402 = vshrl.u32 %v401, 7
        %v403 = vsub.s32 0, %v402
        %v404 = vrot.slane %v314, %v403
        %v405 = vlaneseq
        %v406 = vshrl.u32 %v405, 7
        %v407 = vsub.s32 0, %v406
        %v408 = vrot.slane %v318, %v407
        %v409 = vlaneseq
        %v410 = vshrl.u32 %v409, 7
        %v411 = vsub.s32 0, %v410
        %v412 = vrot.slane %v322, %v411
        %v413 = vlaneseq
        %v414 = vshrl.u32 %v413, 7
        %v415 = vsub.s32 0, %v414
        %v416 = vrot.slane %v326, %v415
        %v417 = vlaneseq
        %v418 = vshrl.u32 %v417, 7
        %v419 = vsub.s32 0, %v418
        %v420 = vrot.slane %v330, %v419
        %v421 = vlaneseq
        %v422 = vshrl.u32 %v421, 7
        %v423 = vsub.s32 0, %v422
        %v424 = vrot.slane %v334, %v423
        %v425 = vlaneseq
        %v426 = vshrl.u32 %v425, 7
        %v427 = vsub.s32 0, %v426
        %v428 = vrot.slane %v338, %v427
        %v429 = vlaneseq
        %v430 = vshrl.u32 %v429, 7
        %v431 = vsub.s32 0, %v430
        %v432 = vrot.slane %v342, %v431
        %v433 = vlaneseq
        %v434 = vshrl.u32 %v433, 7
        %v435 = vsub.s32 0, %v434
        %v436 = vrot.slane %v346, %v435
        %v437 = vlaneseq
        %v438 = vshrl.u32 %v437, 7
        %v439 = vsub.s32 0, %v438
        %v440 = vrot.slane %v350, %v439
        %v441 = vlaneseq
        %v442 = vshrl.u32 %v441, 7
        %v443 = vsub.s32 0, %v442
        %v444 = vrot.slane %v354, %v443
        %v445 = vlaneseq
        %v446 = vshrl.u32 %v445, 7
        %v447 = vsub.s32 0, %v446
        %v448 = vrot.slane %v358, %v447
        %v449 = vlaneseq
        %v450 = vshrl.u32 %v449, 7
        %v451 = vsub.s32 0, %v450
        %v452 = vrot.slane %v362, %v451
        %v453 = vlaneseq
        %v454 = vshrl.u32 %v453, 7
        %v455 = vsub.s32 0, %v454
        %v456 = vrot.slane %v366, %v455
        %v457 = vlaneseq
        %v458 = vshrl.u32 %v457, 7
        %v459 = vsub.s32 0, %v458
        %v460 = vrot.slane %v370, %v459
        %v461 = vlaneseq
        %v462 = vshrl.u32 %v461, 7
        %v463 = vsub.s32 0, %v462
        %v464 = vrot.slane %v374, %v463
        %v483 = vcombine.low %v396, %v400
        %v484 = vcombine.low %v404, %v408
        %v485 = vcombine.low %v412, %v416
        %v486 = vcombine.low %v420, %v424
        %v487 = vcombine.low %v428, %v432
        %v488 = vcombine.low %v436, %v440
        %v489 = vcombine.low %v444, %v448
        %v490 = vcombine.low %v452, %v456
        %v491 = vcombine.low %v460, %v464
        %v501 = vmul.f32 %v259, %v483
        %v502 = vmul.f32 %v260, %v484
        %v503 = vmul.f32 %v261, %v485
        %v504 = vmul.f32 %v262, %v486
        %v505 = vmul.f32 %v263, %v487
        %v506 = vmul.f32 %v264, %v488
        %v507 = vmul.f32 %v265, %v489
        %v508 = vmul.f32 %v266, %v490
        %v509 = vmul.f32 %v267, %v491
        %v510 = vadd.f32 %v239, %v501
        %v511 = vadd.f32 %v240, %v502
        %v512 = vadd.f32 %v241, %v503
        %v513 = vadd.f32 %v242, %v504
        %v514 = vadd.f32 %v243, %v505
        %v515 = vadd.f32 %v244, %v506
        %v516 = vadd.f32 %v245, %v507
        %v517 = vadd.f32 %v246, %v508
        %v518 = vadd.f32 %v247, %v509
        %v519 = vlaneseq
        %v520 = vshrl.u32 %v519, 7
        %v521 = vsub.s32 1, %v520
        %v522 = vrot.slane %v234, %v521
        %v523 = vlaneseq
        %v524 = vshrl.u32 %v523, 7
        %v525 = vsub.s32 3, %v524
        %v526 = vrot.slane %v234, %v525
        %v527 = vlaneseq
        %v528 = vshrl.u32 %v527, 7
        %v529 = vsub.s32 5, %v528
        %v530 = vrot.slane %v234, %v529
        %v531 = vlaneseq
        %v532 = vshrl.u32 %v531, 7
        %v533 = vsub.s32 7, %v532
        %v534 = vrot.slane %v234, %v533
        %v535 = vlaneseq
        %v536 = vshrl.u32 %v535, 7
        %v537 = vsub.s32 1, %v536
        %v538 = vrot.slane %v235, %v537
        %v539 = vlaneseq
        %v540 = vshrl.u32 %v539, 7
        %v541 = vsub.s32 3, %v540
        %v542 = vrot.slane %v235, %v541
        %v543 = vlaneseq
        %v544 = vshrl.u32 %v543, 7
        %v545 = vsub.s32 5, %v544
        %v546 = vrot.slane %v235, %v545
        %v547 = vlaneseq
        %v548 = vshrl.u32 %v547, 7
        %v549 = vsub.s32 7, %v548
        %v550 = vrot.slane %v235, %v549
        %v551 = vlaneseq
        %v552 = vshrl.u32 %v551, 7
        %v553 = vsub.s32 1, %v552
        %v554 = vrot.slane %v236, %v553
        %v555 = vlaneseq
        %v556 = vshrl.u32 %v555, 7
        %v557 = vsub.s32 3, %v556
        %v558 = vrot.slane %v236, %v557
        %v559 = vlaneseq
        %v560 = vshrl.u32 %v559, 7
        %v561 = vsub.s32 5, %v560
        %v562 = vrot.slane %v236, %v561
        %v563 = vlaneseq
        %v564 = vshrl.u32 %v563, 7
        %v565 = vsub.s32 7, %v564
        %v566 = vrot.slane %v236, %v565
        %v567 = vlaneseq
        %v568 = vshrl.u32 %v567, 7
        %v569 = vsub.s32 1, %v568
        %v570 = vrot.slane %v237, %v569
        %v571 = vlaneseq
        %v572 = vshrl.u32 %v571, 7
        %v573 = vsub.s32 3, %v572
        %v574 = vrot.slane %v237, %v573
        %v575 = vlaneseq
        %v576 = vshrl.u32 %v575, 7
        %v577 = vsub.s32 5, %v576
        %v578 = vrot.slane %v237, %v577
        %v579 = vlaneseq
        %v580 = vshrl.u32 %v579, 7
        %v581 = vsub.s32 7, %v580
        %v582 = vrot.slane %v237, %v581
        %v583 = vlaneseq
        %v584 = vshrl.u32 %v583, 7
        %v585 = vsub.s32 1, %v584
        %v586 = vrot.slane %v238, %v585
        %v587 = vlaneseq
        %v588 = vshrl.u32 %v587, 7
        %v589 = vsub.s32 3, %v588
        %v590 = vrot.slane %v238, %v589
        %v609 = vlaneseq
        %v610 = vshrl.u32 %v609, 7
        %v611 = vsub.s32 1, %v610
        %v612 = vrot.slane %v522, %v611
        %v613 = vlaneseq
        %v614 = vshrl.u32 %v613, 7
        %v615 = vsub.s32 1, %v614
        %v616 = vrot.slane %v526, %v615
        %v617 = vlaneseq
        %v618 = vshrl.u32 %v617, 7
        %v619 = vsub.s32 1, %v618
        %v620 = vrot.slane %v530, %v619
        %v621 = vlaneseq
        %v622 = vshrl.u32 %v621, 7
        %v623 = vsub.s32 1, %v622
        %v624 = vrot.slane %v534, %v623
        %v625 = vlaneseq
        %v626 = vshrl.u32 %v625, 7
        %v627 = vsub.s32 1, %v626
        %v628 = vrot.slane %v538, %v627
        %v629 = vlaneseq
        %v630 = vshrl.u32 %v629, 7
        %v631 = vsub.s32 1, %v630
        %v632 = vrot.slane %v542, %v631
        %v633 = vlaneseq
        %v634 = vshrl.u32 %v633, 7
        %v635 = vsub.s32 1, %v634
        %v636 = vrot.slane %v546, %v635
        %v637 = vlaneseq
        %v638 = vshrl.u32 %v637, 7
        %v639 = vsub.s32 1, %v638
        %v640 = vrot.slane %v550, %v639
        %v641 = vlaneseq
        %v642 = vshrl.u32 %v641, 7
        %v643 = vsub.s32 1, %v642
        %v644 = vrot.slane %v554, %v643
        %v645 = vlaneseq
        %v646 = vshrl.u32 %v645, 7
        %v647 = vsub.s32 1, %v646
        %v648 = vrot.slane %v558, %v647
        %v649 = vlaneseq
        %v650 = vshrl.u32 %v649, 7
        %v651 = vsub.s32 1, %v650
        %v652 = vrot.slane %v562, %v651
        %v653 = vlaneseq
        %v654 = vshrl.u32 %v653, 7
        %v655 = vsub.s32 1, %v654
        %v656 = vrot.slane %v566, %v655
        %v657 = vlaneseq
        %v658 = vshrl.u32 %v657, 7
        %v659 = vsub.s32 1, %v658
        %v660 = vrot.slane %v570, %v659
        %v661 = vlaneseq
        %v662 = vshrl.u32 %v661, 7
        %v663 = vsub.s32 1, %v662
        %v664 = vrot.slane %v574, %v663
        %v665 = vlaneseq
        %v666 = vshrl.u32 %v665, 7
        %v667 = vsub.s32 1, %v666
        %v668 = vrot.slane %v578, %v667
        %v669 = vlaneseq
        %v670 = vshrl.u32 %v669, 7
        %v671 = vsub.s32 1, %v670
        %v672 = vrot.slane %v582, %v671
        %v673 = vlaneseq
        %v674 = vshrl.u32 %v673, 7
        %v675 = vsub.s32 1, %v674
        %v676 = vrot.slane %v586, %v675
        %v677 = vlaneseq
        %v678 = vshrl.u32 %v677, 7
        %v679 = vsub.s32 1, %v678
        %v680 = vrot.slane %v590, %v679
        %v699 = vcombine.low %v612, %v616
        %v700 = vcombine.low %v620, %v624
        %v701 = vcombine.low %v628, %v632
        %v702 = vcombine.low %v636, %v640
        %v703 = vcombine.low %v644, %v648
        %v704 = vcombine.low %v652, %v656
        %v705 = vcombine.low %v660, %v664
        %v706 = vcombine.low %v668, %v672
        %v707 = vcombine.low %v676, %v680
        %v717 = vmul.f32 %v269, %v699
        %v718 = vmul.f32 %v270, %v700
        %v719 = vmul.f32 %v271, %v701
        %v720 = vmul.f32 %v272, %v702
        %v721 = vmul.f32 %v273, %v703
        %v722 = vmul.f32 %v274, %v704
        %v723 = vmul.f32 %v275, %v705
        %v724 = vmul.f32 %v276, %v706
        %v725 = vmul.f32 %v277, %v707
        %v726 = vadd.f32 %v510, %v717
        %v727 = vadd.f32 %v511, %v718
        %v728 = vadd.f32 %v512, %v719
        %v729 = vadd.f32 %v513, %v720
        %v730 = vadd.f32 %v514, %v721
        %v731 = vadd.f32 %v515, %v722
        %v732 = vadd.f32 %v516, %v723
        %v733 = vadd.f32 %v517, %v724
        %v734 = vadd.f32 %v518, %v725
        %v735 = vmul.f32 %v279, %v483
        %v736 = vmul.f32 %v280, %v484
        %v737 = vmul.f32 %v281, %v485
        %v738 = vmul.f32 %v282, %v486
        %v739 = vmul.f32 %v283, %v487
        %v740 = vmul.f32 %v284, %v488
        %v741 = vmul.f32 %v285, %v489
        %v742 = vmul.f32 %v286, %v490
        %v743 = vmul.f32 %v287, %v491
        %v744 = vadd.f32 %v249, %v735
        %v745 = vadd.f32 %v250, %v736
        %v746 = vadd.f32 %v251, %v737
        %v747 = vadd.f32 %v252, %v738
        %v748 = vadd.f32 %v253, %v739
        %v749 = vadd.f32 %v254, %v740
        %v750 = vadd.f32 %v255, %v741
        %v751 = vadd.f32 %v256, %v742
        %v752 = vadd.f32 %v257, %v743
        %v753 = vmul.f32 %v289, %v699
        %v754 = vmul.f32 %v290, %v700
        %v755 = vmul.f32 %v291, %v701
        %v756 = vmul.f32 %v292, %v702
        %v757 = vmul.f32 %v293, %v703
        %v758 = vmul.f32 %v294, %v704
        %v759 = vmul.f32 %v295, %v705
        %v760 = vmul.f32 %v296, %v706
        %v761 = vmul.f32 %v297, %v707
        %v762 = vadd.f32 %v744, %v753
        %v763 = vadd.f32 %v745, %v754
        %v764 = vadd.f32 %v746, %v755
        %v765 = vadd.f32 %v747, %v756
        %v766 = vadd.f32 %v748, %v757
        %v767 = vadd.f32 %v749, %v758
        %v768 = vadd.f32 %v750, %v759
        %v769 = vadd.f32 %v751, %v760
        %v770 = vadd.f32 %v752, %v761
        %v771 = vlaneseq
        %v772 = vshrl.u32 %v771, 7
        %v773 = vadd.s32 %v772, 8
        %v774 = vcvt.s32.f32 %v772
        %v775 = vcvt.s32.f32 %v773
        %v776 = vld [vmem:[%s230] sm:$0xf]
        %v777 = vld [vmem:[%s230 + $0x4] sm:$0xf]
        %v778 = vld [vmem:[%s230 + $0x8] sm:$0xf]
        %v779 = vld [vmem:[%s230 + $0xc] sm:$0xf]
        %v780 = vld [vmem:[%s230 + $0x10] sm:$0xf]
        %v781 = vld [vmem:[%s230 + $0x14] sm:$0xf]
        %v782 = vld [vmem:[%s230 + $0x18] sm:$0xf]
        %v783 = vld [vmem:[%s230 + $0x1c] sm:$0xf]
        %v793 = vlaneseq
        %v794 = vshrl.u32 %v793, 7
        %v795 = vsub.s32 0, %v794
        %v796 = vrot.slane %v726, %v795
        %v797 = vlaneseq
        %v798 = vshrl.u32 %v797, 7
        %v799 = vsub.s32 4, %v798
        %v800 = vrot.slane %v726, %v799
        %v801 = vlaneseq
        %v802 = vshrl.u32 %v801, 7
        %v803 = vsub.s32 0, %v802
        %v804 = vrot.slane %v727, %v803
        %v805 = vlaneseq
        %v806 = vshrl.u32 %v805, 7
        %v807 = vsub.s32 4, %v806
        %v808 = vrot.slane %v727, %v807
        %v809 = vlaneseq
        %v810 = vshrl.u32 %v809, 7
        %v811 = vsub.s32 0, %v810
        %v812 = vrot.slane %v728, %v811
        %v813 = vlaneseq
        %v814 = vshrl.u32 %v813, 7
        %v815 = vsub.s32 4, %v814
        %v816 = vrot.slane %v728, %v815
        %v817 = vlaneseq
        %v818 = vshrl.u32 %v817, 7
        %v819 = vsub.s32 0, %v818
        %v820 = vrot.slane %v729, %v819
        %v821 = vlaneseq
        %v822 = vshrl.u32 %v821, 7
        %v823 = vsub.s32 4, %v822
        %v824 = vrot.slane %v729, %v823
        %v825 = vlaneseq
        %v826 = vshrl.u32 %v825, 7
        %v827 = vsub.s32 0, %v826
        %v828 = vrot.slane %v730, %v827
        %v829 = vlaneseq
        %v830 = vshrl.u32 %v829, 7
        %v831 = vsub.s32 4, %v830
        %v832 = vrot.slane %v730, %v831
        %v833 = vlaneseq
        %v834 = vshrl.u32 %v833, 7
        %v835 = vsub.s32 0, %v834
        %v836 = vrot.slane %v731, %v835
        %v837 = vlaneseq
        %v838 = vshrl.u32 %v837, 7
        %v839 = vsub.s32 4, %v838
        %v840 = vrot.slane %v731, %v839
        %v841 = vlaneseq
        %v842 = vshrl.u32 %v841, 7
        %v843 = vsub.s32 0, %v842
        %v844 = vrot.slane %v732, %v843
        %v845 = vlaneseq
        %v846 = vshrl.u32 %v845, 7
        %v847 = vsub.s32 4, %v846
        %v848 = vrot.slane %v732, %v847
        %v849 = vlaneseq
        %v850 = vshrl.u32 %v849, 7
        %v851 = vsub.s32 0, %v850
        %v852 = vrot.slane %v733, %v851
        %v853 = vlaneseq
        %v854 = vshrl.u32 %v853, 7
        %v855 = vsub.s32 4, %v854
        %v856 = vrot.slane %v733, %v855
        %v857 = vlaneseq
        %v858 = vshrl.u32 %v857, 7
        %v859 = vsub.s32 0, %v858
        %v860 = vrot.slane %v734, %v859
        %v861 = vlaneseq
        %v862 = vshrl.u32 %v861, 7
        %v863 = vsub.s32 4, %v862
        %v864 = vrot.slane %v734, %v863
        %v883 = vlaneseq
        %v884 = vshrl.u32 %v883, 7
        %v885 = vsub.s32 0, %v884
        %v886 = vrot.slane %v796, %v885
        %v887 = vlaneseq
        %v888 = vshrl.u32 %v887, 7
        %v889 = vsub.s32 0, %v888
        %v890 = vrot.slane %v800, %v889
        %v891 = vlaneseq
        %v892 = vshrl.u32 %v891, 7
        %v893 = vsub.s32 0, %v892
        %v894 = vrot.slane %v804, %v893
        %v895 = vlaneseq
        %v896 = vshrl.u32 %v895, 7
        %v897 = vsub.s32 0, %v896
        %v898 = vrot.slane %v808, %v897
        %v899 = vlaneseq
        %v900 = vshrl.u32 %v899, 7
        %v901 = vsub.s32 0, %v900
        %v902 = vrot.slane %v812, %v901
        %v903 = vlaneseq
        %v904 = vshrl.u32 %v903, 7
        %v905 = vsub.s32 0, %v904
        %v906 = vrot.slane %v816, %v905
        %v907 = vlaneseq
        %v908 = vshrl.u32 %v907, 7
        %v909 = vsub.s32 0, %v908
        %v910 = vrot.slane %v820, %v909
        %v911 = vlaneseq
        %v912 = vshrl.u32 %v911, 7
        %v913 = vsub.s32 0, %v912
        %v914 = vrot.slane %v824, %v913
        %v915 = vlaneseq
        %v916 = vshrl.u32 %v915, 7
        %v917 = vsub.s32 0, %v916
        %v918 = vrot.slane %v828, %v917
        %v919 = vlaneseq
        %v920 = vshrl.u32 %v919, 7
        %v921 = vsub.s32 0, %v920
        %v922 = vrot.slane %v832, %v921
        %v923 = vlaneseq
        %v924 = vshrl.u32 %v923, 7
        %v925 = vsub.s32 0, %v924
        %v926 = vrot.slane %v836, %v925
        %v927 = vlaneseq
        %v928 = vshrl.u32 %v927, 7
        %v929 = vsub.s32 0, %v928
        %v930 = vrot.slane %v840, %v929
        %v931 = vlaneseq
        %v932 = vshrl.u32 %v931, 7
        %v933 = vsub.s32 0, %v932
        %v934 = vrot.slane %v844, %v933
        %v935 = vlaneseq
        %v936 = vshrl.u32 %v935, 7
        %v937 = vsub.s32 0, %v936
        %v938 = vrot.slane %v848, %v937
        %v939 = vlaneseq
        %v940 = vshrl.u32 %v939, 7
        %v941 = vsub.s32 0, %v940
        %v942 = vrot.slane %v852, %v941
        %v943 = vlaneseq
        %v944 = vshrl.u32 %v943, 7
        %v945 = vsub.s32 0, %v944
        %v946 = vrot.slane %v856, %v945
        %v947 = vlaneseq
        %v948 = vshrl.u32 %v947, 7
        %v949 = vsub.s32 0, %v948
        %v950 = vrot.slane %v860, %v949
        %v951 = vlaneseq
        %v952 = vshrl.u32 %v951, 7
        %v953 = vsub.s32 0, %v952
        %v954 = vrot.slane %v864, %v953
        %v955 = vsub.f32 %v886, %v774
        %v956 = vsub.f32 %v890, %v774
        %v957 = vsub.f32 %v894, %v774
        %v958 = vsub.f32 %v898, %v774
        %v959 = vsub.f32 %v902, %v774
        %v960 = vsub.f32 %v906, %v774
        %v961 = vsub.f32 %v910, %v774
        %v962 = vsub.f32 %v914, %v774
        %v963 = vsub.f32 %v918, %v774
        %v964 = vsub.f32 %v922, %v774
        %v965 = vsub.f32 %v926, %v774
        %v966 = vsub.f32 %v930, %v774
        %v967 = vsub.f32 %v934, %v774
        %v968 = vsub.f32 %v938, %v774
        %v969 = vsub.f32 %v942, %v774
        %v970 = vsub.f32 %v946, %v774
        %v971 = vsub.f32 %v950, %v774
        %v972 = vsub.f32 %v954, %v774
        %v973 = vsub.f32 %v886, %v775
        %v974 = vsub.f32 %v890, %v775
        %v975 = vsub.f32 %v894, %v775
        %v976 = vsub.f32 %v898, %v775
        %v977 = vsub.f32 %v902, %v775
        %v978 = vsub.f32 %v906, %v775
        %v979 = vsub.f32 %v910, %v775
        %v980 = vsub.f32 %v914, %v775
        %v981 = vsub.f32 %v918, %v775
        %v982 = vsub.f32 %v922, %v775
        %v983 = vsub.f32 %v926, %v775
        %v984 = vsub.f32 %v930, %v775
        %v985 = vsub.f32 %v934, %v775
        %v986 = vsub.f32 %v938, %v775
        %v987 = vsub.f32 %v942, %v775
        %v988 = vsub.f32 %v946, %v775
        %v989 = vsub.f32 %v950, %v775
        %v990 = vsub.f32 %v954, %v775
        %v991 = vand.u32 2147483647, %v955
        %v992 = vand.u32 2147483647, %v956
        %v993 = vand.u32 2147483647, %v957
        %v994 = vand.u32 2147483647, %v958
        %v995 = vand.u32 2147483647, %v959
        %v996 = vand.u32 2147483647, %v960
        %v997 = vand.u32 2147483647, %v961
        %v998 = vand.u32 2147483647, %v962
        %v999 = vand.u32 2147483647, %v963
        %v1000 = vand.u32 2147483647, %v964
        %v1001 = vand.u32 2147483647, %v965
        %v1002 = vand.u32 2147483647, %v966
        %v1003 = vand.u32 2147483647, %v967
        %v1004 = vand.u32 2147483647, %v968
        %v1005 = vand.u32 2147483647, %v969
        %v1006 = vand.u32 2147483647, %v970
        %v1007 = vand.u32 2147483647, %v971
        %v1008 = vand.u32 2147483647, %v972
        %v1009 = vand.u32 2147483647, %v973
        %v1010 = vand.u32 2147483647, %v974
        %v1011 = vand.u32 2147483647, %v975
        %v1012 = vand.u32 2147483647, %v976
        %v1013 = vand.u32 2147483647, %v977
        %v1014 = vand.u32 2147483647, %v978
        %v1015 = vand.u32 2147483647, %v979
        %v1016 = vand.u32 2147483647, %v980
        %v1017 = vand.u32 2147483647, %v981
        %v1018 = vand.u32 2147483647, %v982
        %v1019 = vand.u32 2147483647, %v983
        %v1020 = vand.u32 2147483647, %v984
        %v1021 = vand.u32 2147483647, %v985
        %v1022 = vand.u32 2147483647, %v986
        %v1023 = vand.u32 2147483647, %v987
        %v1024 = vand.u32 2147483647, %v988
        %v1025 = vand.u32 2147483647, %v989
        %v1026 = vand.u32 2147483647, %v990
        %v1027 = vsub.f32 1.0, %v991
        %v1028 = vsub.f32 1.0, %v992
        %v1029 = vsub.f32 1.0, %v993
        %v1030 = vsub.f32 1.0, %v994
        %v1031 = vsub.f32 1.0, %v995
        %v1032 = vsub.f32 1.0, %v996
        %v1033 = vsub.f32 1.0, %v997
        %v1034 = vsub.f32 1.0, %v998
        %v1035 = vsub.f32 1.0, %v999
        %v1036 = vsub.f32 1.0, %v1000
        %v1037 = vsub.f32 1.0, %v1001
        %v1038 = vsub.f32 1.0, %v1002
        %v1039 = vsub.f32 1.0, %v1003
        %v1040 = vsub.f32 1.0, %v1004
        %v1041 = vsub.f32 1.0, %v1005
        %v1042 = vsub.f32 1.0, %v1006
        %v1043 = vsub.f32 1.0, %v1007
        %v1044 = vsub.f32 1.0, %v1008
        %v1045 = vsub.f32 1.0, %v1009
        %v1046 = vsub.f32 1.0, %v1010
        %v1047 = vsub.f32 1.0, %v1011
        %v1048 = vsub.f32 1.0, %v1012
        %v1049 = vsub.f32 1.0, %v1013
        %v1050 = vsub.f32 1.0, %v1014
        %v1051 = vsub.f32 1.0, %v1015
        %v1052 = vsub.f32 1.0, %v1016
        %v1053 = vsub.f32 1.0, %v1017
        %v1054 = vsub.f32 1.0, %v1018
        %v1055 = vsub.f32 1.0, %v1019
        %v1056 = vsub.f32 1.0, %v1020
        %v1057 = vsub.f32 1.0, %v1021
        %v1058 = vsub.f32 1.0, %v1022
        %v1059 = vsub.f32 1.0, %v1023
        %v1060 = vsub.f32 1.0, %v1024
        %v1061 = vsub.f32 1.0, %v1025
        %v1062 = vsub.f32 1.0, %v1026
        %v1063 = vmax.f32 %v1027, 0.0
        %v1064 = vmax.f32 %v1028, 0.0
        %v1065 = vmax.f32 %v1029, 0.0
        %v1066 = vmax.f32 %v1030, 0.0
        %v1067 = vmax.f32 %v1031, 0.0
        %v1068 = vmax.f32 %v1032, 0.0
        %v1069 = vmax.f32 %v1033, 0.0
        %v1070 = vmax.f32 %v1034, 0.0
        %v1071 = vmax.f32 %v1035, 0.0
        %v1072 = vmax.f32 %v1036, 0.0
        %v1073 = vmax.f32 %v1037, 0.0
        %v1074 = vmax.f32 %v1038, 0.0
        %v1075 = vmax.f32 %v1039, 0.0
        %v1076 = vmax.f32 %v1040, 0.0
        %v1077 = vmax.f32 %v1041, 0.0
        %v1078 = vmax.f32 %v1042, 0.0
        %v1079 = vmax.f32 %v1043, 0.0
        %v1080 = vmax.f32 %v1044, 0.0
        %v1081 = vmax.f32 %v1045, 0.0
        %v1082 = vmax.f32 %v1046, 0.0
        %v1083 = vmax.f32 %v1047, 0.0
        %v1084 = vmax.f32 %v1048, 0.0
        %v1085 = vmax.f32 %v1049, 0.0
        %v1086 = vmax.f32 %v1050, 0.0
        %v1087 = vmax.f32 %v1051, 0.0
        %v1088 = vmax.f32 %v1052, 0.0
        %v1089 = vmax.f32 %v1053, 0.0
        %v1090 = vmax.f32 %v1054, 0.0
        %v1091 = vmax.f32 %v1055, 0.0
        %v1092 = vmax.f32 %v1056, 0.0
        %v1093 = vmax.f32 %v1057, 0.0
        %v1094 = vmax.f32 %v1058, 0.0
        %v1095 = vmax.f32 %v1059, 0.0
        %v1096 = vmax.f32 %v1060, 0.0
        %v1097 = vmax.f32 %v1061, 0.0
        %v1098 = vmax.f32 %v1062, 0.0
        %v1108 = vlaneseq
        %v1109 = vshrl.u32 %v1108, 7
        %v1110 = vsub.s32 0, %v1109
        %v1111 = vrot.slane %v762, %v1110
        %v1112 = vlaneseq
        %v1113 = vshrl.u32 %v1112, 7
        %v1114 = vsub.s32 4, %v1113
        %v1115 = vrot.slane %v762, %v1114
        %v1116 = vlaneseq
        %v1117 = vshrl.u32 %v1116, 7
        %v1118 = vsub.s32 0, %v1117
        %v1119 = vrot.slane %v763, %v1118
        %v1120 = vlaneseq
        %v1121 = vshrl.u32 %v1120, 7
        %v1122 = vsub.s32 4, %v1121
        %v1123 = vrot.slane %v763, %v1122
        %v1124 = vlaneseq
        %v1125 = vshrl.u32 %v1124, 7
        %v1126 = vsub.s32 0, %v1125
        %v1127 = vrot.slane %v764, %v1126
        %v1128 = vlaneseq
        %v1129 = vshrl.u32 %v1128, 7
        %v1130 = vsub.s32 4, %v1129
        %v1131 = vrot.slane %v764, %v1130
        %v1132 = vlaneseq
        %v1133 = vshrl.u32 %v1132, 7
        %v1134 = vsub.s32 0, %v1133
        %v1135 = vrot.slane %v765, %v1134
        %v1136 = vlaneseq
        %v1137 = vshrl.u32 %v1136, 7
        %v1138 = vsub.s32 4, %v1137
        %v1139 = vrot.slane %v765, %v1138
        %v1140 = vlaneseq
        %v1141 = vshrl.u32 %v1140, 7
        %v1142 = vsub.s32 0, %v1141
        %v1143 = vrot.slane %v766, %v1142
        %v1144 = vlaneseq
        %v1145 = vshrl.u32 %v1144, 7
        %v1146 = vsub.s32 4, %v1145
        %v1147 = vrot.slane %v766, %v1146
        %v1148 = vlaneseq
        %v1149 = vshrl.u32 %v1148, 7
        %v1150 = vsub.s32 0, %v1149
        %v1151 = vrot.slane %v767, %v1150
        %v1152 = vlaneseq
        %v1153 = vshrl.u32 %v1152, 7
        %v1154 = vsub.s32 4, %v1153
        %v1155 = vrot.slane %v767, %v1154
        %v1156 = vlaneseq
        %v1157 = vshrl.u32 %v1156, 7
        %v1158 = vsub.s32 0, %v1157
        %v1159 = vrot.slane %v768, %v1158
        %v1160 = vlaneseq
        %v1161 = vshrl.u32 %v1160, 7
        %v1162 = vsub.s32 4, %v1161
        %v1163 = vrot.slane %v768, %v1162
        %v1164 = vlaneseq
        %v1165 = vshrl.u32 %v1164, 7
        %v1166 = vsub.s32 0, %v1165
        %v1167 = vrot.slane %v769, %v1166
        %v1168 = vlaneseq
        %v1169 = vshrl.u32 %v1168, 7
        %v1170 = vsub.s32 4, %v1169
        %v1171 = vrot.slane %v769, %v1170
        %v1172 = vlaneseq
        %v1173 = vshrl.u32 %v1172, 7
        %v1174 = vsub.s32 0, %v1173
        %v1175 = vrot.slane %v770, %v1174
        %v1176 = vlaneseq
        %v1177 = vshrl.u32 %v1176, 7
        %v1178 = vsub.s32 4, %v1177
        %v1179 = vrot.slane %v770, %v1178
        %v1198 = vlaneseq
        %v1199 = vshrl.u32 %v1198, 7
        %v1200 = vsub.s32 0, %v1199
        %v1201 = vrot.slane %v1111, %v1200
        %v1202 = vlaneseq
        %v1203 = vshrl.u32 %v1202, 7
        %v1204 = vsub.s32 0, %v1203
        %v1205 = vrot.slane %v1115, %v1204
        %v1206 = vlaneseq
        %v1207 = vshrl.u32 %v1206, 7
        %v1208 = vsub.s32 0, %v1207
        %v1209 = vrot.slane %v1119, %v1208
        %v1210 = vlaneseq
        %v1211 = vshrl.u32 %v1210, 7
        %v1212 = vsub.s32 0, %v1211
        %v1213 = vrot.slane %v1123, %v1212
        %v1214 = vlaneseq
        %v1215 = vshrl.u32 %v1214, 7
        %v1216 = vsub.s32 0, %v1215
        %v1217 = vrot.slane %v1127, %v1216
        %v1218 = vlaneseq
        %v1219 = vshrl.u32 %v1218, 7
        %v1220 = vsub.s32 0, %v1219
        %v1221 = vrot.slane %v1131, %v1220
        %v1222 = vlaneseq
        %v1223 = vshrl.u32 %v1222, 7
        %v1224 = vsub.s32 0, %v1223
        %v1225 = vrot.slane %v1135, %v1224
        %v1226 = vlaneseq
        %v1227 = vshrl.u32 %v1226, 7
        %v1228 = vsub.s32 0, %v1227
        %v1229 = vrot.slane %v1139, %v1228
        %v1230 = vlaneseq
        %v1231 = vshrl.u32 %v1230, 7
        %v1232 = vsub.s32 0, %v1231
        %v1233 = vrot.slane %v1143, %v1232
        %v1234 = vlaneseq
        %v1235 = vshrl.u32 %v1234, 7
        %v1236 = vsub.s32 0, %v1235
        %v1237 = vrot.slane %v1147, %v1236
        %v1238 = vlaneseq
        %v1239 = vshrl.u32 %v1238, 7
        %v1240 = vsub.s32 0, %v1239
        %v1241 = vrot.slane %v1151, %v1240
        %v1242 = vlaneseq
        %v1243 = vshrl.u32 %v1242, 7
        %v1244 = vsub.s32 0, %v1243
        %v1245 = vrot.slane %v1155, %v1244
        %v1246 = vlaneseq
        %v1247 = vshrl.u32 %v1246, 7
        %v1248 = vsub.s32 0, %v1247
        %v1249 = vrot.slane %v1159, %v1248
        %v1250 = vlaneseq
        %v1251 = vshrl.u32 %v1250, 7
        %v1252 = vsub.s32 0, %v1251
        %v1253 = vrot.slane %v1163, %v1252
        %v1254 = vlaneseq
        %v1255 = vshrl.u32 %v1254, 7
        %v1256 = vsub.s32 0, %v1255
        %v1257 = vrot.slane %v1167, %v1256
        %v1258 = vlaneseq
        %v1259 = vshrl.u32 %v1258, 7
        %v1260 = vsub.s32 0, %v1259
        %v1261 = vrot.slane %v1171, %v1260
        %v1262 = vlaneseq
        %v1263 = vshrl.u32 %v1262, 7
        %v1264 = vsub.s32 0, %v1263
        %v1265 = vrot.slane %v1175, %v1264
        %v1266 = vlaneseq
        %v1267 = vshrl.u32 %v1266, 7
        %v1268 = vsub.s32 0, %v1267
        %v1269 = vrot.slane %v1179, %v1268
        %v1270 = vsub.f32 %v1201, %v774
        %v1271 = vsub.f32 %v1205, %v774
        %v1272 = vsub.f32 %v1209, %v774
        %v1273 = vsub.f32 %v1213, %v774
        %v1274 = vsub.f32 %v1217, %v774
        %v1275 = vsub.f32 %v1221, %v774
        %v1276 = vsub.f32 %v1225, %v774
        %v1277 = vsub.f32 %v1229, %v774
        %v1278 = vsub.f32 %v1233, %v774
        %v1279 = vsub.f32 %v1237, %v774
        %v1280 = vsub.f32 %v1241, %v774
        %v1281 = vsub.f32 %v1245, %v774
        %v1282 = vsub.f32 %v1249, %v774
        %v1283 = vsub.f32 %v1253, %v774
        %v1284 = vsub.f32 %v1257, %v774
        %v1285 = vsub.f32 %v1261, %v774
        %v1286 = vsub.f32 %v1265, %v774
        %v1287 = vsub.f32 %v1269, %v774
        %v1288 = vsub.f32 %v1201, %v775
        %v1289 = vsub.f32 %v1205, %v775
        %v1290 = vsub.f32 %v1209, %v775
        %v1291 = vsub.f32 %v1213, %v775
        %v1292 = vsub.f32 %v1217, %v775
        %v1293 = vsub.f32 %v1221, %v775
        %v1294 = vsub.f32 %v1225, %v775
        %v1295 = vsub.f32 %v1229, %v775
        %v1296 = vsub.f32 %v1233, %v775
        %v1297 = vsub.f32 %v1237, %v775
        %v1298 = vsub.f32 %v1241, %v775
        %v1299 = vsub.f32 %v1245, %v775
        %v1300 = vsub.f32 %v1249, %v775
        %v1301 = vsub.f32 %v1253, %v775
        %v1302 = vsub.f32 %v1257, %v775
        %v1303 = vsub.f32 %v1261, %v775
        %v1304 = vsub.f32 %v1265, %v775
        %v1305 = vsub.f32 %v1269, %v775
        %v1306 = vand.u32 2147483647, %v1270
        %v1307 = vand.u32 2147483647, %v1271
        %v1308 = vand.u32 2147483647, %v1272
        %v1309 = vand.u32 2147483647, %v1273
        %v1310 = vand.u32 2147483647, %v1274
        %v1311 = vand.u32 2147483647, %v1275
        %v1312 = vand.u32 2147483647, %v1276
        %v1313 = vand.u32 2147483647, %v1277
        %v1314 = vand.u32 2147483647, %v1278
        %v1315 = vand.u32 2147483647, %v1279
        %v1316 = vand.u32 2147483647, %v1280
        %v1317 = vand.u32 2147483647, %v1281
        %v1318 = vand.u32 2147483647, %v1282
        %v1319 = vand.u32 2147483647, %v1283
        %v1320 = vand.u32 2147483647, %v1284
        %v1321 = vand.u32 2147483647, %v1285
        %v1322 = vand.u32 2147483647, %v1286
        %v1323 = vand.u32 2147483647, %v1287
        %v1324 = vand.u32 2147483647, %v1288
        %v1325 = vand.u32 2147483647, %v1289
        %v1326 = vand.u32 2147483647, %v1290
        %v1327 = vand.u32 2147483647, %v1291
        %v1328 = vand.u32 2147483647, %v1292
        %v1329 = vand.u32 2147483647, %v1293
        %v1330 = vand.u32 2147483647, %v1294
        %v1331 = vand.u32 2147483647, %v1295
        %v1332 = vand.u32 2147483647, %v1296
        %v1333 = vand.u32 2147483647, %v1297
        %v1334 = vand.u32 2147483647, %v1298
        %v1335 = vand.u32 2147483647, %v1299
        %v1336 = vand.u32 2147483647, %v1300
        %v1337 = vand.u32 2147483647, %v1301
        %v1338 = vand.u32 2147483647, %v1302
        %v1339 = vand.u32 2147483647, %v1303
        %v1340 = vand.u32 2147483647, %v1304
        %v1341 = vand.u32 2147483647, %v1305
        %v1342 = vsub.f32 1.0, %v1306
        %v1343 = vsub.f32 1.0, %v1307
        %v1344 = vsub.f32 1.0, %v1308
        %v1345 = vsub.f32 1.0, %v1309
        %v1346 = vsub.f32 1.0, %v1310
        %v1347 = vsub.f32 1.0, %v1311
        %v1348 = vsub.f32 1.0, %v1312
        %v1349 = vsub.f32 1.0, %v1313
        %v1350 = vsub.f32 1.0, %v1314
        %v1351 = vsub.f32 1.0, %v1315
        %v1352 = vsub.f32 1.0, %v1316
        %v1353 = vsub.f32 1.0, %v1317
        %v1354 = vsub.f32 1.0, %v1318
        %v1355 = vsub.f32 1.0, %v1319
        %v1356 = vsub.f32 1.0, %v1320
        %v1357 = vsub.f32 1.0, %v1321
        %v1358 = vsub.f32 1.0, %v1322
        %v1359 = vsub.f32 1.0, %v1323
        %v1360 = vsub.f32 1.0, %v1324
        %v1361 = vsub.f32 1.0, %v1325
        %v1362 = vsub.f32 1.0, %v1326
        %v1363 = vsub.f32 1.0, %v1327
        %v1364 = vsub.f32 1.0, %v1328
        %v1365 = vsub.f32 1.0, %v1329
        %v1366 = vsub.f32 1.0, %v1330
        %v1367 = vsub.f32 1.0, %v1331
        %v1368 = vsub.f32 1.0, %v1332
        %v1369 = vsub.f32 1.0, %v1333
        %v1370 = vsub.f32 1.0, %v1334
        %v1371 = vsub.f32 1.0, %v1335
        %v1372 = vsub.f32 1.0, %v1336
        %v1373 = vsub.f32 1.0, %v1337
        %v1374 = vsub.f32 1.0, %v1338
        %v1375 = vsub.f32 1.0, %v1339
        %v1376 = vsub.f32 1.0, %v1340
        %v1377 = vsub.f32 1.0, %v1341
        %v1378 = vmax.f32 %v1342, 0.0
        %v1379 = vmax.f32 %v1343, 0.0
        %v1380 = vmax.f32 %v1344, 0.0
        %v1381 = vmax.f32 %v1345, 0.0
        %v1382 = vmax.f32 %v1346, 0.0
        %v1383 = vmax.f32 %v1347, 0.0
        %v1384 = vmax.f32 %v1348, 0.0
        %v1385 = vmax.f32 %v1349, 0.0
        %v1386 = vmax.f32 %v1350, 0.0
        %v1387 = vmax.f32 %v1351, 0.0
        %v1388 = vmax.f32 %v1352, 0.0
        %v1389 = vmax.f32 %v1353, 0.0
        %v1390 = vmax.f32 %v1354, 0.0
        %v1391 = vmax.f32 %v1355, 0.0
        %v1392 = vmax.f32 %v1356, 0.0
        %v1393 = vmax.f32 %v1357, 0.0
        %v1394 = vmax.f32 %v1358, 0.0
        %v1395 = vmax.f32 %v1359, 0.0
        %v1396 = vmax.f32 %v1360, 0.0
        %v1397 = vmax.f32 %v1361, 0.0
        %v1398 = vmax.f32 %v1362, 0.0
        %v1399 = vmax.f32 %v1363, 0.0
        %v1400 = vmax.f32 %v1364, 0.0
        %v1401 = vmax.f32 %v1365, 0.0
        %v1402 = vmax.f32 %v1366, 0.0
        %v1403 = vmax.f32 %v1367, 0.0
        %v1404 = vmax.f32 %v1368, 0.0
        %v1405 = vmax.f32 %v1369, 0.0
        %v1406 = vmax.f32 %v1370, 0.0
        %v1407 = vmax.f32 %v1371, 0.0
        %v1408 = vmax.f32 %v1372, 0.0
        %v1409 = vmax.f32 %v1373, 0.0
        %v1410 = vmax.f32 %v1374, 0.0
        %v1411 = vmax.f32 %v1375, 0.0
        %v1412 = vmax.f32 %v1376, 0.0
        %v1413 = vmax.f32 %v1377, 0.0
        %v1414 = vpack.c.bf16 %v1396, %v1378
        %v1415 = vpack.c.bf16 %v1397, %v1379
        %v1416 = vpack.c.bf16 %v1398, %v1380
        %v1417 = vpack.c.bf16 %v1399, %v1381
        %v1418 = vpack.c.bf16 %v1400, %v1382
        %v1419 = vpack.c.bf16 %v1401, %v1383
        %v1420 = vpack.c.bf16 %v1402, %v1384
        %v1421 = vpack.c.bf16 %v1403, %v1385
        %v1422 = vpack.c.bf16 %v1404, %v1386
        %v1423 = vpack.c.bf16 %v1405, %v1387
        %v1424 = vpack.c.bf16 %v1406, %v1388
        %v1425 = vpack.c.bf16 %v1407, %v1389
        %v1426 = vpack.c.bf16 %v1408, %v1390
        %v1427 = vpack.c.bf16 %v1409, %v1391
        %v1428 = vpack.c.bf16 %v1410, %v1392
        %v1429 = vpack.c.bf16 %v1411, %v1393
        %v1430 = vpack.c.bf16 %v1412, %v1394
        %v1431 = vpack.c.bf16 %v1413, %v1395
        %v1434 = vunpack.c.l.b16 %v776
        %v1435 = vunpack.c.l.b16 %v777
        %v1436 = vpack.c.b16 %v1435, %v1434
        %vm1437 = vcmask 130048
        %v1439 = vsel %vm1437, %v1436, 0
        %1441 = vmatprep.subr.bf16.mxu0 0
        %1442 = vmatpush1.bf16.msra.mxu0 0
        %1443 = vmatprep.subr.bf16.mxu0 0
        %1444 = vmatpush1.bf16.msra.mxu0 0
        %1445 = vmatprep.subr.bf16.mxu0 0
        %1446 = vmatpush1.bf16.msra.mxu0 0
        %1447 = vmatprep.subr.bf16.mxu0 0
        %1448 = vmatpush1.bf16.msra.mxu0 0
        %1449 = vmatprep.subr.bf16.mxu0 0
        %1450 = vmatpush1.bf16.msra.mxu0 0
        %1451 = vmatprep.subr.bf16.mxu0 0
        %1452 = vmatpush1.bf16.msra.mxu0 0
        %1453 = vmatprep.subr.bf16.mxu0 0
        %1454 = vmatpush1.bf16.msra.mxu0 0
        %1455 = vmatprep.subr.bf16.mxu0 %v1415
        %1456 = vmatpush1.bf16.msra.mxu0 %v1414
        %1457 = vmatprep.subr.bf16.mxu0 0
        %1458 = vmatpush2.bf16.msra.mxu0 0
        %1459 = vmatprep.subr.bf16.mxu0 0
        %1460 = vmatpush2.bf16.msra.mxu0 0
        %1461 = vmatprep.subr.bf16.mxu0 0
        %1462 = vmatpush2.bf16.msra.mxu0 0
        %1463 = vmatprep.subr.bf16.mxu0 0
        %1464 = vmatpush2.bf16.msra.mxu0 0
        %1465 = vmatprep.subr.bf16.mxu0 0
        %1466 = vmatpush2.bf16.msra.mxu0 0
        %1467 = vmatprep.subr.bf16.mxu0 0
        %1468 = vmatpush2.bf16.msra.mxu0 0
        %1469 = vmatprep.subr.bf16.mxu0 0
        %1470 = vmatpush2.bf16.msra.mxu0 0
        %1471 = vmatprep.subr.bf16.mxu0 0
        %1472 = vmatpush2.bf16.msra.mxu0 0
        %1473 = vmatprep.mubr.bf16.mxu0 0
        %1474 = vmatmul.mubr.bf16.gmra.mxu0 %v1439
        %v1475 = vpop.f32.mrf.mxu0
        %v1476 = vadd.f32 0.0, %v1475
        %v1477 = vpop.f32.mrf.mxu0
        %v1478 = vadd.f32 0.0, %v1477
        %v1479 = vpop.f32.mrf.mxu0
        %v1480 = vadd.f32 0.0, %v1479
        %v1481 = vpop.f32.mrf.mxu0
        %v1482 = vadd.f32 0.0, %v1481
        %1483 = vdwg.mxu0
        %1484 = vmatprep.subr.bf16.mxu0 0
        %1485 = vmatpush1.bf16.msra.mxu0 0
        %1486 = vmatprep.subr.bf16.mxu0 0
        %1487 = vmatpush1.bf16.msra.mxu0 0
        %1488 = vmatprep.subr.bf16.mxu0 0
        %1489 = vmatpush1.bf16.msra.mxu0 0
        %1490 = vmatprep.subr.bf16.mxu0 0
        %1491 = vmatpush1.bf16.msra.mxu0 0
        %1492 = vmatprep.subr.bf16.mxu0 0
        %1493 = vmatpush1.bf16.msra.mxu0 0
        %1494 = vmatprep.subr.bf16.mxu0 0
        %1495 = vmatpush1.bf16.msra.mxu0 0
        %1496 = vmatprep.subr.bf16.mxu0 0
        %1497 = vmatpush1.bf16.msra.mxu0 0
        %1498 = vmatprep.subr.bf16.mxu0 %v1417
        %1499 = vmatpush1.bf16.msra.mxu0 %v1416
        %1500 = vmatprep.subr.bf16.mxu0 0
        %1501 = vmatpush2.bf16.msra.mxu0 0
        %1502 = vmatprep.subr.bf16.mxu0 0
        %1503 = vmatpush2.bf16.msra.mxu0 0
        %1504 = vmatprep.subr.bf16.mxu0 0
        %1505 = vmatpush2.bf16.msra.mxu0 0
        %1506 = vmatprep.subr.bf16.mxu0 0
        %1507 = vmatpush2.bf16.msra.mxu0 0
        %1508 = vmatprep.subr.bf16.mxu0 0
        %1509 = vmatpush2.bf16.msra.mxu0 0
        %1510 = vmatprep.subr.bf16.mxu0 0
        %1511 = vmatpush2.bf16.msra.mxu0 0
        %1512 = vmatprep.subr.bf16.mxu0 0
        %1513 = vmatpush2.bf16.msra.mxu0 0
        %1514 = vmatprep.subr.bf16.mxu0 0
        %1515 = vmatpush2.bf16.msra.mxu0 0
        %1516 = vmatprep.mubr.bf16.mxu0 0
        %1517 = vmatmul.mubr.bf16.gmra.mxu0 %v1439
        %v1518 = vpop.f32.mrf.mxu0
        %v1519 = vadd.f32 0.0, %v1518
        %v1520 = vpop.f32.mrf.mxu0
        %v1521 = vadd.f32 0.0, %v1520
        %v1522 = vpop.f32.mrf.mxu0
        %v1523 = vadd.f32 0.0, %v1522
        %v1524 = vpop.f32.mrf.mxu0
        %v1525 = vadd.f32 0.0, %v1524
        %1526 = vdwg.mxu0
        %1527 = vmatprep.subr.bf16.mxu0 0
        %1528 = vmatpush1.bf16.msra.mxu0 0
        %1529 = vmatprep.subr.bf16.mxu0 0
        %1530 = vmatpush1.bf16.msra.mxu0 0
        %1531 = vmatprep.subr.bf16.mxu0 0
        %1532 = vmatpush1.bf16.msra.mxu0 0
        %1533 = vmatprep.subr.bf16.mxu0 0
        %1534 = vmatpush1.bf16.msra.mxu0 0
        %1535 = vmatprep.subr.bf16.mxu0 0
        %1536 = vmatpush1.bf16.msra.mxu0 0
        %1537 = vmatprep.subr.bf16.mxu0 0
        %1538 = vmatpush1.bf16.msra.mxu0 0
        %1539 = vmatprep.subr.bf16.mxu0 0
        %1540 = vmatpush1.bf16.msra.mxu0 0
        %1541 = vmatprep.subr.bf16.mxu0 %v1419
        %1542 = vmatpush1.bf16.msra.mxu0 %v1418
        %1543 = vmatprep.subr.bf16.mxu0 0
        %1544 = vmatpush2.bf16.msra.mxu0 0
        %1545 = vmatprep.subr.bf16.mxu0 0
        %1546 = vmatpush2.bf16.msra.mxu0 0
        %1547 = vmatprep.subr.bf16.mxu0 0
        %1548 = vmatpush2.bf16.msra.mxu0 0
        %1549 = vmatprep.subr.bf16.mxu0 0
        %1550 = vmatpush2.bf16.msra.mxu0 0
        %1551 = vmatprep.subr.bf16.mxu0 0
        %1552 = vmatpush2.bf16.msra.mxu0 0
        %1553 = vmatprep.subr.bf16.mxu0 0
        %1554 = vmatpush2.bf16.msra.mxu0 0
        %1555 = vmatprep.subr.bf16.mxu0 0
        %1556 = vmatpush2.bf16.msra.mxu0 0
        %1557 = vmatprep.subr.bf16.mxu0 0
        %1558 = vmatpush2.bf16.msra.mxu0 0
        %1559 = vmatprep.mubr.bf16.mxu0 0
        %1560 = vmatmul.mubr.bf16.gmra.mxu0 %v1439
        %v1561 = vpop.f32.mrf.mxu0
        %v1562 = vadd.f32 0.0, %v1561
        %v1563 = vpop.f32.mrf.mxu0
        %v1564 = vadd.f32 0.0, %v1563
        %v1565 = vpop.f32.mrf.mxu0
        %v1566 = vadd.f32 0.0, %v1565
        %v1567 = vpop.f32.mrf.mxu0
        %v1568 = vadd.f32 0.0, %v1567
        %1569 = vdwg.mxu0
        %1570 = vmatprep.subr.bf16.mxu0 0
        %1571 = vmatpush1.bf16.msra.mxu0 0
        %1572 = vmatprep.subr.bf16.mxu0 0
        %1573 = vmatpush1.bf16.msra.mxu0 0
        %1574 = vmatprep.subr.bf16.mxu0 0
        %1575 = vmatpush1.bf16.msra.mxu0 0
        %1576 = vmatprep.subr.bf16.mxu0 0
        %1577 = vmatpush1.bf16.msra.mxu0 0
        %1578 = vmatprep.subr.bf16.mxu0 0
        %1579 = vmatpush1.bf16.msra.mxu0 0
        %1580 = vmatprep.subr.bf16.mxu0 0
        %1581 = vmatpush1.bf16.msra.mxu0 0
        %1582 = vmatprep.subr.bf16.mxu0 0
        %1583 = vmatpush1.bf16.msra.mxu0 0
        %1584 = vmatprep.subr.bf16.mxu0 %v1421
        %1585 = vmatpush1.bf16.msra.mxu0 %v1420
        %1586 = vmatprep.subr.bf16.mxu0 0
        %1587 = vmatpush2.bf16.msra.mxu0 0
        %1588 = vmatprep.subr.bf16.mxu0 0
        %1589 = vmatpush2.bf16.msra.mxu0 0
        %1590 = vmatprep.subr.bf16.mxu0 0
        %1591 = vmatpush2.bf16.msra.mxu0 0
        %1592 = vmatprep.subr.bf16.mxu0 0
        %1593 = vmatpush2.bf16.msra.mxu0 0
        %1594 = vmatprep.subr.bf16.mxu0 0
        %1595 = vmatpush2.bf16.msra.mxu0 0
        %1596 = vmatprep.subr.bf16.mxu0 0
        %1597 = vmatpush2.bf16.msra.mxu0 0
        %1598 = vmatprep.subr.bf16.mxu0 0
        %1599 = vmatpush2.bf16.msra.mxu0 0
        %1600 = vmatprep.subr.bf16.mxu0 0
        %1601 = vmatpush2.bf16.msra.mxu0 0
        %1602 = vmatprep.mubr.bf16.mxu0 0
        %1603 = vmatmul.mubr.bf16.gmra.mxu0 %v1439
        %v1604 = vpop.f32.mrf.mxu0
        %v1605 = vadd.f32 0.0, %v1604
        %v1606 = vpop.f32.mrf.mxu0
        %v1607 = vadd.f32 0.0, %v1606
        %v1608 = vpop.f32.mrf.mxu0
        %v1609 = vadd.f32 0.0, %v1608
        %v1610 = vpop.f32.mrf.mxu0
        %v1611 = vadd.f32 0.0, %v1610
        %1612 = vdwg.mxu0
        %1613 = vmatprep.subr.bf16.mxu0 0
        %1614 = vmatpush1.bf16.msra.mxu0 0
        %1615 = vmatprep.subr.bf16.mxu0 0
        %1616 = vmatpush1.bf16.msra.mxu0 0
        %1617 = vmatprep.subr.bf16.mxu0 0
        %1618 = vmatpush1.bf16.msra.mxu0 0
        %1619 = vmatprep.subr.bf16.mxu0 0
        %1620 = vmatpush1.bf16.msra.mxu0 0
        %1621 = vmatprep.subr.bf16.mxu0 0
        %1622 = vmatpush1.bf16.msra.mxu0 0
        %1623 = vmatprep.subr.bf16.mxu0 0
        %1624 = vmatpush1.bf16.msra.mxu0 0
        %1625 = vmatprep.subr.bf16.mxu0 0
        %1626 = vmatpush1.bf16.msra.mxu0 0
        %1627 = vmatprep.subr.bf16.mxu0 %v1423
        %1628 = vmatpush1.bf16.msra.mxu0 %v1422
        %1629 = vmatprep.subr.bf16.mxu0 0
        %1630 = vmatpush2.bf16.msra.mxu0 0
        %1631 = vmatprep.subr.bf16.mxu0 0
        %1632 = vmatpush2.bf16.msra.mxu0 0
        %1633 = vmatprep.subr.bf16.mxu0 0
        %1634 = vmatpush2.bf16.msra.mxu0 0
        %1635 = vmatprep.subr.bf16.mxu0 0
        %1636 = vmatpush2.bf16.msra.mxu0 0
        %1637 = vmatprep.subr.bf16.mxu0 0
        %1638 = vmatpush2.bf16.msra.mxu0 0
        %1639 = vmatprep.subr.bf16.mxu0 0
        %1640 = vmatpush2.bf16.msra.mxu0 0
        %1641 = vmatprep.subr.bf16.mxu0 0
        %1642 = vmatpush2.bf16.msra.mxu0 0
        %1643 = vmatprep.subr.bf16.mxu0 0
        %1644 = vmatpush2.bf16.msra.mxu0 0
        %1645 = vmatprep.mubr.bf16.mxu0 0
        %1646 = vmatmul.mubr.bf16.gmra.mxu0 %v1439
        %v1647 = vpop.f32.mrf.mxu0
        %v1648 = vadd.f32 0.0, %v1647
        %v1649 = vpop.f32.mrf.mxu0
        %v1650 = vadd.f32 0.0, %v1649
        %v1651 = vpop.f32.mrf.mxu0
        %v1652 = vadd.f32 0.0, %v1651
        %v1653 = vpop.f32.mrf.mxu0
        %v1654 = vadd.f32 0.0, %v1653
        %1655 = vdwg.mxu0
        %1656 = vmatprep.subr.bf16.mxu0 0
        %1657 = vmatpush1.bf16.msra.mxu0 0
        %1658 = vmatprep.subr.bf16.mxu0 0
        %1659 = vmatpush1.bf16.msra.mxu0 0
        %1660 = vmatprep.subr.bf16.mxu0 0
        %1661 = vmatpush1.bf16.msra.mxu0 0
        %1662 = vmatprep.subr.bf16.mxu0 0
        %1663 = vmatpush1.bf16.msra.mxu0 0
        %1664 = vmatprep.subr.bf16.mxu0 0
        %1665 = vmatpush1.bf16.msra.mxu0 0
        %1666 = vmatprep.subr.bf16.mxu0 0
        %1667 = vmatpush1.bf16.msra.mxu0 0
        %1668 = vmatprep.subr.bf16.mxu0 0
        %1669 = vmatpush1.bf16.msra.mxu0 0
        %1670 = vmatprep.subr.bf16.mxu0 %v1425
        %1671 = vmatpush1.bf16.msra.mxu0 %v1424
        %1672 = vmatprep.subr.bf16.mxu0 0
        %1673 = vmatpush2.bf16.msra.mxu0 0
        %1674 = vmatprep.subr.bf16.mxu0 0
        %1675 = vmatpush2.bf16.msra.mxu0 0
        %1676 = vmatprep.subr.bf16.mxu0 0
        %1677 = vmatpush2.bf16.msra.mxu0 0
        %1678 = vmatprep.subr.bf16.mxu0 0
        %1679 = vmatpush2.bf16.msra.mxu0 0
        %1680 = vmatprep.subr.bf16.mxu0 0
        %1681 = vmatpush2.bf16.msra.mxu0 0
        %1682 = vmatprep.subr.bf16.mxu0 0
        %1683 = vmatpush2.bf16.msra.mxu0 0
        %1684 = vmatprep.subr.bf16.mxu0 0
        %1685 = vmatpush2.bf16.msra.mxu0 0
        %1686 = vmatprep.subr.bf16.mxu0 0
        %1687 = vmatpush2.bf16.msra.mxu0 0
        %1688 = vmatprep.mubr.bf16.mxu0 0
        %1689 = vmatmul.mubr.bf16.gmra.mxu0 %v1439
        %v1690 = vpop.f32.mrf.mxu0
        %v1691 = vadd.f32 0.0, %v1690
        %v1692 = vpop.f32.mrf.mxu0
        %v1693 = vadd.f32 0.0, %v1692
        %v1694 = vpop.f32.mrf.mxu0
        %v1695 = vadd.f32 0.0, %v1694
        %v1696 = vpop.f32.mrf.mxu0
        %v1697 = vadd.f32 0.0, %v1696
        %1698 = vdwg.mxu0
        %1699 = vmatprep.subr.bf16.mxu0 0
        %1700 = vmatpush1.bf16.msra.mxu0 0
        %1701 = vmatprep.subr.bf16.mxu0 0
        %1702 = vmatpush1.bf16.msra.mxu0 0
        %1703 = vmatprep.subr.bf16.mxu0 0
        %1704 = vmatpush1.bf16.msra.mxu0 0
        %1705 = vmatprep.subr.bf16.mxu0 0
        %1706 = vmatpush1.bf16.msra.mxu0 0
        %1707 = vmatprep.subr.bf16.mxu0 0
        %1708 = vmatpush1.bf16.msra.mxu0 0
        %1709 = vmatprep.subr.bf16.mxu0 0
        %1710 = vmatpush1.bf16.msra.mxu0 0
        %1711 = vmatprep.subr.bf16.mxu0 0
        %1712 = vmatpush1.bf16.msra.mxu0 0
        %1713 = vmatprep.subr.bf16.mxu0 %v1427
        %1714 = vmatpush1.bf16.msra.mxu0 %v1426
        %1715 = vmatprep.subr.bf16.mxu0 0
        %1716 = vmatpush2.bf16.msra.mxu0 0
        %1717 = vmatprep.subr.bf16.mxu0 0
        %1718 = vmatpush2.bf16.msra.mxu0 0
        %1719 = vmatprep.subr.bf16.mxu0 0
        %1720 = vmatpush2.bf16.msra.mxu0 0
        %1721 = vmatprep.subr.bf16.mxu0 0
        %1722 = vmatpush2.bf16.msra.mxu0 0
        %1723 = vmatprep.subr.bf16.mxu0 0
        %1724 = vmatpush2.bf16.msra.mxu0 0
        %1725 = vmatprep.subr.bf16.mxu0 0
        %1726 = vmatpush2.bf16.msra.mxu0 0
        %1727 = vmatprep.subr.bf16.mxu0 0
        %1728 = vmatpush2.bf16.msra.mxu0 0
        %1729 = vmatprep.subr.bf16.mxu0 0
        %1730 = vmatpush2.bf16.msra.mxu0 0
        %1731 = vmatprep.mubr.bf16.mxu0 0
        %1732 = vmatmul.mubr.bf16.gmra.mxu0 %v1439
        %v1733 = vpop.f32.mrf.mxu0
        %v1734 = vadd.f32 0.0, %v1733
        %v1735 = vpop.f32.mrf.mxu0
        %v1736 = vadd.f32 0.0, %v1735
        %v1737 = vpop.f32.mrf.mxu0
        %v1738 = vadd.f32 0.0, %v1737
        %v1739 = vpop.f32.mrf.mxu0
        %v1740 = vadd.f32 0.0, %v1739
        %1741 = vdwg.mxu0
        %1742 = vmatprep.subr.bf16.mxu0 0
        %1743 = vmatpush1.bf16.msra.mxu0 0
        %1744 = vmatprep.subr.bf16.mxu0 0
        %1745 = vmatpush1.bf16.msra.mxu0 0
        %1746 = vmatprep.subr.bf16.mxu0 0
        %1747 = vmatpush1.bf16.msra.mxu0 0
        %1748 = vmatprep.subr.bf16.mxu0 0
        %1749 = vmatpush1.bf16.msra.mxu0 0
        %1750 = vmatprep.subr.bf16.mxu0 0
        %1751 = vmatpush1.bf16.msra.mxu0 0
        %1752 = vmatprep.subr.bf16.mxu0 0
        %1753 = vmatpush1.bf16.msra.mxu0 0
        %1754 = vmatprep.subr.bf16.mxu0 0
        %1755 = vmatpush1.bf16.msra.mxu0 0
        %1756 = vmatprep.subr.bf16.mxu0 %v1429
        %1757 = vmatpush1.bf16.msra.mxu0 %v1428
        %1758 = vmatprep.subr.bf16.mxu0 0
        %1759 = vmatpush2.bf16.msra.mxu0 0
        %1760 = vmatprep.subr.bf16.mxu0 0
        %1761 = vmatpush2.bf16.msra.mxu0 0
        %1762 = vmatprep.subr.bf16.mxu0 0
        %1763 = vmatpush2.bf16.msra.mxu0 0
        %1764 = vmatprep.subr.bf16.mxu0 0
        %1765 = vmatpush2.bf16.msra.mxu0 0
        %1766 = vmatprep.subr.bf16.mxu0 0
        %1767 = vmatpush2.bf16.msra.mxu0 0
        %1768 = vmatprep.subr.bf16.mxu0 0
        %1769 = vmatpush2.bf16.msra.mxu0 0
        %1770 = vmatprep.subr.bf16.mxu0 0
        %1771 = vmatpush2.bf16.msra.mxu0 0
        %1772 = vmatprep.subr.bf16.mxu0 0
        %1773 = vmatpush2.bf16.msra.mxu0 0
        %1774 = vmatprep.mubr.bf16.mxu0 0
        %1775 = vmatmul.mubr.bf16.gmra.mxu0 %v1439
        %v1776 = vpop.f32.mrf.mxu0
        %v1777 = vadd.f32 0.0, %v1776
        %v1778 = vpop.f32.mrf.mxu0
        %v1779 = vadd.f32 0.0, %v1778
        %v1780 = vpop.f32.mrf.mxu0
        %v1781 = vadd.f32 0.0, %v1780
        %v1782 = vpop.f32.mrf.mxu0
        %v1783 = vadd.f32 0.0, %v1782
        %1784 = vdwg.mxu0
        %1785 = vmatprep.subr.bf16.mxu0 0
        %1786 = vmatpush1.bf16.msra.mxu0 0
        %1787 = vmatprep.subr.bf16.mxu0 0
        %1788 = vmatpush1.bf16.msra.mxu0 0
        %1789 = vmatprep.subr.bf16.mxu0 0
        %1790 = vmatpush1.bf16.msra.mxu0 0
        %1791 = vmatprep.subr.bf16.mxu0 0
        %1792 = vmatpush1.bf16.msra.mxu0 0
        %1793 = vmatprep.subr.bf16.mxu0 0
        %1794 = vmatpush1.bf16.msra.mxu0 0
        %1795 = vmatprep.subr.bf16.mxu0 0
        %1796 = vmatpush1.bf16.msra.mxu0 0
        %1797 = vmatprep.subr.bf16.mxu0 0
        %1798 = vmatpush1.bf16.msra.mxu0 0
        %1799 = vmatprep.subr.bf16.mxu0 %v1431
        %1800 = vmatpush1.bf16.msra.mxu0 %v1430
        %1801 = vmatprep.subr.bf16.mxu0 0
        %1802 = vmatpush2.bf16.msra.mxu0 0
        %1803 = vmatprep.subr.bf16.mxu0 0
        %1804 = vmatpush2.bf16.msra.mxu0 0
        %1805 = vmatprep.subr.bf16.mxu0 0
        %1806 = vmatpush2.bf16.msra.mxu0 0
        %1807 = vmatprep.subr.bf16.mxu0 0
        %1808 = vmatpush2.bf16.msra.mxu0 0
        %1809 = vmatprep.subr.bf16.mxu0 0
        %1810 = vmatpush2.bf16.msra.mxu0 0
        %1811 = vmatprep.subr.bf16.mxu0 0
        %1812 = vmatpush2.bf16.msra.mxu0 0
        %1813 = vmatprep.subr.bf16.mxu0 0
        %1814 = vmatpush2.bf16.msra.mxu0 0
        %1815 = vmatprep.subr.bf16.mxu0 0
        %1816 = vmatpush2.bf16.msra.mxu0 0
        %1817 = vmatprep.mubr.bf16.mxu0 0
        %1818 = vmatmul.mubr.bf16.gmra.mxu0 %v1439
        %v1819 = vpop.f32.mrf.mxu0
        %v1820 = vadd.f32 0.0, %v1819
        %v1821 = vpop.f32.mrf.mxu0
        %v1822 = vadd.f32 0.0, %v1821
        %v1823 = vpop.f32.mrf.mxu0
        %v1824 = vadd.f32 0.0, %v1823
        %v1825 = vpop.f32.mrf.mxu0
        %v1826 = vadd.f32 0.0, %v1825
        %1827 = vdwg.mxu0
        %v1828 = vmul.f32 %v1476, %v1063
        %v1829 = vmul.f32 %v1478, %v1064
        %v1830 = vmul.f32 %v1519, %v1065
        %v1831 = vmul.f32 %v1521, %v1066
        %v1832 = vmul.f32 %v1562, %v1067
        %v1833 = vmul.f32 %v1564, %v1068
        %v1834 = vmul.f32 %v1605, %v1069
        %v1835 = vmul.f32 %v1607, %v1070
        %v1836 = vmul.f32 %v1648, %v1071
        %v1837 = vmul.f32 %v1650, %v1072
        %v1838 = vmul.f32 %v1691, %v1073
        %v1839 = vmul.f32 %v1693, %v1074
        %v1840 = vmul.f32 %v1734, %v1075
        %v1841 = vmul.f32 %v1736, %v1076
        %v1842 = vmul.f32 %v1777, %v1077
        %v1843 = vmul.f32 %v1779, %v1078
        %v1844 = vmul.f32 %v1820, %v1079
        %v1845 = vmul.f32 %v1822, %v1080
        %v1846 = vmul.f32 %v1480, %v1081
        %v1847 = vmul.f32 %v1482, %v1082
        %v1848 = vmul.f32 %v1523, %v1083
        %v1849 = vmul.f32 %v1525, %v1084
        %v1850 = vmul.f32 %v1566, %v1085
        %v1851 = vmul.f32 %v1568, %v1086
        %v1852 = vmul.f32 %v1609, %v1087
        %v1853 = vmul.f32 %v1611, %v1088
        %v1854 = vmul.f32 %v1652, %v1089
        %v1855 = vmul.f32 %v1654, %v1090
        %v1856 = vmul.f32 %v1695, %v1091
        %v1857 = vmul.f32 %v1697, %v1092
        %v1858 = vmul.f32 %v1738, %v1093
        %v1859 = vmul.f32 %v1740, %v1094
        %v1860 = vmul.f32 %v1781, %v1095
        %v1861 = vmul.f32 %v1783, %v1096
        %v1862 = vmul.f32 %v1824, %v1097
        %v1863 = vmul.f32 %v1826, %v1098
        %v1864 = vadd.f32 %v1828, %v1846
        %v1865 = vrot.slane %v1864, 4
        %v1866 = vadd.f32 %v1864, %v1865
        %v1867 = vrot.slane %v1866, 2
        %v1868 = vadd.f32 %v1866, %v1867
        %v1869 = vrot.slane %v1868, 1
        %v1870 = vadd.f32 %v1868, %v1869
        %v1871 = vadd.f32 %v1829, %v1847
        %v1872 = vrot.slane %v1871, 4
        %v1873 = vadd.f32 %v1871, %v1872
        %v1874 = vrot.slane %v1873, 2
        %v1875 = vadd.f32 %v1873, %v1874
        %v1876 = vrot.slane %v1875, 1
        %v1877 = vadd.f32 %v1875, %v1876
        %v1878 = vadd.f32 %v1830, %v1848
        %v1879 = vrot.slane %v1878, 4
        %v1880 = vadd.f32 %v1878, %v1879
        %v1881 = vrot.slane %v1880, 2
        %v1882 = vadd.f32 %v1880, %v1881
        %v1883 = vrot.slane %v1882, 1
        %v1884 = vadd.f32 %v1882, %v1883
        %v1885 = vadd.f32 %v1831, %v1849
        %v1886 = vrot.slane %v1885, 4
        %v1887 = vadd.f32 %v1885, %v1886
        %v1888 = vrot.slane %v1887, 2
        %v1889 = vadd.f32 %v1887, %v1888
        %v1890 = vrot.slane %v1889, 1
        %v1891 = vadd.f32 %v1889, %v1890
        %v1892 = vadd.f32 %v1832, %v1850
        %v1893 = vrot.slane %v1892, 4
        %v1894 = vadd.f32 %v1892, %v1893
        %v1895 = vrot.slane %v1894, 2
        %v1896 = vadd.f32 %v1894, %v1895
        %v1897 = vrot.slane %v1896, 1
        %v1898 = vadd.f32 %v1896, %v1897
        %v1899 = vadd.f32 %v1833, %v1851
        %v1900 = vrot.slane %v1899, 4
        %v1901 = vadd.f32 %v1899, %v1900
        %v1902 = vrot.slane %v1901, 2
        %v1903 = vadd.f32 %v1901, %v1902
        %v1904 = vrot.slane %v1903, 1
        %v1905 = vadd.f32 %v1903, %v1904
        %v1906 = vadd.f32 %v1834, %v1852
        %v1907 = vrot.slane %v1906, 4
        %v1908 = vadd.f32 %v1906, %v1907
        %v1909 = vrot.slane %v1908, 2
        %v1910 = vadd.f32 %v1908, %v1909
        %v1911 = vrot.slane %v1910, 1
        %v1912 = vadd.f32 %v1910, %v1911
        %v1913 = vadd.f32 %v1835, %v1853
        %v1914 = vrot.slane %v1913, 4
        %v1915 = vadd.f32 %v1913, %v1914
        %v1916 = vrot.slane %v1915, 2
        %v1917 = vadd.f32 %v1915, %v1916
        %v1918 = vrot.slane %v1917, 1
        %v1919 = vadd.f32 %v1917, %v1918
        %v1920 = vadd.f32 %v1836, %v1854
        %v1921 = vrot.slane %v1920, 4
        %v1922 = vadd.f32 %v1920, %v1921
        %v1923 = vrot.slane %v1922, 2
        %v1924 = vadd.f32 %v1922, %v1923
        %v1925 = vrot.slane %v1924, 1
        %v1926 = vadd.f32 %v1924, %v1925
        %v1927 = vadd.f32 %v1837, %v1855
        %v1928 = vrot.slane %v1927, 4
        %v1929 = vadd.f32 %v1927, %v1928
        %v1930 = vrot.slane %v1929, 2
        %v1931 = vadd.f32 %v1929, %v1930
        %v1932 = vrot.slane %v1931, 1
        %v1933 = vadd.f32 %v1931, %v1932
        %v1934 = vadd.f32 %v1838, %v1856
        %v1935 = vrot.slane %v1934, 4
        %v1936 = vadd.f32 %v1934, %v1935
        %v1937 = vrot.slane %v1936, 2
        %v1938 = vadd.f32 %v1936, %v1937
        %v1939 = vrot.slane %v1938, 1
        %v1940 = vadd.f32 %v1938, %v1939
        %v1941 = vadd.f32 %v1839, %v1857
        %v1942 = vrot.slane %v1941, 4
        %v1943 = vadd.f32 %v1941, %v1942
        %v1944 = vrot.slane %v1943, 2
        %v1945 = vadd.f32 %v1943, %v1944
        %v1946 = vrot.slane %v1945, 1
        %v1947 = vadd.f32 %v1945, %v1946
        %v1948 = vadd.f32 %v1840, %v1858
        %v1949 = vrot.slane %v1948, 4
        %v1950 = vadd.f32 %v1948, %v1949
        %v1951 = vrot.slane %v1950, 2
        %v1952 = vadd.f32 %v1950, %v1951
        %v1953 = vrot.slane %v1952, 1
        %v1954 = vadd.f32 %v1952, %v1953
        %v1955 = vadd.f32 %v1841, %v1859
        %v1956 = vrot.slane %v1955, 4
        %v1957 = vadd.f32 %v1955, %v1956
        %v1958 = vrot.slane %v1957, 2
        %v1959 = vadd.f32 %v1957, %v1958
        %v1960 = vrot.slane %v1959, 1
        %v1961 = vadd.f32 %v1959, %v1960
        %v1962 = vadd.f32 %v1842, %v1860
        %v1963 = vrot.slane %v1962, 4
        %v1964 = vadd.f32 %v1962, %v1963
        %v1965 = vrot.slane %v1964, 2
        %v1966 = vadd.f32 %v1964, %v1965
        %v1967 = vrot.slane %v1966, 1
        %v1968 = vadd.f32 %v1966, %v1967
        %v1969 = vadd.f32 %v1843, %v1861
        %v1970 = vrot.slane %v1969, 4
        %v1971 = vadd.f32 %v1969, %v1970
        %v1972 = vrot.slane %v1971, 2
        %v1973 = vadd.f32 %v1971, %v1972
        %v1974 = vrot.slane %v1973, 1
        %v1975 = vadd.f32 %v1973, %v1974
        %v1976 = vadd.f32 %v1844, %v1862
        %v1977 = vrot.slane %v1976, 4
        %v1978 = vadd.f32 %v1976, %v1977
        %v1979 = vrot.slane %v1978, 2
        %v1980 = vadd.f32 %v1978, %v1979
        %v1981 = vrot.slane %v1980, 1
        %v1982 = vadd.f32 %v1980, %v1981
        %v1983 = vadd.f32 %v1845, %v1863
        %v1984 = vrot.slane %v1983, 4
        %v1985 = vadd.f32 %v1983, %v1984
        %v1986 = vrot.slane %v1985, 2
        %v1987 = vadd.f32 %v1985, %v1986
        %v1988 = vrot.slane %v1987, 1
        %v1989 = vadd.f32 %v1987, %v1988
        %v1992 = vcombine.low %v1870, %v1877
        %v1994 = vunpack.c.l.s4 1966171168
        %v1995 = vunpack.c.0.s8 %v1994
        %v1996 = vlaneseq
        %v1997 = vshrl.u32 %v1996, 7
        %v1998 = vsub.s32 %v1995, %v1997
        %v1999 = vrot.slane %v1992, %v1998
        %v2001 = vunpack.c.l.s4 1966171168
        %v2002 = vunpack.c.0.s8 %v2001
        %v2003 = vlaneseq
        %v2004 = vshrl.u32 %v2003, 7
        %v2005 = vsub.s32 %v2002, %v2004
        %v2006 = vrot.slane %v1999, %v2005
        %v2008 = vlaneseq
        %vm2009 = vcmp.ge.s32.totalorder %v2008, 0
        %vm2010 = vcmp.lt.s32.totalorder %v2008, 256
        %vm2011 = vmand %vm2009, %vm2010
        %2012 = vst.msk [vmem:[#allocation2] ss:$8 sm:$0x3] %vm2011, %v2006
        %2013 = vst.msk [vmem:[#allocation2] ss:$8 sm:$0x0] %vm2011, %v2006
        %v2016 = vcombine.low %v1884, %v1891
        %v2018 = vunpack.c.l.s4 1966171168
        %v2019 = vunpack.c.0.s8 %v2018
        %v2020 = vlaneseq
        %v2021 = vshrl.u32 %v2020, 7
        %v2022 = vsub.s32 %v2019, %v2021
        %v2023 = vrot.slane %v2016, %v2022
        %v2025 = vunpack.c.l.s4 1966171168
        %v2026 = vunpack.c.0.s8 %v2025
        %v2027 = vlaneseq
        %v2028 = vshrl.u32 %v2027, 7
        %v2029 = vsub.s32 %v2026, %v2028
        %v2030 = vrot.slane %v2023, %v2029
        %s2032 = scalar_lea.vmem [#allocation2], 1
        %2033 = vst.msk [vmem:[%s2032] ss:$8 sm:$0x3] %vm2011, %v2030
        %2034 = vst.msk [vmem:[%s2032] ss:$8 sm:$0x0] %vm2011, %v2030
        %v2037 = vcombine.low %v1898, %v1905
        %v2039 = vunpack.c.l.s4 1966171168
        %v2040 = vunpack.c.0.s8 %v2039
        %v2041 = vlaneseq
        %v2042 = vshrl.u32 %v2041, 7
        %v2043 = vsub.s32 %v2040, %v2042
        %v2044 = vrot.slane %v2037, %v2043
        %v2046 = vunpack.c.l.s4 1966171168
        %v2047 = vunpack.c.0.s8 %v2046
        %v2048 = vlaneseq
        %v2049 = vshrl.u32 %v2048, 7
        %v2050 = vsub.s32 %v2047, %v2049
        %v2051 = vrot.slane %v2044, %v2050
        %s2053 = scalar_lea.vmem [#allocation2], 2
        %2054 = vst.msk [vmem:[%s2053] ss:$8 sm:$0x3] %vm2011, %v2051
        %2055 = vst.msk [vmem:[%s2053] ss:$8 sm:$0x0] %vm2011, %v2051
        %v2058 = vcombine.low %v1912, %v1919
        %v2060 = vunpack.c.l.s4 1966171168
        %v2061 = vunpack.c.0.s8 %v2060
        %v2062 = vlaneseq
        %v2063 = vshrl.u32 %v2062, 7
        %v2064 = vsub.s32 %v2061, %v2063
        %v2065 = vrot.slane %v2058, %v2064
        %v2067 = vunpack.c.l.s4 1966171168
        %v2068 = vunpack.c.0.s8 %v2067
        %v2069 = vlaneseq
        %v2070 = vshrl.u32 %v2069, 7
        %v2071 = vsub.s32 %v2068, %v2070
        %v2072 = vrot.slane %v2065, %v2071
        %s2074 = scalar_lea.vmem [#allocation2], 3
        %2075 = vst.msk [vmem:[%s2074] ss:$8 sm:$0x3] %vm2011, %v2072
        %2076 = vst.msk [vmem:[%s2074] ss:$8 sm:$0x0] %vm2011, %v2072
        %v2079 = vcombine.low %v1926, %v1933
        %v2081 = vunpack.c.l.s4 1966171168
        %v2082 = vunpack.c.0.s8 %v2081
        %v2083 = vlaneseq
        %v2084 = vshrl.u32 %v2083, 7
        %v2085 = vsub.s32 %v2082, %v2084
        %v2086 = vrot.slane %v2079, %v2085
        %v2088 = vunpack.c.l.s4 1966171168
        %v2089 = vunpack.c.0.s8 %v2088
        %v2090 = vlaneseq
        %v2091 = vshrl.u32 %v2090, 7
        %v2092 = vsub.s32 %v2089, %v2091
        %v2093 = vrot.slane %v2086, %v2092
        %s2095 = scalar_lea.vmem [#allocation2], 4
        %2096 = vst.msk [vmem:[%s2095] ss:$8 sm:$0x3] %vm2011, %v2093
        %2097 = vst.msk [vmem:[%s2095] ss:$8 sm:$0x0] %vm2011, %v2093
        %v2100 = vcombine.low %v1940, %v1947
        %v2102 = vunpack.c.l.s4 1966171168
        %v2103 = vunpack.c.0.s8 %v2102
        %v2104 = vlaneseq
        %v2105 = vshrl.u32 %v2104, 7
        %v2106 = vsub.s32 %v2103, %v2105
        %v2107 = vrot.slane %v2100, %v2106
        %v2109 = vunpack.c.l.s4 1966171168
        %v2110 = vunpack.c.0.s8 %v2109
        %v2111 = vlaneseq
        %v2112 = vshrl.u32 %v2111, 7
        %v2113 = vsub.s32 %v2110, %v2112
        %v2114 = vrot.slane %v2107, %v2113
        %s2116 = scalar_lea.vmem [#allocation2], 5
        %2117 = vst.msk [vmem:[%s2116] ss:$8 sm:$0x3] %vm2011, %v2114
        %2118 = vst.msk [vmem:[%s2116] ss:$8 sm:$0x0] %vm2011, %v2114
        %v2121 = vcombine.low %v1954, %v1961
        %v2123 = vunpack.c.l.s4 1966171168
        %v2124 = vunpack.c.0.s8 %v2123
        %v2125 = vlaneseq
        %v2126 = vshrl.u32 %v2125, 7
        %v2127 = vsub.s32 %v2124, %v2126
        %v2128 = vrot.slane %v2121, %v2127
        %v2130 = vunpack.c.l.s4 1966171168
        %v2131 = vunpack.c.0.s8 %v2130
        %v2132 = vlaneseq
        %v2133 = vshrl.u32 %v2132, 7
        %v2134 = vsub.s32 %v2131, %v2133
        %v2135 = vrot.slane %v2128, %v2134
        %s2137 = scalar_lea.vmem [#allocation2], 6
        %2138 = vst.msk [vmem:[%s2137] ss:$8 sm:$0x3] %vm2011, %v2135
        %2139 = vst.msk [vmem:[%s2137] ss:$8 sm:$0x0] %vm2011, %v2135
        %v2142 = vcombine.low %v1968, %v1975
        %v2144 = vunpack.c.l.s4 1966171168
        %v2145 = vunpack.c.0.s8 %v2144
        %v2146 = vlaneseq
        %v2147 = vshrl.u32 %v2146, 7
        %v2148 = vsub.s32 %v2145, %v2147
        %v2149 = vrot.slane %v2142, %v2148
        %v2151 = vunpack.c.l.s4 1966171168
        %v2152 = vunpack.c.0.s8 %v2151
        %v2153 = vlaneseq
        %v2154 = vshrl.u32 %v2153, 7
        %v2155 = vsub.s32 %v2152, %v2154
        %v2156 = vrot.slane %v2149, %v2155
        %s2158 = scalar_lea.vmem [#allocation2], 7
        %2159 = vst.msk [vmem:[%s2158] ss:$8 sm:$0x3] %vm2011, %v2156
        %2160 = vst.msk [vmem:[%s2158] ss:$8 sm:$0x0] %vm2011, %v2156
        %v2163 = vcombine.low %v1982, %v1989
        %v2165 = vunpack.c.l.s4 1966171168
        %v2166 = vunpack.c.0.s8 %v2165
        %v2167 = vlaneseq
        %v2168 = vshrl.u32 %v2167, 7
        %v2169 = vsub.s32 %v2166, %v2168
        %v2170 = vrot.slane %v2163, %v2169
        %v2172 = vunpack.c.l.s4 1966171168
        %v2173 = vunpack.c.0.s8 %v2172
        %v2174 = vlaneseq
        %v2175 = vshrl.u32 %v2174, 7
        %v2176 = vsub.s32 %v2173, %v2175
        %v2177 = vrot.slane %v2170, %v2176
        %s2179 = scalar_lea.vmem [#allocation2], 16
        %2180 = vst.msk [vmem:[%s2179] ss:$8 sm:$0x3] %vm2011, %v2177
        %2181 = vst.msk [vmem:[%s2179] ss:$8 sm:$0x0] %vm2011, %v2177
        %v2182 = vlaneseq
        %v2183 = vshrl.u32 %v2182, 7
        %v2184 = vsub.s32 1, %v2183
        %v2185 = vrot.slane %v726, %v2184
        %v2186 = vlaneseq
        %v2187 = vshrl.u32 %v2186, 7
        %v2188 = vsub.s32 5, %v2187
        %v2189 = vrot.slane %v726, %v2188
        %v2190 = vlaneseq
        %v2191 = vshrl.u32 %v2190, 7
        %v2192 = vsub.s32 1, %v2191
        %v2193 = vrot.slane %v727, %v2192
        %v2194 = vlaneseq
        %v2195 = vshrl.u32 %v2194, 7
        %v2196 = vsub.s32 5, %v2195
        %v2197 = vrot.slane %v727, %v2196
        %v2198 = vlaneseq
        %v2199 = vshrl.u32 %v2198, 7
        %v2200 = vsub.s32 1, %v2199
        %v2201 = vrot.slane %v728, %v2200
        %v2202 = vlaneseq
        %v2203 = vshrl.u32 %v2202, 7
        %v2204 = vsub.s32 5, %v2203
        %v2205 = vrot.slane %v728, %v2204
        %v2206 = vlaneseq
        %v2207 = vshrl.u32 %v2206, 7
        %v2208 = vsub.s32 1, %v2207
        %v2209 = vrot.slane %v729, %v2208
        %v2210 = vlaneseq
        %v2211 = vshrl.u32 %v2210, 7
        %v2212 = vsub.s32 5, %v2211
        %v2213 = vrot.slane %v729, %v2212
        %v2214 = vlaneseq
        %v2215 = vshrl.u32 %v2214, 7
        %v2216 = vsub.s32 1, %v2215
        %v2217 = vrot.slane %v730, %v2216
        %v2218 = vlaneseq
        %v2219 = vshrl.u32 %v2218, 7
        %v2220 = vsub.s32 5, %v2219
        %v2221 = vrot.slane %v730, %v2220
        %v2222 = vlaneseq
        %v2223 = vshrl.u32 %v2222, 7
        %v2224 = vsub.s32 1, %v2223
        %v2225 = vrot.slane %v731, %v2224
        %v2226 = vlaneseq
        %v2227 = vshrl.u32 %v2226, 7
        %v2228 = vsub.s32 5, %v2227
        %v2229 = vrot.slane %v731, %v2228
        %v2230 = vlaneseq
        %v2231 = vshrl.u32 %v2230, 7
        %v2232 = vsub.s32 1, %v2231
        %v2233 = vrot.slane %v732, %v2232
        %v2234 = vlaneseq
        %v2235 = vshrl.u32 %v2234, 7
        %v2236 = vsub.s32 5, %v2235
        %v2237 = vrot.slane %v732, %v2236
        %v2238 = vlaneseq
        %v2239 = vshrl.u32 %v2238, 7
        %v2240 = vsub.s32 1, %v2239
        %v2241 = vrot.slane %v733, %v2240
        %v2242 = vlaneseq
        %v2243 = vshrl.u32 %v2242, 7
        %v2244 = vsub.s32 5, %v2243
        %v2245 = vrot.slane %v733, %v2244
        %v2246 = vlaneseq
        %v2247 = vshrl.u32 %v2246, 7
        %v2248 = vsub.s32 1, %v2247
        %v2249 = vrot.slane %v734, %v2248
        %v2250 = vlaneseq
        %v2251 = vshrl.u32 %v2250, 7
        %v2252 = vsub.s32 5, %v2251
        %v2253 = vrot.slane %v734, %v2252
        %v2272 = vlaneseq
        %v2273 = vshrl.u32 %v2272, 7
        %v2274 = vsub.s32 1, %v2273
        %v2275 = vrot.slane %v2185, %v2274
        %v2276 = vlaneseq
        %v2277 = vshrl.u32 %v2276, 7
        %v2278 = vsub.s32 1, %v2277
        %v2279 = vrot.slane %v2189, %v2278
        %v2280 = vlaneseq
        %v2281 = vshrl.u32 %v2280, 7
        %v2282 = vsub.s32 1, %v2281
        %v2283 = vrot.slane %v2193, %v2282
        %v2284 = vlaneseq
        %v2285 = vshrl.u32 %v2284, 7
        %v2286 = vsub.s32 1, %v2285
        %v2287 = vrot.slane %v2197, %v2286
        %v2288 = vlaneseq
        %v2289 = vshrl.u32 %v2288, 7
        %v2290 = vsub.s32 1, %v2289
        %v2291 = vrot.slane %v2201, %v2290
        %v2292 = vlaneseq
        %v2293 = vshrl.u32 %v2292, 7
        %v2294 = vsub.s32 1, %v2293
        %v2295 = vrot.slane %v2205, %v2294
        %v2296 = vlaneseq
        %v2297 = vshrl.u32 %v2296, 7
        %v2298 = vsub.s32 1, %v2297
        %v2299 = vrot.slane %v2209, %v2298
        %v2300 = vlaneseq
        %v2301 = vshrl.u32 %v2300, 7
        %v2302 = vsub.s32 1, %v2301
        %v2303 = vrot.slane %v2213, %v2302
        %v2304 = vlaneseq
        %v2305 = vshrl.u32 %v2304, 7
        %v2306 = vsub.s32 1, %v2305
        %v2307 = vrot.slane %v2217, %v2306
        %v2308 = vlaneseq
        %v2309 = vshrl.u32 %v2308, 7
        %v2310 = vsub.s32 1, %v2309
        %v2311 = vrot.slane %v2221, %v2310
        %v2312 = vlaneseq
        %v2313 = vshrl.u32 %v2312, 7
        %v2314 = vsub.s32 1, %v2313
        %v2315 = vrot.slane %v2225, %v2314
        %v2316 = vlaneseq
        %v2317 = vshrl.u32 %v2316, 7
        %v2318 = vsub.s32 1, %v2317
        %v2319 = vrot.slane %v2229, %v2318
        %v2320 = vlaneseq
        %v2321 = vshrl.u32 %v2320, 7
        %v2322 = vsub.s32 1, %v2321
        %v2323 = vrot.slane %v2233, %v2322
        %v2324 = vlaneseq
        %v2325 = vshrl.u32 %v2324, 7
        %v2326 = vsub.s32 1, %v2325
        %v2327 = vrot.slane %v2237, %v2326
        %v2328 = vlaneseq
        %v2329 = vshrl.u32 %v2328, 7
        %v2330 = vsub.s32 1, %v2329
        %v2331 = vrot.slane %v2241, %v2330
        %v2332 = vlaneseq
        %v2333 = vshrl.u32 %v2332, 7
        %v2334 = vsub.s32 1, %v2333
        %v2335 = vrot.slane %v2245, %v2334
        %v2336 = vlaneseq
        %v2337 = vshrl.u32 %v2336, 7
        %v2338 = vsub.s32 1, %v2337
        %v2339 = vrot.slane %v2249, %v2338
        %v2340 = vlaneseq
        %v2341 = vshrl.u32 %v2340, 7
        %v2342 = vsub.s32 1, %v2341
        %v2343 = vrot.slane %v2253, %v2342
        %v2344 = vsub.f32 %v2275, %v774
        %v2345 = vsub.f32 %v2279, %v774
        %v2346 = vsub.f32 %v2283, %v774
        %v2347 = vsub.f32 %v2287, %v774
        %v2348 = vsub.f32 %v2291, %v774
        %v2349 = vsub.f32 %v2295, %v774
        %v2350 = vsub.f32 %v2299, %v774
        %v2351 = vsub.f32 %v2303, %v774
        %v2352 = vsub.f32 %v2307, %v774
        %v2353 = vsub.f32 %v2311, %v774
        %v2354 = vsub.f32 %v2315, %v774
        %v2355 = vsub.f32 %v2319, %v774
        %v2356 = vsub.f32 %v2323, %v774
        %v2357 = vsub.f32 %v2327, %v774
        %v2358 = vsub.f32 %v2331, %v774
        %v2359 = vsub.f32 %v2335, %v774
        %v2360 = vsub.f32 %v2339, %v774
        %v2361 = vsub.f32 %v2343, %v774
        %v2362 = vsub.f32 %v2275, %v775
        %v2363 = vsub.f32 %v2279, %v775
        %v2364 = vsub.f32 %v2283, %v775
        %v2365 = vsub.f32 %v2287, %v775
        %v2366 = vsub.f32 %v2291, %v775
        %v2367 = vsub.f32 %v2295, %v775
        %v2368 = vsub.f32 %v2299, %v775
        %v2369 = vsub.f32 %v2303, %v775
        %v2370 = vsub.f32 %v2307, %v775
        %v2371 = vsub.f32 %v2311, %v775
        %v2372 = vsub.f32 %v2315, %v775
        %v2373 = vsub.f32 %v2319, %v775
        %v2374 = vsub.f32 %v2323, %v775
        %v2375 = vsub.f32 %v2327, %v775
        %v2376 = vsub.f32 %v2331, %v775
        %v2377 = vsub.f32 %v2335, %v775
        %v2378 = vsub.f32 %v2339, %v775
        %v2379 = vsub.f32 %v2343, %v775
        %v2380 = vand.u32 2147483647, %v2344
        %v2381 = vand.u32 2147483647, %v2345
        %v2382 = vand.u32 2147483647, %v2346
        %v2383 = vand.u32 2147483647, %v2347
        %v2384 = vand.u32 2147483647, %v2348
        %v2385 = vand.u32 2147483647, %v2349
        %v2386 = vand.u32 2147483647, %v2350
        %v2387 = vand.u32 2147483647, %v2351
        %v2388 = vand.u32 2147483647, %v2352
        %v2389 = vand.u32 2147483647, %v2353
        %v2390 = vand.u32 2147483647, %v2354
        %v2391 = vand.u32 2147483647, %v2355
        %v2392 = vand.u32 2147483647, %v2356
        %v2393 = vand.u32 2147483647, %v2357
        %v2394 = vand.u32 2147483647, %v2358
        %v2395 = vand.u32 2147483647, %v2359
        %v2396 = vand.u32 2147483647, %v2360
        %v2397 = vand.u32 2147483647, %v2361
        %v2398 = vand.u32 2147483647, %v2362
        %v2399 = vand.u32 2147483647, %v2363
        %v2400 = vand.u32 2147483647, %v2364
        %v2401 = vand.u32 2147483647, %v2365
        %v2402 = vand.u32 2147483647, %v2366
        %v2403 = vand.u32 2147483647, %v2367
        %v2404 = vand.u32 2147483647, %v2368
        %v2405 = vand.u32 2147483647, %v2369
        %v2406 = vand.u32 2147483647, %v2370
        %v2407 = vand.u32 2147483647, %v2371
        %v2408 = vand.u32 2147483647, %v2372
        %v2409 = vand.u32 2147483647, %v2373
        %v2410 = vand.u32 2147483647, %v2374
        %v2411 = vand.u32 2147483647, %v2375
        %v2412 = vand.u32 2147483647, %v2376
        %v2413 = vand.u32 2147483647, %v2377
        %v2414 = vand.u32 2147483647, %v2378
        %v2415 = vand.u32 2147483647, %v2379
        %v2416 = vsub.f32 1.0, %v2380
        %v2417 = vsub.f32 1.0, %v2381
        %v2418 = vsub.f32 1.0, %v2382
        %v2419 = vsub.f32 1.0, %v2383
        %v2420 = vsub.f32 1.0, %v2384
        %v2421 = vsub.f32 1.0, %v2385
        %v2422 = vsub.f32 1.0, %v2386
        %v2423 = vsub.f32 1.0, %v2387
        %v2424 = vsub.f32 1.0, %v2388
        %v2425 = vsub.f32 1.0, %v2389
        %v2426 = vsub.f32 1.0, %v2390
        %v2427 = vsub.f32 1.0, %v2391
        %v2428 = vsub.f32 1.0, %v2392
        %v2429 = vsub.f32 1.0, %v2393
        %v2430 = vsub.f32 1.0, %v2394
        %v2431 = vsub.f32 1.0, %v2395
        %v2432 = vsub.f32 1.0, %v2396
        %v2433 = vsub.f32 1.0, %v2397
        %v2434 = vsub.f32 1.0, %v2398
        %v2435 = vsub.f32 1.0, %v2399
        %v2436 = vsub.f32 1.0, %v2400
        %v2437 = vsub.f32 1.0, %v2401
        %v2438 = vsub.f32 1.0, %v2402
        %v2439 = vsub.f32 1.0, %v2403
        %v2440 = vsub.f32 1.0, %v2404
        %v2441 = vsub.f32 1.0, %v2405
        %v2442 = vsub.f32 1.0, %v2406
        %v2443 = vsub.f32 1.0, %v2407
        %v2444 = vsub.f32 1.0, %v2408
        %v2445 = vsub.f32 1.0, %v2409
        %v2446 = vsub.f32 1.0, %v2410
        %v2447 = vsub.f32 1.0, %v2411
        %v2448 = vsub.f32 1.0, %v2412
        %v2449 = vsub.f32 1.0, %v2413
        %v2450 = vsub.f32 1.0, %v2414
        %v2451 = vsub.f32 1.0, %v2415
        %v2452 = vmax.f32 %v2416, 0.0
        %v2453 = vmax.f32 %v2417, 0.0
        %v2454 = vmax.f32 %v2418, 0.0
        %v2455 = vmax.f32 %v2419, 0.0
        %v2456 = vmax.f32 %v2420, 0.0
        %v2457 = vmax.f32 %v2421, 0.0
        %v2458 = vmax.f32 %v2422, 0.0
        %v2459 = vmax.f32 %v2423, 0.0
        %v2460 = vmax.f32 %v2424, 0.0
        %v2461 = vmax.f32 %v2425, 0.0
        %v2462 = vmax.f32 %v2426, 0.0
        %v2463 = vmax.f32 %v2427, 0.0
        %v2464 = vmax.f32 %v2428, 0.0
        %v2465 = vmax.f32 %v2429, 0.0
        %v2466 = vmax.f32 %v2430, 0.0
        %v2467 = vmax.f32 %v2431, 0.0
        %v2468 = vmax.f32 %v2432, 0.0
        %v2469 = vmax.f32 %v2433, 0.0
        %v2470 = vmax.f32 %v2434, 0.0
        %v2471 = vmax.f32 %v2435, 0.0
        %v2472 = vmax.f32 %v2436, 0.0
        %v2473 = vmax.f32 %v2437, 0.0
        %v2474 = vmax.f32 %v2438, 0.0
        %v2475 = vmax.f32 %v2439, 0.0
        %v2476 = vmax.f32 %v2440, 0.0
        %v2477 = vmax.f32 %v2441, 0.0
        %v2478 = vmax.f32 %v2442, 0.0
        %v2479 = vmax.f32 %v2443, 0.0
        %v2480 = vmax.f32 %v2444, 0.0
        %v2481 = vmax.f32 %v2445, 0.0
        %v2482 = vmax.f32 %v2446, 0.0
        %v2483 = vmax.f32 %v2447, 0.0
        %v2484 = vmax.f32 %v2448, 0.0
        %v2485 = vmax.f32 %v2449, 0.0
        %v2486 = vmax.f32 %v2450, 0.0
        %v2487 = vmax.f32 %v2451, 0.0
        %v2488 = vlaneseq
        %v2489 = vshrl.u32 %v2488, 7
        %v2490 = vsub.s32 1, %v2489
        %v2491 = vrot.slane %v762, %v2490
        %v2492 = vlaneseq
        %v2493 = vshrl.u32 %v2492, 7
        %v2494 = vsub.s32 5, %v2493
        %v2495 = vrot.slane %v762, %v2494
        %v2496 = vlaneseq
        %v2497 = vshrl.u32 %v2496, 7
        %v2498 = vsub.s32 1, %v2497
        %v2499 = vrot.slane %v763, %v2498
        %v2500 = vlaneseq
        %v2501 = vshrl.u32 %v2500, 7
        %v2502 = vsub.s32 5, %v2501
        %v2503 = vrot.slane %v763, %v2502
        %v2504 = vlaneseq
        %v2505 = vshrl.u32 %v2504, 7
        %v2506 = vsub.s32 1, %v2505
        %v2507 = vrot.slane %v764, %v2506
        %v2508 = vlaneseq
        %v2509 = vshrl.u32 %v2508, 7
        %v2510 = vsub.s32 5, %v2509
        %v2511 = vrot.slane %v764, %v2510
        %v2512 = vlaneseq
        %v2513 = vshrl.u32 %v2512, 7
        %v2514 = vsub.s32 1, %v2513
        %v2515 = vrot.slane %v765, %v2514
        %v2516 = vlaneseq
        %v2517 = vshrl.u32 %v2516, 7
        %v2518 = vsub.s32 5, %v2517
        %v2519 = vrot.slane %v765, %v2518
        %v2520 = vlaneseq
        %v2521 = vshrl.u32 %v2520, 7
        %v2522 = vsub.s32 1, %v2521
        %v2523 = vrot.slane %v766, %v2522
        %v2524 = vlaneseq
        %v2525 = vshrl.u32 %v2524, 7
        %v2526 = vsub.s32 5, %v2525
        %v2527 = vrot.slane %v766, %v2526
        %v2528 = vlaneseq
        %v2529 = vshrl.u32 %v2528, 7
        %v2530 = vsub.s32 1, %v2529
        %v2531 = vrot.slane %v767, %v2530
        %v2532 = vlaneseq
        %v2533 = vshrl.u32 %v2532, 7
        %v2534 = vsub.s32 5, %v2533
        %v2535 = vrot.slane %v767, %v2534
        %v2536 = vlaneseq
        %v2537 = vshrl.u32 %v2536, 7
        %v2538 = vsub.s32 1, %v2537
        %v2539 = vrot.slane %v768, %v2538
        %v2540 = vlaneseq
        %v2541 = vshrl.u32 %v2540, 7
        %v2542 = vsub.s32 5, %v2541
        %v2543 = vrot.slane %v768, %v2542
        %v2544 = vlaneseq
        %v2545 = vshrl.u32 %v2544, 7
        %v2546 = vsub.s32 1, %v2545
        %v2547 = vrot.slane %v769, %v2546
        %v2548 = vlaneseq
        %v2549 = vshrl.u32 %v2548, 7
        %v2550 = vsub.s32 5, %v2549
        %v2551 = vrot.slane %v769, %v2550
        %v2552 = vlaneseq
        %v2553 = vshrl.u32 %v2552, 7
        %v2554 = vsub.s32 1, %v2553
        %v2555 = vrot.slane %v770, %v2554
        %v2556 = vlaneseq
        %v2557 = vshrl.u32 %v2556, 7
        %v2558 = vsub.s32 5, %v2557
        %v2559 = vrot.slane %v770, %v2558
        %v2578 = vlaneseq
        %v2579 = vshrl.u32 %v2578, 7
        %v2580 = vsub.s32 1, %v2579
        %v2581 = vrot.slane %v2491, %v2580
        %v2582 = vlaneseq
        %v2583 = vshrl.u32 %v2582, 7
        %v2584 = vsub.s32 1, %v2583
        %v2585 = vrot.slane %v2495, %v2584
        %v2586 = vlaneseq
        %v2587 = vshrl.u32 %v2586, 7
        %v2588 = vsub.s32 1, %v2587
        %v2589 = vrot.slane %v2499, %v2588
        %v2590 = vlaneseq
        %v2591 = vshrl.u32 %v2590, 7
        %v2592 = vsub.s32 1, %v2591
        %v2593 = vrot.slane %v2503, %v2592
        %v2594 = vlaneseq
        %v2595 = vshrl.u32 %v2594, 7
        %v2596 = vsub.s32 1, %v2595
        %v2597 = vrot.slane %v2507, %v2596
        %v2598 = vlaneseq
        %v2599 = vshrl.u32 %v2598, 7
        %v2600 = vsub.s32 1, %v2599
        %v2601 = vrot.slane %v2511, %v2600
        %v2602 = vlaneseq
        %v2603 = vshrl.u32 %v2602, 7
        %v2604 = vsub.s32 1, %v2603
        %v2605 = vrot.slane %v2515, %v2604
        %v2606 = vlaneseq
        %v2607 = vshrl.u32 %v2606, 7
        %v2608 = vsub.s32 1, %v2607
        %v2609 = vrot.slane %v2519, %v2608
        %v2610 = vlaneseq
        %v2611 = vshrl.u32 %v2610, 7
        %v2612 = vsub.s32 1, %v2611
        %v2613 = vrot.slane %v2523, %v2612
        %v2614 = vlaneseq
        %v2615 = vshrl.u32 %v2614, 7
        %v2616 = vsub.s32 1, %v2615
        %v2617 = vrot.slane %v2527, %v2616
        %v2618 = vlaneseq
        %v2619 = vshrl.u32 %v2618, 7
        %v2620 = vsub.s32 1, %v2619
        %v2621 = vrot.slane %v2531, %v2620
        %v2622 = vlaneseq
        %v2623 = vshrl.u32 %v2622, 7
        %v2624 = vsub.s32 1, %v2623
        %v2625 = vrot.slane %v2535, %v2624
        %v2626 = vlaneseq
        %v2627 = vshrl.u32 %v2626, 7
        %v2628 = vsub.s32 1, %v2627
        %v2629 = vrot.slane %v2539, %v2628
        %v2630 = vlaneseq
        %v2631 = vshrl.u32 %v2630, 7
        %v2632 = vsub.s32 1, %v2631
        %v2633 = vrot.slane %v2543, %v2632
        %v2634 = vlaneseq
        %v2635 = vshrl.u32 %v2634, 7
        %v2636 = vsub.s32 1, %v2635
        %v2637 = vrot.slane %v2547, %v2636
        %v2638 = vlaneseq
        %v2639 = vshrl.u32 %v2638, 7
        %v2640 = vsub.s32 1, %v2639
        %v2641 = vrot.slane %v2551, %v2640
        %v2642 = vlaneseq
        %v2643 = vshrl.u32 %v2642, 7
        %v2644 = vsub.s32 1, %v2643
        %v2645 = vrot.slane %v2555, %v2644
        %v2646 = vlaneseq
        %v2647 = vshrl.u32 %v2646, 7
        %v2648 = vsub.s32 1, %v2647
        %v2649 = vrot.slane %v2559, %v2648
        %v2650 = vsub.f32 %v2581, %v774
        %v2651 = vsub.f32 %v2585, %v774
        %v2652 = vsub.f32 %v2589, %v774
        %v2653 = vsub.f32 %v2593, %v774
        %v2654 = vsub.f32 %v2597, %v774
        %v2655 = vsub.f32 %v2601, %v774
        %v2656 = vsub.f32 %v2605, %v774
        %v2657 = vsub.f32 %v2609, %v774
        %v2658 = vsub.f32 %v2613, %v774
        %v2659 = vsub.f32 %v2617, %v774
        %v2660 = vsub.f32 %v2621, %v774
        %v2661 = vsub.f32 %v2625, %v774
        %v2662 = vsub.f32 %v2629, %v774
        %v2663 = vsub.f32 %v2633, %v774
        %v2664 = vsub.f32 %v2637, %v774
        %v2665 = vsub.f32 %v2641, %v774
        %v2666 = vsub.f32 %v2645, %v774
        %v2667 = vsub.f32 %v2649, %v774
        %v2668 = vsub.f32 %v2581, %v775
        %v2669 = vsub.f32 %v2585, %v775
        %v2670 = vsub.f32 %v2589, %v775
        %v2671 = vsub.f32 %v2593, %v775
        %v2672 = vsub.f32 %v2597, %v775
        %v2673 = vsub.f32 %v2601, %v775
        %v2674 = vsub.f32 %v2605, %v775
        %v2675 = vsub.f32 %v2609, %v775
        %v2676 = vsub.f32 %v2613, %v775
        %v2677 = vsub.f32 %v2617, %v775
        %v2678 = vsub.f32 %v2621, %v775
        %v2679 = vsub.f32 %v2625, %v775
        %v2680 = vsub.f32 %v2629, %v775
        %v2681 = vsub.f32 %v2633, %v775
        %v2682 = vsub.f32 %v2637, %v775
        %v2683 = vsub.f32 %v2641, %v775
        %v2684 = vsub.f32 %v2645, %v775
        %v2685 = vsub.f32 %v2649, %v775
        %v2686 = vand.u32 2147483647, %v2650
        %v2687 = vand.u32 2147483647, %v2651
        %v2688 = vand.u32 2147483647, %v2652
        %v2689 = vand.u32 2147483647, %v2653
        %v2690 = vand.u32 2147483647, %v2654
        %v2691 = vand.u32 2147483647, %v2655
        %v2692 = vand.u32 2147483647, %v2656
        %v2693 = vand.u32 2147483647, %v2657
        %v2694 = vand.u32 2147483647, %v2658
        %v2695 = vand.u32 2147483647, %v2659
        %v2696 = vand.u32 2147483647, %v2660
        %v2697 = vand.u32 2147483647, %v2661
        %v2698 = vand.u32 2147483647, %v2662
        %v2699 = vand.u32 2147483647, %v2663
        %v2700 = vand.u32 2147483647, %v2664
        %v2701 = vand.u32 2147483647, %v2665
        %v2702 = vand.u32 2147483647, %v2666
        %v2703 = vand.u32 2147483647, %v2667
        %v2704 = vand.u32 2147483647, %v2668
        %v2705 = vand.u32 2147483647, %v2669
        %v2706 = vand.u32 2147483647, %v2670
        %v2707 = vand.u32 2147483647, %v2671
        %v2708 = vand.u32 2147483647, %v2672
        %v2709 = vand.u32 2147483647, %v2673
        %v2710 = vand.u32 2147483647, %v2674
        %v2711 = vand.u32 2147483647, %v2675
        %v2712 = vand.u32 2147483647, %v2676
        %v2713 = vand.u32 2147483647, %v2677
        %v2714 = vand.u32 2147483647, %v2678
        %v2715 = vand.u32 2147483647, %v2679
        %v2716 = vand.u32 2147483647, %v2680
        %v2717 = vand.u32 2147483647, %v2681
        %v2718 = vand.u32 2147483647, %v2682
        %v2719 = vand.u32 2147483647, %v2683
        %v2720 = vand.u32 2147483647, %v2684
        %v2721 = vand.u32 2147483647, %v2685
        %v2722 = vsub.f32 1.0, %v2686
        %v2723 = vsub.f32 1.0, %v2687
        %v2724 = vsub.f32 1.0, %v2688
        %v2725 = vsub.f32 1.0, %v2689
        %v2726 = vsub.f32 1.0, %v2690
        %v2727 = vsub.f32 1.0, %v2691
        %v2728 = vsub.f32 1.0, %v2692
        %v2729 = vsub.f32 1.0, %v2693
        %v2730 = vsub.f32 1.0, %v2694
        %v2731 = vsub.f32 1.0, %v2695
        %v2732 = vsub.f32 1.0, %v2696
        %v2733 = vsub.f32 1.0, %v2697
        %v2734 = vsub.f32 1.0, %v2698
        %v2735 = vsub.f32 1.0, %v2699
        %v2736 = vsub.f32 1.0, %v2700
        %v2737 = vsub.f32 1.0, %v2701
        %v2738 = vsub.f32 1.0, %v2702
        %v2739 = vsub.f32 1.0, %v2703
        %v2740 = vsub.f32 1.0, %v2704
        %v2741 = vsub.f32 1.0, %v2705
        %v2742 = vsub.f32 1.0, %v2706
        %v2743 = vsub.f32 1.0, %v2707
        %v2744 = vsub.f32 1.0, %v2708
        %v2745 = vsub.f32 1.0, %v2709
        %v2746 = vsub.f32 1.0, %v2710
        %v2747 = vsub.f32 1.0, %v2711
        %v2748 = vsub.f32 1.0, %v2712
        %v2749 = vsub.f32 1.0, %v2713
        %v2750 = vsub.f32 1.0, %v2714
        %v2751 = vsub.f32 1.0, %v2715
        %v2752 = vsub.f32 1.0, %v2716
        %v2753 = vsub.f32 1.0, %v2717
        %v2754 = vsub.f32 1.0, %v2718
        %v2755 = vsub.f32 1.0, %v2719
        %v2756 = vsub.f32 1.0, %v2720
        %v2757 = vsub.f32 1.0, %v2721
        %v2758 = vmax.f32 %v2722, 0.0
        %v2759 = vmax.f32 %v2723, 0.0
        %v2760 = vmax.f32 %v2724, 0.0
        %v2761 = vmax.f32 %v2725, 0.0
        %v2762 = vmax.f32 %v2726, 0.0
        %v2763 = vmax.f32 %v2727, 0.0
        %v2764 = vmax.f32 %v2728, 0.0
        %v2765 = vmax.f32 %v2729, 0.0
        %v2766 = vmax.f32 %v2730, 0.0
        %v2767 = vmax.f32 %v2731, 0.0
        %v2768 = vmax.f32 %v2732, 0.0
        %v2769 = vmax.f32 %v2733, 0.0
        %v2770 = vmax.f32 %v2734, 0.0
        %v2771 = vmax.f32 %v2735, 0.0
        %v2772 = vmax.f32 %v2736, 0.0
        %v2773 = vmax.f32 %v2737, 0.0
        %v2774 = vmax.f32 %v2738, 0.0
        %v2775 = vmax.f32 %v2739, 0.0
        %v2776 = vmax.f32 %v2740, 0.0
        %v2777 = vmax.f32 %v2741, 0.0
        %v2778 = vmax.f32 %v2742, 0.0
        %v2779 = vmax.f32 %v2743, 0.0
        %v2780 = vmax.f32 %v2744, 0.0
        %v2781 = vmax.f32 %v2745, 0.0
        %v2782 = vmax.f32 %v2746, 0.0
        %v2783 = vmax.f32 %v2747, 0.0
        %v2784 = vmax.f32 %v2748, 0.0
        %v2785 = vmax.f32 %v2749, 0.0
        %v2786 = vmax.f32 %v2750, 0.0
        %v2787 = vmax.f32 %v2751, 0.0
        %v2788 = vmax.f32 %v2752, 0.0
        %v2789 = vmax.f32 %v2753, 0.0
        %v2790 = vmax.f32 %v2754, 0.0
        %v2791 = vmax.f32 %v2755, 0.0
        %v2792 = vmax.f32 %v2756, 0.0
        %v2793 = vmax.f32 %v2757, 0.0
        %v2794 = vpack.c.bf16 %v2776, %v2758
        %v2795 = vpack.c.bf16 %v2777, %v2759
        %v2796 = vpack.c.bf16 %v2778, %v2760
        %v2797 = vpack.c.bf16 %v2779, %v2761
        %v2798 = vpack.c.bf16 %v2780, %v2762
        %v2799 = vpack.c.bf16 %v2781, %v2763
        %v2800 = vpack.c.bf16 %v2782, %v2764
        %v2801 = vpack.c.bf16 %v2783, %v2765
        %v2802 = vpack.c.bf16 %v2784, %v2766
        %v2803 = vpack.c.bf16 %v2785, %v2767
        %v2804 = vpack.c.bf16 %v2786, %v2768
        %v2805 = vpack.c.bf16 %v2787, %v2769
        %v2806 = vpack.c.bf16 %v2788, %v2770
        %v2807 = vpack.c.bf16 %v2789, %v2771
        %v2808 = vpack.c.bf16 %v2790, %v2772
        %v2809 = vpack.c.bf16 %v2791, %v2773
        %v2810 = vpack.c.bf16 %v2792, %v2774
        %v2811 = vpack.c.bf16 %v2793, %v2775
        %v2814 = vunpack.c.l.b16 %v778
        %v2815 = vunpack.c.l.b16 %v779
        %v2816 = vpack.c.b16 %v2815, %v2814
        %v2818 = vsel %vm1437, %v2816, 0
        %2820 = vmatprep.subr.bf16.mxu0 0
        %2821 = vmatpush1.bf16.msra.mxu0 0
        %2822 = vmatprep.subr.bf16.mxu0 0
        %2823 = vmatpush1.bf16.msra.mxu0 0
        %2824 = vmatprep.subr.bf16.mxu0 0
        %2825 = vmatpush1.bf16.msra.mxu0 0
        %2826 = vmatprep.subr.bf16.mxu0 0
        %2827 = vmatpush1.bf16.msra.mxu0 0
        %2828 = vmatprep.subr.bf16.mxu0 0
        %2829 = vmatpush1.bf16.msra.mxu0 0
        %2830 = vmatprep.subr.bf16.mxu0 0
        %2831 = vmatpush1.bf16.msra.mxu0 0
        %2832 = vmatprep.subr.bf16.mxu0 0
        %2833 = vmatpush1.bf16.msra.mxu0 0
        %2834 = vmatprep.subr.bf16.mxu0 %v2795
        %2835 = vmatpush1.bf16.msra.mxu0 %v2794
        %2836 = vmatprep.subr.bf16.mxu0 0
        %2837 = vmatpush2.bf16.msra.mxu0 0
        %2838 = vmatprep.subr.bf16.mxu0 0
        %2839 = vmatpush2.bf16.msra.mxu0 0
        %2840 = vmatprep.subr.bf16.mxu0 0
        %2841 = vmatpush2.bf16.msra.mxu0 0
        %2842 = vmatprep.subr.bf16.mxu0 0
        %2843 = vmatpush2.bf16.msra.mxu0 0
        %2844 = vmatprep.subr.bf16.mxu0 0
        %2845 = vmatpush2.bf16.msra.mxu0 0
        %2846 = vmatprep.subr.bf16.mxu0 0
        %2847 = vmatpush2.bf16.msra.mxu0 0
        %2848 = vmatprep.subr.bf16.mxu0 0
        %2849 = vmatpush2.bf16.msra.mxu0 0
        %2850 = vmatprep.subr.bf16.mxu0 0
        %2851 = vmatpush2.bf16.msra.mxu0 0
        %2852 = vmatprep.mubr.bf16.mxu0 0
        %2853 = vmatmul.mubr.bf16.gmra.mxu0 %v2818
        %v2854 = vpop.f32.mrf.mxu0
        %v2855 = vadd.f32 0.0, %v2854
        %v2856 = vpop.f32.mrf.mxu0
        %v2857 = vadd.f32 0.0, %v2856
        %v2858 = vpop.f32.mrf.mxu0
        %v2859 = vadd.f32 0.0, %v2858
        %v2860 = vpop.f32.mrf.mxu0
        %v2861 = vadd.f32 0.0, %v2860
        %2862 = vdwg.mxu0
        %2863 = vmatprep.subr.bf16.mxu0 0
        %2864 = vmatpush1.bf16.msra.mxu0 0
        %2865 = vmatprep.subr.bf16.mxu0 0
        %2866 = vmatpush1.bf16.msra.mxu0 0
        %2867 = vmatprep.subr.bf16.mxu0 0
        %2868 = vmatpush1.bf16.msra.mxu0 0
        %2869 = vmatprep.subr.bf16.mxu0 0
        %2870 = vmatpush1.bf16.msra.mxu0 0
        %2871 = vmatprep.subr.bf16.mxu0 0
        %2872 = vmatpush1.bf16.msra.mxu0 0
        %2873 = vmatprep.subr.bf16.mxu0 0
        %2874 = vmatpush1.bf16.msra.mxu0 0
        %2875 = vmatprep.subr.bf16.mxu0 0
        %2876 = vmatpush1.bf16.msra.mxu0 0
        %2877 = vmatprep.subr.bf16.mxu0 %v2797
        %2878 = vmatpush1.bf16.msra.mxu0 %v2796
        %2879 = vmatprep.subr.bf16.mxu0 0
        %2880 = vmatpush2.bf16.msra.mxu0 0
        %2881 = vmatprep.subr.bf16.mxu0 0
        %2882 = vmatpush2.bf16.msra.mxu0 0
        %2883 = vmatprep.subr.bf16.mxu0 0
        %2884 = vmatpush2.bf16.msra.mxu0 0
        %2885 = vmatprep.subr.bf16.mxu0 0
        %2886 = vmatpush2.bf16.msra.mxu0 0
        %2887 = vmatprep.subr.bf16.mxu0 0
        %2888 = vmatpush2.bf16.msra.mxu0 0
        %2889 = vmatprep.subr.bf16.mxu0 0
        %2890 = vmatpush2.bf16.msra.mxu0 0
        %2891 = vmatprep.subr.bf16.mxu0 0
        %2892 = vmatpush2.bf16.msra.mxu0 0
        %2893 = vmatprep.subr.bf16.mxu0 0
        %2894 = vmatpush2.bf16.msra.mxu0 0
        %2895 = vmatprep.mubr.bf16.mxu0 0
        %2896 = vmatmul.mubr.bf16.gmra.mxu0 %v2818
        %v2897 = vpop.f32.mrf.mxu0
        %v2898 = vadd.f32 0.0, %v2897
        %v2899 = vpop.f32.mrf.mxu0
        %v2900 = vadd.f32 0.0, %v2899
        %v2901 = vpop.f32.mrf.mxu0
        %v2902 = vadd.f32 0.0, %v2901
        %v2903 = vpop.f32.mrf.mxu0
        %v2904 = vadd.f32 0.0, %v2903
        %2905 = vdwg.mxu0
        %2906 = vmatprep.subr.bf16.mxu0 0
        %2907 = vmatpush1.bf16.msra.mxu0 0
        %2908 = vmatprep.subr.bf16.mxu0 0
        %2909 = vmatpush1.bf16.msra.mxu0 0
        %2910 = vmatprep.subr.bf16.mxu0 0
        %2911 = vmatpush1.bf16.msra.mxu0 0
        %2912 = vmatprep.subr.bf16.mxu0 0
        %2913 = vmatpush1.bf16.msra.mxu0 0
        %2914 = vmatprep.subr.bf16.mxu0 0
        %2915 = vmatpush1.bf16.msra.mxu0 0
        %2916 = vmatprep.subr.bf16.mxu0 0
        %2917 = vmatpush1.bf16.msra.mxu0 0
        %2918 = vmatprep.subr.bf16.mxu0 0
        %2919 = vmatpush1.bf16.msra.mxu0 0
        %2920 = vmatprep.subr.bf16.mxu0 %v2799
        %2921 = vmatpush1.bf16.msra.mxu0 %v2798
        %2922 = vmatprep.subr.bf16.mxu0 0
        %2923 = vmatpush2.bf16.msra.mxu0 0
        %2924 = vmatprep.subr.bf16.mxu0 0
        %2925 = vmatpush2.bf16.msra.mxu0 0
        %2926 = vmatprep.subr.bf16.mxu0 0
        %2927 = vmatpush2.bf16.msra.mxu0 0
        %2928 = vmatprep.subr.bf16.mxu0 0
        %2929 = vmatpush2.bf16.msra.mxu0 0
        %2930 = vmatprep.subr.bf16.mxu0 0
        %2931 = vmatpush2.bf16.msra.mxu0 0
        %2932 = vmatprep.subr.bf16.mxu0 0
        %2933 = vmatpush2.bf16.msra.mxu0 0
        %2934 = vmatprep.subr.bf16.mxu0 0
        %2935 = vmatpush2.bf16.msra.mxu0 0
        %2936 = vmatprep.subr.bf16.mxu0 0
        %2937 = vmatpush2.bf16.msra.mxu0 0
        %2938 = vmatprep.mubr.bf16.mxu0 0
        %2939 = vmatmul.mubr.bf16.gmra.mxu0 %v2818
        %v2940 = vpop.f32.mrf.mxu0
        %v2941 = vadd.f32 0.0, %v2940
        %v2942 = vpop.f32.mrf.mxu0
        %v2943 = vadd.f32 0.0, %v2942
        %v2944 = vpop.f32.mrf.mxu0
        %v2945 = vadd.f32 0.0, %v2944
        %v2946 = vpop.f32.mrf.mxu0
        %v2947 = vadd.f32 0.0, %v2946
        %2948 = vdwg.mxu0
        %2949 = vmatprep.subr.bf16.mxu0 0
        %2950 = vmatpush1.bf16.msra.mxu0 0
        %2951 = vmatprep.subr.bf16.mxu0 0
        %2952 = vmatpush1.bf16.msra.mxu0 0
        %2953 = vmatprep.subr.bf16.mxu0 0
        %2954 = vmatpush1.bf16.msra.mxu0 0
        %2955 = vmatprep.subr.bf16.mxu0 0
        %2956 = vmatpush1.bf16.msra.mxu0 0
        %2957 = vmatprep.subr.bf16.mxu0 0
        %2958 = vmatpush1.bf16.msra.mxu0 0
        %2959 = vmatprep.subr.bf16.mxu0 0
        %2960 = vmatpush1.bf16.msra.mxu0 0
        %2961 = vmatprep.subr.bf16.mxu0 0
        %2962 = vmatpush1.bf16.msra.mxu0 0
        %2963 = vmatprep.subr.bf16.mxu0 %v2801
        %2964 = vmatpush1.bf16.msra.mxu0 %v2800
        %2965 = vmatprep.subr.bf16.mxu0 0
        %2966 = vmatpush2.bf16.msra.mxu0 0
        %2967 = vmatprep.subr.bf16.mxu0 0
        %2968 = vmatpush2.bf16.msra.mxu0 0
        %2969 = vmatprep.subr.bf16.mxu0 0
        %2970 = vmatpush2.bf16.msra.mxu0 0
        %2971 = vmatprep.subr.bf16.mxu0 0
        %2972 = vmatpush2.bf16.msra.mxu0 0
        %2973 = vmatprep.subr.bf16.mxu0 0
        %2974 = vmatpush2.bf16.msra.mxu0 0
        %2975 = vmatprep.subr.bf16.mxu0 0
        %2976 = vmatpush2.bf16.msra.mxu0 0
        %2977 = vmatprep.subr.bf16.mxu0 0
        %2978 = vmatpush2.bf16.msra.mxu0 0
        %2979 = vmatprep.subr.bf16.mxu0 0
        %2980 = vmatpush2.bf16.msra.mxu0 0
        %2981 = vmatprep.mubr.bf16.mxu0 0
        %2982 = vmatmul.mubr.bf16.gmra.mxu0 %v2818
        %v2983 = vpop.f32.mrf.mxu0
        %v2984 = vadd.f32 0.0, %v2983
        %v2985 = vpop.f32.mrf.mxu0
        %v2986 = vadd.f32 0.0, %v2985
        %v2987 = vpop.f32.mrf.mxu0
        %v2988 = vadd.f32 0.0, %v2987
        %v2989 = vpop.f32.mrf.mxu0
        %v2990 = vadd.f32 0.0, %v2989
        %2991 = vdwg.mxu0
        %2992 = vmatprep.subr.bf16.mxu0 0
        %2993 = vmatpush1.bf16.msra.mxu0 0
        %2994 = vmatprep.subr.bf16.mxu0 0
        %2995 = vmatpush1.bf16.msra.mxu0 0
        %2996 = vmatprep.subr.bf16.mxu0 0
        %2997 = vmatpush1.bf16.msra.mxu0 0
        %2998 = vmatprep.subr.bf16.mxu0 0
        %2999 = vmatpush1.bf16.msra.mxu0 0
        %3000 = vmatprep.subr.bf16.mxu0 0
        %3001 = vmatpush1.bf16.msra.mxu0 0
        %3002 = vmatprep.subr.bf16.mxu0 0
        %3003 = vmatpush1.bf16.msra.mxu0 0
        %3004 = vmatprep.subr.bf16.mxu0 0
        %3005 = vmatpush1.bf16.msra.mxu0 0
        %3006 = vmatprep.subr.bf16.mxu0 %v2803
        %3007 = vmatpush1.bf16.msra.mxu0 %v2802
        %3008 = vmatprep.subr.bf16.mxu0 0
        %3009 = vmatpush2.bf16.msra.mxu0 0
        %3010 = vmatprep.subr.bf16.mxu0 0
        %3011 = vmatpush2.bf16.msra.mxu0 0
        %3012 = vmatprep.subr.bf16.mxu0 0
        %3013 = vmatpush2.bf16.msra.mxu0 0
        %3014 = vmatprep.subr.bf16.mxu0 0
        %3015 = vmatpush2.bf16.msra.mxu0 0
        %3016 = vmatprep.subr.bf16.mxu0 0
        %3017 = vmatpush2.bf16.msra.mxu0 0
        %3018 = vmatprep.subr.bf16.mxu0 0
        %3019 = vmatpush2.bf16.msra.mxu0 0
        %3020 = vmatprep.subr.bf16.mxu0 0
        %3021 = vmatpush2.bf16.msra.mxu0 0
        %3022 = vmatprep.subr.bf16.mxu0 0
        %3023 = vmatpush2.bf16.msra.mxu0 0
        %3024 = vmatprep.mubr.bf16.mxu0 0
        %3025 = vmatmul.mubr.bf16.gmra.mxu0 %v2818
        %v3026 = vpop.f32.mrf.mxu0
        %v3027 = vadd.f32 0.0, %v3026
        %v3028 = vpop.f32.mrf.mxu0
        %v3029 = vadd.f32 0.0, %v3028
        %v3030 = vpop.f32.mrf.mxu0
        %v3031 = vadd.f32 0.0, %v3030
        %v3032 = vpop.f32.mrf.mxu0
        %v3033 = vadd.f32 0.0, %v3032
        %3034 = vdwg.mxu0
        %3035 = vmatprep.subr.bf16.mxu0 0
        %3036 = vmatpush1.bf16.msra.mxu0 0
        %3037 = vmatprep.subr.bf16.mxu0 0
        %3038 = vmatpush1.bf16.msra.mxu0 0
        %3039 = vmatprep.subr.bf16.mxu0 0
        %3040 = vmatpush1.bf16.msra.mxu0 0
        %3041 = vmatprep.subr.bf16.mxu0 0
        %3042 = vmatpush1.bf16.msra.mxu0 0
        %3043 = vmatprep.subr.bf16.mxu0 0
        %3044 = vmatpush1.bf16.msra.mxu0 0
        %3045 = vmatprep.subr.bf16.mxu0 0
        %3046 = vmatpush1.bf16.msra.mxu0 0
        %3047 = vmatprep.subr.bf16.mxu0 0
        %3048 = vmatpush1.bf16.msra.mxu0 0
        %3049 = vmatprep.subr.bf16.mxu0 %v2805
        %3050 = vmatpush1.bf16.msra.mxu0 %v2804
        %3051 = vmatprep.subr.bf16.mxu0 0
        %3052 = vmatpush2.bf16.msra.mxu0 0
        %3053 = vmatprep.subr.bf16.mxu0 0
        %3054 = vmatpush2.bf16.msra.mxu0 0
        %3055 = vmatprep.subr.bf16.mxu0 0
        %3056 = vmatpush2.bf16.msra.mxu0 0
        %3057 = vmatprep.subr.bf16.mxu0 0
        %3058 = vmatpush2.bf16.msra.mxu0 0
        %3059 = vmatprep.subr.bf16.mxu0 0
        %3060 = vmatpush2.bf16.msra.mxu0 0
        %3061 = vmatprep.subr.bf16.mxu0 0
        %3062 = vmatpush2.bf16.msra.mxu0 0
        %3063 = vmatprep.subr.bf16.mxu0 0
        %3064 = vmatpush2.bf16.msra.mxu0 0
        %3065 = vmatprep.subr.bf16.mxu0 0
        %3066 = vmatpush2.bf16.msra.mxu0 0
        %3067 = vmatprep.mubr.bf16.mxu0 0
        %3068 = vmatmul.mubr.bf16.gmra.mxu0 %v2818
        %v3069 = vpop.f32.mrf.mxu0
        %v3070 = vadd.f32 0.0, %v3069
        %v3071 = vpop.f32.mrf.mxu0
        %v3072 = vadd.f32 0.0, %v3071
        %v3073 = vpop.f32.mrf.mxu0
        %v3074 = vadd.f32 0.0, %v3073
        %v3075 = vpop.f32.mrf.mxu0
        %v3076 = vadd.f32 0.0, %v3075
        %3077 = vdwg.mxu0
        %3078 = vmatprep.subr.bf16.mxu0 0
        %3079 = vmatpush1.bf16.msra.mxu0 0
        %3080 = vmatprep.subr.bf16.mxu0 0
        %3081 = vmatpush1.bf16.msra.mxu0 0
        %3082 = vmatprep.subr.bf16.mxu0 0
        %3083 = vmatpush1.bf16.msra.mxu0 0
        %3084 = vmatprep.subr.bf16.mxu0 0
        %3085 = vmatpush1.bf16.msra.mxu0 0
        %3086 = vmatprep.subr.bf16.mxu0 0
        %3087 = vmatpush1.bf16.msra.mxu0 0
        %3088 = vmatprep.subr.bf16.mxu0 0
        %3089 = vmatpush1.bf16.msra.mxu0 0
        %3090 = vmatprep.subr.bf16.mxu0 0
        %3091 = vmatpush1.bf16.msra.mxu0 0
        %3092 = vmatprep.subr.bf16.mxu0 %v2807
        %3093 = vmatpush1.bf16.msra.mxu0 %v2806
        %3094 = vmatprep.subr.bf16.mxu0 0
        %3095 = vmatpush2.bf16.msra.mxu0 0
        %3096 = vmatprep.subr.bf16.mxu0 0
        %3097 = vmatpush2.bf16.msra.mxu0 0
        %3098 = vmatprep.subr.bf16.mxu0 0
        %3099 = vmatpush2.bf16.msra.mxu0 0
        %3100 = vmatprep.subr.bf16.mxu0 0
        %3101 = vmatpush2.bf16.msra.mxu0 0
        %3102 = vmatprep.subr.bf16.mxu0 0
        %3103 = vmatpush2.bf16.msra.mxu0 0
        %3104 = vmatprep.subr.bf16.mxu0 0
        %3105 = vmatpush2.bf16.msra.mxu0 0
        %3106 = vmatprep.subr.bf16.mxu0 0
        %3107 = vmatpush2.bf16.msra.mxu0 0
        %3108 = vmatprep.subr.bf16.mxu0 0
        %3109 = vmatpush2.bf16.msra.mxu0 0
        %3110 = vmatprep.mubr.bf16.mxu0 0
        %3111 = vmatmul.mubr.bf16.gmra.mxu0 %v2818
        %v3112 = vpop.f32.mrf.mxu0
        %v3113 = vadd.f32 0.0, %v3112
        %v3114 = vpop.f32.mrf.mxu0
        %v3115 = vadd.f32 0.0, %v3114
        %v3116 = vpop.f32.mrf.mxu0
        %v3117 = vadd.f32 0.0, %v3116
        %v3118 = vpop.f32.mrf.mxu0
        %v3119 = vadd.f32 0.0, %v3118
        %3120 = vdwg.mxu0
        %3121 = vmatprep.subr.bf16.mxu0 0
        %3122 = vmatpush1.bf16.msra.mxu0 0
        %3123 = vmatprep.subr.bf16.mxu0 0
        %3124 = vmatpush1.bf16.msra.mxu0 0
        %3125 = vmatprep.subr.bf16.mxu0 0
        %3126 = vmatpush1.bf16.msra.mxu0 0
        %3127 = vmatprep.subr.bf16.mxu0 0
        %3128 = vmatpush1.bf16.msra.mxu0 0
        %3129 = vmatprep.subr.bf16.mxu0 0
        %3130 = vmatpush1.bf16.msra.mxu0 0
        %3131 = vmatprep.subr.bf16.mxu0 0
        %3132 = vmatpush1.bf16.msra.mxu0 0
        %3133 = vmatprep.subr.bf16.mxu0 0
        %3134 = vmatpush1.bf16.msra.mxu0 0
        %3135 = vmatprep.subr.bf16.mxu0 %v2809
        %3136 = vmatpush1.bf16.msra.mxu0 %v2808
        %3137 = vmatprep.subr.bf16.mxu0 0
        %3138 = vmatpush2.bf16.msra.mxu0 0
        %3139 = vmatprep.subr.bf16.mxu0 0
        %3140 = vmatpush2.bf16.msra.mxu0 0
        %3141 = vmatprep.subr.bf16.mxu0 0
        %3142 = vmatpush2.bf16.msra.mxu0 0
        %3143 = vmatprep.subr.bf16.mxu0 0
        %3144 = vmatpush2.bf16.msra.mxu0 0
        %3145 = vmatprep.subr.bf16.mxu0 0
        %3146 = vmatpush2.bf16.msra.mxu0 0
        %3147 = vmatprep.subr.bf16.mxu0 0
        %3148 = vmatpush2.bf16.msra.mxu0 0
        %3149 = vmatprep.subr.bf16.mxu0 0
        %3150 = vmatpush2.bf16.msra.mxu0 0
        %3151 = vmatprep.subr.bf16.mxu0 0
        %3152 = vmatpush2.bf16.msra.mxu0 0
        %3153 = vmatprep.mubr.bf16.mxu0 0
        %3154 = vmatmul.mubr.bf16.gmra.mxu0 %v2818
        %v3155 = vpop.f32.mrf.mxu0
        %v3156 = vadd.f32 0.0, %v3155
        %v3157 = vpop.f32.mrf.mxu0
        %v3158 = vadd.f32 0.0, %v3157
        %v3159 = vpop.f32.mrf.mxu0
        %v3160 = vadd.f32 0.0, %v3159
        %v3161 = vpop.f32.mrf.mxu0
        %v3162 = vadd.f32 0.0, %v3161
        %3163 = vdwg.mxu0
        %3164 = vmatprep.subr.bf16.mxu0 0
        %3165 = vmatpush1.bf16.msra.mxu0 0
        %3166 = vmatprep.subr.bf16.mxu0 0
        %3167 = vmatpush1.bf16.msra.mxu0 0
        %3168 = vmatprep.subr.bf16.mxu0 0
        %3169 = vmatpush1.bf16.msra.mxu0 0
        %3170 = vmatprep.subr.bf16.mxu0 0
        %3171 = vmatpush1.bf16.msra.mxu0 0
        %3172 = vmatprep.subr.bf16.mxu0 0
        %3173 = vmatpush1.bf16.msra.mxu0 0
        %3174 = vmatprep.subr.bf16.mxu0 0
        %3175 = vmatpush1.bf16.msra.mxu0 0
        %3176 = vmatprep.subr.bf16.mxu0 0
        %3177 = vmatpush1.bf16.msra.mxu0 0
        %3178 = vmatprep.subr.bf16.mxu0 %v2811
        %3179 = vmatpush1.bf16.msra.mxu0 %v2810
        %3180 = vmatprep.subr.bf16.mxu0 0
        %3181 = vmatpush2.bf16.msra.mxu0 0
        %3182 = vmatprep.subr.bf16.mxu0 0
        %3183 = vmatpush2.bf16.msra.mxu0 0
        %3184 = vmatprep.subr.bf16.mxu0 0
        %3185 = vmatpush2.bf16.msra.mxu0 0
        %3186 = vmatprep.subr.bf16.mxu0 0
        %3187 = vmatpush2.bf16.msra.mxu0 0
        %3188 = vmatprep.subr.bf16.mxu0 0
        %3189 = vmatpush2.bf16.msra.mxu0 0
        %3190 = vmatprep.subr.bf16.mxu0 0
        %3191 = vmatpush2.bf16.msra.mxu0 0
        %3192 = vmatprep.subr.bf16.mxu0 0
        %3193 = vmatpush2.bf16.msra.mxu0 0
        %3194 = vmatprep.subr.bf16.mxu0 0
        %3195 = vmatpush2.bf16.msra.mxu0 0
        %3196 = vmatprep.mubr.bf16.mxu0 0
        %3197 = vmatmul.mubr.bf16.gmra.mxu0 %v2818
        %v3198 = vpop.f32.mrf.mxu0
        %v3199 = vadd.f32 0.0, %v3198
        %v3200 = vpop.f32.mrf.mxu0
        %v3201 = vadd.f32 0.0, %v3200
        %v3202 = vpop.f32.mrf.mxu0
        %v3203 = vadd.f32 0.0, %v3202
        %v3204 = vpop.f32.mrf.mxu0
        %v3205 = vadd.f32 0.0, %v3204
        %3206 = vdwg.mxu0
        %v3207 = vmul.f32 %v2855, %v2452
        %v3208 = vmul.f32 %v2857, %v2453
        %v3209 = vmul.f32 %v2898, %v2454
        %v3210 = vmul.f32 %v2900, %v2455
        %v3211 = vmul.f32 %v2941, %v2456
        %v3212 = vmul.f32 %v2943, %v2457
        %v3213 = vmul.f32 %v2984, %v2458
        %v3214 = vmul.f32 %v2986, %v2459
        %v3215 = vmul.f32 %v3027, %v2460
        %v3216 = vmul.f32 %v3029, %v2461
        %v3217 = vmul.f32 %v3070, %v2462
        %v3218 = vmul.f32 %v3072, %v2463
        %v3219 = vmul.f32 %v3113, %v2464
        %v3220 = vmul.f32 %v3115, %v2465
        %v3221 = vmul.f32 %v3156, %v2466
        %v3222 = vmul.f32 %v3158, %v2467
        %v3223 = vmul.f32 %v3199, %v2468
        %v3224 = vmul.f32 %v3201, %v2469
        %v3225 = vmul.f32 %v2859, %v2470
        %v3226 = vmul.f32 %v2861, %v2471
        %v3227 = vmul.f32 %v2902, %v2472
        %v3228 = vmul.f32 %v2904, %v2473
        %v3229 = vmul.f32 %v2945, %v2474
        %v3230 = vmul.f32 %v2947, %v2475
        %v3231 = vmul.f32 %v2988, %v2476
        %v3232 = vmul.f32 %v2990, %v2477
        %v3233 = vmul.f32 %v3031, %v2478
        %v3234 = vmul.f32 %v3033, %v2479
        %v3235 = vmul.f32 %v3074, %v2480
        %v3236 = vmul.f32 %v3076, %v2481
        %v3237 = vmul.f32 %v3117, %v2482
        %v3238 = vmul.f32 %v3119, %v2483
        %v3239 = vmul.f32 %v3160, %v2484
        %v3240 = vmul.f32 %v3162, %v2485
        %v3241 = vmul.f32 %v3203, %v2486
        %v3242 = vmul.f32 %v3205, %v2487
        %v3243 = vadd.f32 %v3207, %v3225
        %v3244 = vrot.slane %v3243, 4
        %v3245 = vadd.f32 %v3243, %v3244
        %v3246 = vrot.slane %v3245, 2
        %v3247 = vadd.f32 %v3245, %v3246
        %v3248 = vrot.slane %v3247, 1
        %v3249 = vadd.f32 %v3247, %v3248
        %v3250 = vadd.f32 %v3208, %v3226
        %v3251 = vrot.slane %v3250, 4
        %v3252 = vadd.f32 %v3250, %v3251
        %v3253 = vrot.slane %v3252, 2
        %v3254 = vadd.f32 %v3252, %v3253
        %v3255 = vrot.slane %v3254, 1
        %v3256 = vadd.f32 %v3254, %v3255
        %v3257 = vadd.f32 %v3209, %v3227
        %v3258 = vrot.slane %v3257, 4
        %v3259 = vadd.f32 %v3257, %v3258
        %v3260 = vrot.slane %v3259, 2
        %v3261 = vadd.f32 %v3259, %v3260
        %v3262 = vrot.slane %v3261, 1
        %v3263 = vadd.f32 %v3261, %v3262
        %v3264 = vadd.f32 %v3210, %v3228
        %v3265 = vrot.slane %v3264, 4
        %v3266 = vadd.f32 %v3264, %v3265
        %v3267 = vrot.slane %v3266, 2
        %v3268 = vadd.f32 %v3266, %v3267
        %v3269 = vrot.slane %v3268, 1
        %v3270 = vadd.f32 %v3268, %v3269
        %v3271 = vadd.f32 %v3211, %v3229
        %v3272 = vrot.slane %v3271, 4
        %v3273 = vadd.f32 %v3271, %v3272
        %v3274 = vrot.slane %v3273, 2
        %v3275 = vadd.f32 %v3273, %v3274
        %v3276 = vrot.slane %v3275, 1
        %v3277 = vadd.f32 %v3275, %v3276
        %v3278 = vadd.f32 %v3212, %v3230
        %v3279 = vrot.slane %v3278, 4
        %v3280 = vadd.f32 %v3278, %v3279
        %v3281 = vrot.slane %v3280, 2
        %v3282 = vadd.f32 %v3280, %v3281
        %v3283 = vrot.slane %v3282, 1
        %v3284 = vadd.f32 %v3282, %v3283
        %v3285 = vadd.f32 %v3213, %v3231
        %v3286 = vrot.slane %v3285, 4
        %v3287 = vadd.f32 %v3285, %v3286
        %v3288 = vrot.slane %v3287, 2
        %v3289 = vadd.f32 %v3287, %v3288
        %v3290 = vrot.slane %v3289, 1
        %v3291 = vadd.f32 %v3289, %v3290
        %v3292 = vadd.f32 %v3214, %v3232
        %v3293 = vrot.slane %v3292, 4
        %v3294 = vadd.f32 %v3292, %v3293
        %v3295 = vrot.slane %v3294, 2
        %v3296 = vadd.f32 %v3294, %v3295
        %v3297 = vrot.slane %v3296, 1
        %v3298 = vadd.f32 %v3296, %v3297
        %v3299 = vadd.f32 %v3215, %v3233
        %v3300 = vrot.slane %v3299, 4
        %v3301 = vadd.f32 %v3299, %v3300
        %v3302 = vrot.slane %v3301, 2
        %v3303 = vadd.f32 %v3301, %v3302
        %v3304 = vrot.slane %v3303, 1
        %v3305 = vadd.f32 %v3303, %v3304
        %v3306 = vadd.f32 %v3216, %v3234
        %v3307 = vrot.slane %v3306, 4
        %v3308 = vadd.f32 %v3306, %v3307
        %v3309 = vrot.slane %v3308, 2
        %v3310 = vadd.f32 %v3308, %v3309
        %v3311 = vrot.slane %v3310, 1
        %v3312 = vadd.f32 %v3310, %v3311
        %v3313 = vadd.f32 %v3217, %v3235
        %v3314 = vrot.slane %v3313, 4
        %v3315 = vadd.f32 %v3313, %v3314
        %v3316 = vrot.slane %v3315, 2
        %v3317 = vadd.f32 %v3315, %v3316
        %v3318 = vrot.slane %v3317, 1
        %v3319 = vadd.f32 %v3317, %v3318
        %v3320 = vadd.f32 %v3218, %v3236
        %v3321 = vrot.slane %v3320, 4
        %v3322 = vadd.f32 %v3320, %v3321
        %v3323 = vrot.slane %v3322, 2
        %v3324 = vadd.f32 %v3322, %v3323
        %v3325 = vrot.slane %v3324, 1
        %v3326 = vadd.f32 %v3324, %v3325
        %v3327 = vadd.f32 %v3219, %v3237
        %v3328 = vrot.slane %v3327, 4
        %v3329 = vadd.f32 %v3327, %v3328
        %v3330 = vrot.slane %v3329, 2
        %v3331 = vadd.f32 %v3329, %v3330
        %v3332 = vrot.slane %v3331, 1
        %v3333 = vadd.f32 %v3331, %v3332
        %v3334 = vadd.f32 %v3220, %v3238
        %v3335 = vrot.slane %v3334, 4
        %v3336 = vadd.f32 %v3334, %v3335
        %v3337 = vrot.slane %v3336, 2
        %v3338 = vadd.f32 %v3336, %v3337
        %v3339 = vrot.slane %v3338, 1
        %v3340 = vadd.f32 %v3338, %v3339
        %v3341 = vadd.f32 %v3221, %v3239
        %v3342 = vrot.slane %v3341, 4
        %v3343 = vadd.f32 %v3341, %v3342
        %v3344 = vrot.slane %v3343, 2
        %v3345 = vadd.f32 %v3343, %v3344
        %v3346 = vrot.slane %v3345, 1
        %v3347 = vadd.f32 %v3345, %v3346
        %v3348 = vadd.f32 %v3222, %v3240
        %v3349 = vrot.slane %v3348, 4
        %v3350 = vadd.f32 %v3348, %v3349
        %v3351 = vrot.slane %v3350, 2
        %v3352 = vadd.f32 %v3350, %v3351
        %v3353 = vrot.slane %v3352, 1
        %v3354 = vadd.f32 %v3352, %v3353
        %v3355 = vadd.f32 %v3223, %v3241
        %v3356 = vrot.slane %v3355, 4
        %v3357 = vadd.f32 %v3355, %v3356
        %v3358 = vrot.slane %v3357, 2
        %v3359 = vadd.f32 %v3357, %v3358
        %v3360 = vrot.slane %v3359, 1
        %v3361 = vadd.f32 %v3359, %v3360
        %v3362 = vadd.f32 %v3224, %v3242
        %v3363 = vrot.slane %v3362, 4
        %v3364 = vadd.f32 %v3362, %v3363
        %v3365 = vrot.slane %v3364, 2
        %v3366 = vadd.f32 %v3364, %v3365
        %v3367 = vrot.slane %v3366, 1
        %v3368 = vadd.f32 %v3366, %v3367
        %v3371 = vcombine.low %v3249, %v3256
        %v3373 = vunpack.c.l.s4 1966171168
        %v3374 = vunpack.c.0.s8 %v3373
        %v3375 = vlaneseq
        %v3376 = vshrl.u32 %v3375, 7
        %v3377 = vsub.s32 %v3374, %v3376
        %v3378 = vrot.slane %v3371, %v3377
        %v3380 = vunpack.c.l.s4 1966171168
        %v3381 = vunpack.c.0.s8 %v3380
        %v3382 = vlaneseq
        %v3383 = vshrl.u32 %v3382, 7
        %v3384 = vsub.s32 %v3381, %v3383
        %v3385 = vrot.slane %v3378, %v3384
        %s3387 = scalar_lea.vmem [#allocation2], 17
        %3388 = vst.msk [vmem:[%s3387] ss:$8 sm:$0x3] %vm2011, %v3385
        %3389 = vst.msk [vmem:[%s3387] ss:$8 sm:$0x0] %vm2011, %v3385
        %v3392 = vcombine.low %v3263, %v3270
        %v3394 = vunpack.c.l.s4 1966171168
        %v3395 = vunpack.c.0.s8 %v3394
        %v3396 = vlaneseq
        %v3397 = vshrl.u32 %v3396, 7
        %v3398 = vsub.s32 %v3395, %v3397
        %v3399 = vrot.slane %v3392, %v3398
        %v3401 = vunpack.c.l.s4 1966171168
        %v3402 = vunpack.c.0.s8 %v3401
        %v3403 = vlaneseq
        %v3404 = vshrl.u32 %v3403, 7
        %v3405 = vsub.s32 %v3402, %v3404
        %v3406 = vrot.slane %v3399, %v3405
        %s3408 = scalar_lea.vmem [#allocation2], 18
        %3409 = vst.msk [vmem:[%s3408] ss:$8 sm:$0x3] %vm2011, %v3406
        %3410 = vst.msk [vmem:[%s3408] ss:$8 sm:$0x0] %vm2011, %v3406
        %v3413 = vcombine.low %v3277, %v3284
        %v3415 = vunpack.c.l.s4 1966171168
        %v3416 = vunpack.c.0.s8 %v3415
        %v3417 = vlaneseq
        %v3418 = vshrl.u32 %v3417, 7
        %v3419 = vsub.s32 %v3416, %v3418
        %v3420 = vrot.slane %v3413, %v3419
        %v3422 = vunpack.c.l.s4 1966171168
        %v3423 = vunpack.c.0.s8 %v3422
        %v3424 = vlaneseq
        %v3425 = vshrl.u32 %v3424, 7
        %v3426 = vsub.s32 %v3423, %v3425
        %v3427 = vrot.slane %v3420, %v3426
        %s3429 = scalar_lea.vmem [#allocation2], 19
        %3430 = vst.msk [vmem:[%s3429] ss:$8 sm:$0x3] %vm2011, %v3427
        %3431 = vst.msk [vmem:[%s3429] ss:$8 sm:$0x0] %vm2011, %v3427
        %v3434 = vcombine.low %v3291, %v3298
        %v3436 = vunpack.c.l.s4 1966171168
        %v3437 = vunpack.c.0.s8 %v3436
        %v3438 = vlaneseq
        %v3439 = vshrl.u32 %v3438, 7
        %v3440 = vsub.s32 %v3437, %v3439
        %v3441 = vrot.slane %v3434, %v3440
        %v3443 = vunpack.c.l.s4 1966171168
        %v3444 = vunpack.c.0.s8 %v3443
        %v3445 = vlaneseq
        %v3446 = vshrl.u32 %v3445, 7
        %v3447 = vsub.s32 %v3444, %v3446
        %v3448 = vrot.slane %v3441, %v3447
        %s3450 = scalar_lea.vmem [#allocation2], 20
        %3451 = vst.msk [vmem:[%s3450] ss:$8 sm:$0x3] %vm2011, %v3448
        %3452 = vst.msk [vmem:[%s3450] ss:$8 sm:$0x0] %vm2011, %v3448
        %v3455 = vcombine.low %v3305, %v3312
        %v3457 = vunpack.c.l.s4 1966171168
        %v3458 = vunpack.c.0.s8 %v3457
        %v3459 = vlaneseq
        %v3460 = vshrl.u32 %v3459, 7
        %v3461 = vsub.s32 %v3458, %v3460
        %v3462 = vrot.slane %v3455, %v3461
        %v3464 = vunpack.c.l.s4 1966171168
        %v3465 = vunpack.c.0.s8 %v3464
        %v3466 = vlaneseq
        %v3467 = vshrl.u32 %v3466, 7
        %v3468 = vsub.s32 %v3465, %v3467
        %v3469 = vrot.slane %v3462, %v3468
        %s3471 = scalar_lea.vmem [#allocation2], 21
        %3472 = vst.msk [vmem:[%s3471] ss:$8 sm:$0x3] %vm2011, %v3469
        %3473 = vst.msk [vmem:[%s3471] ss:$8 sm:$0x0] %vm2011, %v3469
        %v3476 = vcombine.low %v3319, %v3326
        %v3478 = vunpack.c.l.s4 1966171168
        %v3479 = vunpack.c.0.s8 %v3478
        %v3480 = vlaneseq
        %v3481 = vshrl.u32 %v3480, 7
        %v3482 = vsub.s32 %v3479, %v3481
        %v3483 = vrot.slane %v3476, %v3482
        %v3485 = vunpack.c.l.s4 1966171168
        %v3486 = vunpack.c.0.s8 %v3485
        %v3487 = vlaneseq
        %v3488 = vshrl.u32 %v3487, 7
        %v3489 = vsub.s32 %v3486, %v3488
        %v3490 = vrot.slane %v3483, %v3489
        %s3492 = scalar_lea.vmem [#allocation2], 22
        %3493 = vst.msk [vmem:[%s3492] ss:$8 sm:$0x3] %vm2011, %v3490
        %3494 = vst.msk [vmem:[%s3492] ss:$8 sm:$0x0] %vm2011, %v3490
        %v3497 = vcombine.low %v3333, %v3340
        %v3499 = vunpack.c.l.s4 1966171168
        %v3500 = vunpack.c.0.s8 %v3499
        %v3501 = vlaneseq
        %v3502 = vshrl.u32 %v3501, 7
        %v3503 = vsub.s32 %v3500, %v3502
        %v3504 = vrot.slane %v3497, %v3503
        %v3506 = vunpack.c.l.s4 1966171168
        %v3507 = vunpack.c.0.s8 %v3506
        %v3508 = vlaneseq
        %v3509 = vshrl.u32 %v3508, 7
        %v3510 = vsub.s32 %v3507, %v3509
        %v3511 = vrot.slane %v3504, %v3510
        %s3513 = scalar_lea.vmem [#allocation2], 23
        %3514 = vst.msk [vmem:[%s3513] ss:$8 sm:$0x3] %vm2011, %v3511
        %3515 = vst.msk [vmem:[%s3513] ss:$8 sm:$0x0] %vm2011, %v3511
        %v3518 = vcombine.low %v3347, %v3354
        %v3520 = vunpack.c.l.s4 1966171168
        %v3521 = vunpack.c.0.s8 %v3520
        %v3522 = vlaneseq
        %v3523 = vshrl.u32 %v3522, 7
        %v3524 = vsub.s32 %v3521, %v3523
        %v3525 = vrot.slane %v3518, %v3524
        %v3527 = vunpack.c.l.s4 1966171168
        %v3528 = vunpack.c.0.s8 %v3527
        %v3529 = vlaneseq
        %v3530 = vshrl.u32 %v3529, 7
        %v3531 = vsub.s32 %v3528, %v3530
        %v3532 = vrot.slane %v3525, %v3531
        %s3534 = scalar_lea.vmem [#allocation2], 32
        %3535 = vst.msk [vmem:[%s3534] ss:$8 sm:$0x3] %vm2011, %v3532
        %3536 = vst.msk [vmem:[%s3534] ss:$8 sm:$0x0] %vm2011, %v3532
        %v3539 = vcombine.low %v3361, %v3368
        %v3541 = vunpack.c.l.s4 1966171168
        %v3542 = vunpack.c.0.s8 %v3541
        %v3543 = vlaneseq
        %v3544 = vshrl.u32 %v3543, 7
        %v3545 = vsub.s32 %v3542, %v3544
        %v3546 = vrot.slane %v3539, %v3545
        %v3548 = vunpack.c.l.s4 1966171168
        %v3549 = vunpack.c.0.s8 %v3548
        %v3550 = vlaneseq
        %v3551 = vshrl.u32 %v3550, 7
        %v3552 = vsub.s32 %v3549, %v3551
        %v3553 = vrot.slane %v3546, %v3552
        %s3555 = scalar_lea.vmem [#allocation2], 33
        %3556 = vst.msk [vmem:[%s3555] ss:$8 sm:$0x3] %vm2011, %v3553
        %3557 = vst.msk [vmem:[%s3555] ss:$8 sm:$0x0] %vm2011, %v3553
        %v3558 = vlaneseq
        %v3559 = vshrl.u32 %v3558, 7
        %v3560 = vsub.s32 2, %v3559
        %v3561 = vrot.slane %v726, %v3560
        %v3562 = vlaneseq
        %v3563 = vshrl.u32 %v3562, 7
        %v3564 = vsub.s32 6, %v3563
        %v3565 = vrot.slane %v726, %v3564
        %v3566 = vlaneseq
        %v3567 = vshrl.u32 %v3566, 7
        %v3568 = vsub.s32 2, %v3567
        %v3569 = vrot.slane %v727, %v3568
        %v3570 = vlaneseq
        %v3571 = vshrl.u32 %v3570, 7
        %v3572 = vsub.s32 6, %v3571
        %v3573 = vrot.slane %v727, %v3572
        %v3574 = vlaneseq
        %v3575 = vshrl.u32 %v3574, 7
        %v3576 = vsub.s32 2, %v3575
        %v3577 = vrot.slane %v728, %v3576
        %v3578 = vlaneseq
        %v3579 = vshrl.u32 %v3578, 7
        %v3580 = vsub.s32 6, %v3579
        %v3581 = vrot.slane %v728, %v3580
        %v3582 = vlaneseq
        %v3583 = vshrl.u32 %v3582, 7
        %v3584 = vsub.s32 2, %v3583
        %v3585 = vrot.slane %v729, %v3584
        %v3586 = vlaneseq
        %v3587 = vshrl.u32 %v3586, 7
        %v3588 = vsub.s32 6, %v3587
        %v3589 = vrot.slane %v729, %v3588
        %v3590 = vlaneseq
        %v3591 = vshrl.u32 %v3590, 7
        %v3592 = vsub.s32 2, %v3591
        %v3593 = vrot.slane %v730, %v3592
        %v3594 = vlaneseq
        %v3595 = vshrl.u32 %v3594, 7
        %v3596 = vsub.s32 6, %v3595
        %v3597 = vrot.slane %v730, %v3596
        %v3598 = vlaneseq
        %v3599 = vshrl.u32 %v3598, 7
        %v3600 = vsub.s32 2, %v3599
        %v3601 = vrot.slane %v731, %v3600
        %v3602 = vlaneseq
        %v3603 = vshrl.u32 %v3602, 7
        %v3604 = vsub.s32 6, %v3603
        %v3605 = vrot.slane %v731, %v3604
        %v3606 = vlaneseq
        %v3607 = vshrl.u32 %v3606, 7
        %v3608 = vsub.s32 2, %v3607
        %v3609 = vrot.slane %v732, %v3608
        %v3610 = vlaneseq
        %v3611 = vshrl.u32 %v3610, 7
        %v3612 = vsub.s32 6, %v3611
        %v3613 = vrot.slane %v732, %v3612
        %v3614 = vlaneseq
        %v3615 = vshrl.u32 %v3614, 7
        %v3616 = vsub.s32 2, %v3615
        %v3617 = vrot.slane %v733, %v3616
        %v3618 = vlaneseq
        %v3619 = vshrl.u32 %v3618, 7
        %v3620 = vsub.s32 6, %v3619
        %v3621 = vrot.slane %v733, %v3620
        %v3622 = vlaneseq
        %v3623 = vshrl.u32 %v3622, 7
        %v3624 = vsub.s32 2, %v3623
        %v3625 = vrot.slane %v734, %v3624
        %v3626 = vlaneseq
        %v3627 = vshrl.u32 %v3626, 7
        %v3628 = vsub.s32 6, %v3627
        %v3629 = vrot.slane %v734, %v3628
        %v3648 = vlaneseq
        %v3649 = vshrl.u32 %v3648, 7
        %v3650 = vsub.s32 2, %v3649
        %v3651 = vrot.slane %v3561, %v3650
        %v3652 = vlaneseq
        %v3653 = vshrl.u32 %v3652, 7
        %v3654 = vsub.s32 2, %v3653
        %v3655 = vrot.slane %v3565, %v3654
        %v3656 = vlaneseq
        %v3657 = vshrl.u32 %v3656, 7
        %v3658 = vsub.s32 2, %v3657
        %v3659 = vrot.slane %v3569, %v3658
        %v3660 = vlaneseq
        %v3661 = vshrl.u32 %v3660, 7
        %v3662 = vsub.s32 2, %v3661
        %v3663 = vrot.slane %v3573, %v3662
        %v3664 = vlaneseq
        %v3665 = vshrl.u32 %v3664, 7
        %v3666 = vsub.s32 2, %v3665
        %v3667 = vrot.slane %v3577, %v3666
        %v3668 = vlaneseq
        %v3669 = vshrl.u32 %v3668, 7
        %v3670 = vsub.s32 2, %v3669
        %v3671 = vrot.slane %v3581, %v3670
        %v3672 = vlaneseq
        %v3673 = vshrl.u32 %v3672, 7
        %v3674 = vsub.s32 2, %v3673
        %v3675 = vrot.slane %v3585, %v3674
        %v3676 = vlaneseq
        %v3677 = vshrl.u32 %v3676, 7
        %v3678 = vsub.s32 2, %v3677
        %v3679 = vrot.slane %v3589, %v3678
        %v3680 = vlaneseq
        %v3681 = vshrl.u32 %v3680, 7
        %v3682 = vsub.s32 2, %v3681
        %v3683 = vrot.slane %v3593, %v3682
        %v3684 = vlaneseq
        %v3685 = vshrl.u32 %v3684, 7
        %v3686 = vsub.s32 2, %v3685
        %v3687 = vrot.slane %v3597, %v3686
        %v3688 = vlaneseq
        %v3689 = vshrl.u32 %v3688, 7
        %v3690 = vsub.s32 2, %v3689
        %v3691 = vrot.slane %v3601, %v3690
        %v3692 = vlaneseq
        %v3693 = vshrl.u32 %v3692, 7
        %v3694 = vsub.s32 2, %v3693
        %v3695 = vrot.slane %v3605, %v3694
        %v3696 = vlaneseq
        %v3697 = vshrl.u32 %v3696, 7
        %v3698 = vsub.s32 2, %v3697
        %v3699 = vrot.slane %v3609, %v3698
        %v3700 = vlaneseq
        %v3701 = vshrl.u32 %v3700, 7
        %v3702 = vsub.s32 2, %v3701
        %v3703 = vrot.slane %v3613, %v3702
        %v3704 = vlaneseq
        %v3705 = vshrl.u32 %v3704, 7
        %v3706 = vsub.s32 2, %v3705
        %v3707 = vrot.slane %v3617, %v3706
        %v3708 = vlaneseq
        %v3709 = vshrl.u32 %v3708, 7
        %v3710 = vsub.s32 2, %v3709
        %v3711 = vrot.slane %v3621, %v3710
        %v3712 = vlaneseq
        %v3713 = vshrl.u32 %v3712, 7
        %v3714 = vsub.s32 2, %v3713
        %v3715 = vrot.slane %v3625, %v3714
        %v3716 = vlaneseq
        %v3717 = vshrl.u32 %v3716, 7
        %v3718 = vsub.s32 2, %v3717
        %v3719 = vrot.slane %v3629, %v3718
        %v3720 = vsub.f32 %v3651, %v774
        %v3721 = vsub.f32 %v3655, %v774
        %v3722 = vsub.f32 %v3659, %v774
        %v3723 = vsub.f32 %v3663, %v774
        %v3724 = vsub.f32 %v3667, %v774
        %v3725 = vsub.f32 %v3671, %v774
        %v3726 = vsub.f32 %v3675, %v774
        %v3727 = vsub.f32 %v3679, %v774
        %v3728 = vsub.f32 %v3683, %v774
        %v3729 = vsub.f32 %v3687, %v774
        %v3730 = vsub.f32 %v3691, %v774
        %v3731 = vsub.f32 %v3695, %v774
        %v3732 = vsub.f32 %v3699, %v774
        %v3733 = vsub.f32 %v3703, %v774
        %v3734 = vsub.f32 %v3707, %v774
        %v3735 = vsub.f32 %v3711, %v774
        %v3736 = vsub.f32 %v3715, %v774
        %v3737 = vsub.f32 %v3719, %v774
        %v3738 = vsub.f32 %v3651, %v775
        %v3739 = vsub.f32 %v3655, %v775
        %v3740 = vsub.f32 %v3659, %v775
        %v3741 = vsub.f32 %v3663, %v775
        %v3742 = vsub.f32 %v3667, %v775
        %v3743 = vsub.f32 %v3671, %v775
        %v3744 = vsub.f32 %v3675, %v775
        %v3745 = vsub.f32 %v3679, %v775
        %v3746 = vsub.f32 %v3683, %v775
        %v3747 = vsub.f32 %v3687, %v775
        %v3748 = vsub.f32 %v3691, %v775
        %v3749 = vsub.f32 %v3695, %v775
        %v3750 = vsub.f32 %v3699, %v775
        %v3751 = vsub.f32 %v3703, %v775
        %v3752 = vsub.f32 %v3707, %v775
        %v3753 = vsub.f32 %v3711, %v775
        %v3754 = vsub.f32 %v3715, %v775
        %v3755 = vsub.f32 %v3719, %v775
        %v3756 = vand.u32 2147483647, %v3720
        %v3757 = vand.u32 2147483647, %v3721
        %v3758 = vand.u32 2147483647, %v3722
        %v3759 = vand.u32 2147483647, %v3723
        %v3760 = vand.u32 2147483647, %v3724
        %v3761 = vand.u32 2147483647, %v3725
        %v3762 = vand.u32 2147483647, %v3726
        %v3763 = vand.u32 2147483647, %v3727
        %v3764 = vand.u32 2147483647, %v3728
        %v3765 = vand.u32 2147483647, %v3729
        %v3766 = vand.u32 2147483647, %v3730
        %v3767 = vand.u32 2147483647, %v3731
        %v3768 = vand.u32 2147483647, %v3732
        %v3769 = vand.u32 2147483647, %v3733
        %v3770 = vand.u32 2147483647, %v3734
        %v3771 = vand.u32 2147483647, %v3735
        %v3772 = vand.u32 2147483647, %v3736
        %v3773 = vand.u32 2147483647, %v3737
        %v3774 = vand.u32 2147483647, %v3738
        %v3775 = vand.u32 2147483647, %v3739
        %v3776 = vand.u32 2147483647, %v3740
        %v3777 = vand.u32 2147483647, %v3741
        %v3778 = vand.u32 2147483647, %v3742
        %v3779 = vand.u32 2147483647, %v3743
        %v3780 = vand.u32 2147483647, %v3744
        %v3781 = vand.u32 2147483647, %v3745
        %v3782 = vand.u32 2147483647, %v3746
        %v3783 = vand.u32 2147483647, %v3747
        %v3784 = vand.u32 2147483647, %v3748
        %v3785 = vand.u32 2147483647, %v3749
        %v3786 = vand.u32 2147483647, %v3750
        %v3787 = vand.u32 2147483647, %v3751
        %v3788 = vand.u32 2147483647, %v3752
        %v3789 = vand.u32 2147483647, %v3753
        %v3790 = vand.u32 2147483647, %v3754
        %v3791 = vand.u32 2147483647, %v3755
        %v3792 = vsub.f32 1.0, %v3756
        %v3793 = vsub.f32 1.0, %v3757
        %v3794 = vsub.f32 1.0, %v3758
        %v3795 = vsub.f32 1.0, %v3759
        %v3796 = vsub.f32 1.0, %v3760
        %v3797 = vsub.f32 1.0, %v3761
        %v3798 = vsub.f32 1.0, %v3762
        %v3799 = vsub.f32 1.0, %v3763
        %v3800 = vsub.f32 1.0, %v3764
        %v3801 = vsub.f32 1.0, %v3765
        %v3802 = vsub.f32 1.0, %v3766
        %v3803 = vsub.f32 1.0, %v3767
        %v3804 = vsub.f32 1.0, %v3768
        %v3805 = vsub.f32 1.0, %v3769
        %v3806 = vsub.f32 1.0, %v3770
        %v3807 = vsub.f32 1.0, %v3771
        %v3808 = vsub.f32 1.0, %v3772
        %v3809 = vsub.f32 1.0, %v3773
        %v3810 = vsub.f32 1.0, %v3774
        %v3811 = vsub.f32 1.0, %v3775
        %v3812 = vsub.f32 1.0, %v3776
        %v3813 = vsub.f32 1.0, %v3777
        %v3814 = vsub.f32 1.0, %v3778
        %v3815 = vsub.f32 1.0, %v3779
        %v3816 = vsub.f32 1.0, %v3780
        %v3817 = vsub.f32 1.0, %v3781
        %v3818 = vsub.f32 1.0, %v3782
        %v3819 = vsub.f32 1.0, %v3783
        %v3820 = vsub.f32 1.0, %v3784
        %v3821 = vsub.f32 1.0, %v3785
        %v3822 = vsub.f32 1.0, %v3786
        %v3823 = vsub.f32 1.0, %v3787
        %v3824 = vsub.f32 1.0, %v3788
        %v3825 = vsub.f32 1.0, %v3789
        %v3826 = vsub.f32 1.0, %v3790
        %v3827 = vsub.f32 1.0, %v3791
        %v3828 = vmax.f32 %v3792, 0.0
        %v3829 = vmax.f32 %v3793, 0.0
        %v3830 = vmax.f32 %v3794, 0.0
        %v3831 = vmax.f32 %v3795, 0.0
        %v3832 = vmax.f32 %v3796, 0.0
        %v3833 = vmax.f32 %v3797, 0.0
        %v3834 = vmax.f32 %v3798, 0.0
        %v3835 = vmax.f32 %v3799, 0.0
        %v3836 = vmax.f32 %v3800, 0.0
        %v3837 = vmax.f32 %v3801, 0.0
        %v3838 = vmax.f32 %v3802, 0.0
        %v3839 = vmax.f32 %v3803, 0.0
        %v3840 = vmax.f32 %v3804, 0.0
        %v3841 = vmax.f32 %v3805, 0.0
        %v3842 = vmax.f32 %v3806, 0.0
        %v3843 = vmax.f32 %v3807, 0.0
        %v3844 = vmax.f32 %v3808, 0.0
        %v3845 = vmax.f32 %v3809, 0.0
        %v3846 = vmax.f32 %v3810, 0.0
        %v3847 = vmax.f32 %v3811, 0.0
        %v3848 = vmax.f32 %v3812, 0.0
        %v3849 = vmax.f32 %v3813, 0.0
        %v3850 = vmax.f32 %v3814, 0.0
        %v3851 = vmax.f32 %v3815, 0.0
        %v3852 = vmax.f32 %v3816, 0.0
        %v3853 = vmax.f32 %v3817, 0.0
        %v3854 = vmax.f32 %v3818, 0.0
        %v3855 = vmax.f32 %v3819, 0.0
        %v3856 = vmax.f32 %v3820, 0.0
        %v3857 = vmax.f32 %v3821, 0.0
        %v3858 = vmax.f32 %v3822, 0.0
        %v3859 = vmax.f32 %v3823, 0.0
        %v3860 = vmax.f32 %v3824, 0.0
        %v3861 = vmax.f32 %v3825, 0.0
        %v3862 = vmax.f32 %v3826, 0.0
        %v3863 = vmax.f32 %v3827, 0.0
        %v3864 = vlaneseq
        %v3865 = vshrl.u32 %v3864, 7
        %v3866 = vsub.s32 2, %v3865
        %v3867 = vrot.slane %v762, %v3866
        %v3868 = vlaneseq
        %v3869 = vshrl.u32 %v3868, 7
        %v3870 = vsub.s32 6, %v3869
        %v3871 = vrot.slane %v762, %v3870
        %v3872 = vlaneseq
        %v3873 = vshrl.u32 %v3872, 7
        %v3874 = vsub.s32 2, %v3873
        %v3875 = vrot.slane %v763, %v3874
        %v3876 = vlaneseq
        %v3877 = vshrl.u32 %v3876, 7
        %v3878 = vsub.s32 6, %v3877
        %v3879 = vrot.slane %v763, %v3878
        %v3880 = vlaneseq
        %v3881 = vshrl.u32 %v3880, 7
        %v3882 = vsub.s32 2, %v3881
        %v3883 = vrot.slane %v764, %v3882
        %v3884 = vlaneseq
        %v3885 = vshrl.u32 %v3884, 7
        %v3886 = vsub.s32 6, %v3885
        %v3887 = vrot.slane %v764, %v3886
        %v3888 = vlaneseq
        %v3889 = vshrl.u32 %v3888, 7
        %v3890 = vsub.s32 2, %v3889
        %v3891 = vrot.slane %v765, %v3890
        %v3892 = vlaneseq
        %v3893 = vshrl.u32 %v3892, 7
        %v3894 = vsub.s32 6, %v3893
        %v3895 = vrot.slane %v765, %v3894
        %v3896 = vlaneseq
        %v3897 = vshrl.u32 %v3896, 7
        %v3898 = vsub.s32 2, %v3897
        %v3899 = vrot.slane %v766, %v3898
        %v3900 = vlaneseq
        %v3901 = vshrl.u32 %v3900, 7
        %v3902 = vsub.s32 6, %v3901
        %v3903 = vrot.slane %v766, %v3902
        %v3904 = vlaneseq
        %v3905 = vshrl.u32 %v3904, 7
        %v3906 = vsub.s32 2, %v3905
        %v3907 = vrot.slane %v767, %v3906
        %v3908 = vlaneseq
        %v3909 = vshrl.u32 %v3908, 7
        %v3910 = vsub.s32 6, %v3909
        %v3911 = vrot.slane %v767, %v3910
        %v3912 = vlaneseq
        %v3913 = vshrl.u32 %v3912, 7
        %v3914 = vsub.s32 2, %v3913
        %v3915 = vrot.slane %v768, %v3914
        %v3916 = vlaneseq
        %v3917 = vshrl.u32 %v3916, 7
        %v3918 = vsub.s32 6, %v3917
        %v3919 = vrot.slane %v768, %v3918
        %v3920 = vlaneseq
        %v3921 = vshrl.u32 %v3920, 7
        %v3922 = vsub.s32 2, %v3921
        %v3923 = vrot.slane %v769, %v3922
        %v3924 = vlaneseq
        %v3925 = vshrl.u32 %v3924, 7
        %v3926 = vsub.s32 6, %v3925
        %v3927 = vrot.slane %v769, %v3926
        %v3928 = vlaneseq
        %v3929 = vshrl.u32 %v3928, 7
        %v3930 = vsub.s32 2, %v3929
        %v3931 = vrot.slane %v770, %v3930
        %v3932 = vlaneseq
        %v3933 = vshrl.u32 %v3932, 7
        %v3934 = vsub.s32 6, %v3933
        %v3935 = vrot.slane %v770, %v3934
        %v3954 = vlaneseq
        %v3955 = vshrl.u32 %v3954, 7
        %v3956 = vsub.s32 2, %v3955
        %v3957 = vrot.slane %v3867, %v3956
        %v3958 = vlaneseq
        %v3959 = vshrl.u32 %v3958, 7
        %v3960 = vsub.s32 2, %v3959
        %v3961 = vrot.slane %v3871, %v3960
        %v3962 = vlaneseq
        %v3963 = vshrl.u32 %v3962, 7
        %v3964 = vsub.s32 2, %v3963
        %v3965 = vrot.slane %v3875, %v3964
        %v3966 = vlaneseq
        %v3967 = vshrl.u32 %v3966, 7
        %v3968 = vsub.s32 2, %v3967
        %v3969 = vrot.slane %v3879, %v3968
        %v3970 = vlaneseq
        %v3971 = vshrl.u32 %v3970, 7
        %v3972 = vsub.s32 2, %v3971
        %v3973 = vrot.slane %v3883, %v3972
        %v3974 = vlaneseq
        %v3975 = vshrl.u32 %v3974, 7
        %v3976 = vsub.s32 2, %v3975
        %v3977 = vrot.slane %v3887, %v3976
        %v3978 = vlaneseq
        %v3979 = vshrl.u32 %v3978, 7
        %v3980 = vsub.s32 2, %v3979
        %v3981 = vrot.slane %v3891, %v3980
        %v3982 = vlaneseq
        %v3983 = vshrl.u32 %v3982, 7
        %v3984 = vsub.s32 2, %v3983
        %v3985 = vrot.slane %v3895, %v3984
        %v3986 = vlaneseq
        %v3987 = vshrl.u32 %v3986, 7
        %v3988 = vsub.s32 2, %v3987
        %v3989 = vrot.slane %v3899, %v3988
        %v3990 = vlaneseq
        %v3991 = vshrl.u32 %v3990, 7
        %v3992 = vsub.s32 2, %v3991
        %v3993 = vrot.slane %v3903, %v3992
        %v3994 = vlaneseq
        %v3995 = vshrl.u32 %v3994, 7
        %v3996 = vsub.s32 2, %v3995
        %v3997 = vrot.slane %v3907, %v3996
        %v3998 = vlaneseq
        %v3999 = vshrl.u32 %v3998, 7
        %v4000 = vsub.s32 2, %v3999
        %v4001 = vrot.slane %v3911, %v4000
        %v4002 = vlaneseq
        %v4003 = vshrl.u32 %v4002, 7
        %v4004 = vsub.s32 2, %v4003
        %v4005 = vrot.slane %v3915, %v4004
        %v4006 = vlaneseq
        %v4007 = vshrl.u32 %v4006, 7
        %v4008 = vsub.s32 2, %v4007
        %v4009 = vrot.slane %v3919, %v4008
        %v4010 = vlaneseq
        %v4011 = vshrl.u32 %v4010, 7
        %v4012 = vsub.s32 2, %v4011
        %v4013 = vrot.slane %v3923, %v4012
        %v4014 = vlaneseq
        %v4015 = vshrl.u32 %v4014, 7
        %v4016 = vsub.s32 2, %v4015
        %v4017 = vrot.slane %v3927, %v4016
        %v4018 = vlaneseq
        %v4019 = vshrl.u32 %v4018, 7
        %v4020 = vsub.s32 2, %v4019
        %v4021 = vrot.slane %v3931, %v4020
        %v4022 = vlaneseq
        %v4023 = vshrl.u32 %v4022, 7
        %v4024 = vsub.s32 2, %v4023
        %v4025 = vrot.slane %v3935, %v4024
        %v4026 = vsub.f32 %v3957, %v774
        %v4027 = vsub.f32 %v3961, %v774
        %v4028 = vsub.f32 %v3965, %v774
        %v4029 = vsub.f32 %v3969, %v774
        %v4030 = vsub.f32 %v3973, %v774
        %v4031 = vsub.f32 %v3977, %v774
        %v4032 = vsub.f32 %v3981, %v774
        %v4033 = vsub.f32 %v3985, %v774
        %v4034 = vsub.f32 %v3989, %v774
        %v4035 = vsub.f32 %v3993, %v774
        %v4036 = vsub.f32 %v3997, %v774
        %v4037 = vsub.f32 %v4001, %v774
        %v4038 = vsub.f32 %v4005, %v774
        %v4039 = vsub.f32 %v4009, %v774
        %v4040 = vsub.f32 %v4013, %v774
        %v4041 = vsub.f32 %v4017, %v774
        %v4042 = vsub.f32 %v4021, %v774
        %v4043 = vsub.f32 %v4025, %v774
        %v4044 = vsub.f32 %v3957, %v775
        %v4045 = vsub.f32 %v3961, %v775
        %v4046 = vsub.f32 %v3965, %v775
        %v4047 = vsub.f32 %v3969, %v775
        %v4048 = vsub.f32 %v3973, %v775
        %v4049 = vsub.f32 %v3977, %v775
        %v4050 = vsub.f32 %v3981, %v775
        %v4051 = vsub.f32 %v3985, %v775
        %v4052 = vsub.f32 %v3989, %v775
        %v4053 = vsub.f32 %v3993, %v775
        %v4054 = vsub.f32 %v3997, %v775
        %v4055 = vsub.f32 %v4001, %v775
        %v4056 = vsub.f32 %v4005, %v775
        %v4057 = vsub.f32 %v4009, %v775
        %v4058 = vsub.f32 %v4013, %v775
        %v4059 = vsub.f32 %v4017, %v775
        %v4060 = vsub.f32 %v4021, %v775
        %v4061 = vsub.f32 %v4025, %v775
        %v4062 = vand.u32 2147483647, %v4026
        %v4063 = vand.u32 2147483647, %v4027
        %v4064 = vand.u32 2147483647, %v4028
        %v4065 = vand.u32 2147483647, %v4029
        %v4066 = vand.u32 2147483647, %v4030
        %v4067 = vand.u32 2147483647, %v4031
        %v4068 = vand.u32 2147483647, %v4032
        %v4069 = vand.u32 2147483647, %v4033
        %v4070 = vand.u32 2147483647, %v4034
        %v4071 = vand.u32 2147483647, %v4035
        %v4072 = vand.u32 2147483647, %v4036
        %v4073 = vand.u32 2147483647, %v4037
        %v4074 = vand.u32 2147483647, %v4038
        %v4075 = vand.u32 2147483647, %v4039
        %v4076 = vand.u32 2147483647, %v4040
        %v4077 = vand.u32 2147483647, %v4041
        %v4078 = vand.u32 2147483647, %v4042
        %v4079 = vand.u32 2147483647, %v4043
        %v4080 = vand.u32 2147483647, %v4044
        %v4081 = vand.u32 2147483647, %v4045
        %v4082 = vand.u32 2147483647, %v4046
        %v4083 = vand.u32 2147483647, %v4047
        %v4084 = vand.u32 2147483647, %v4048
        %v4085 = vand.u32 2147483647, %v4049
        %v4086 = vand.u32 2147483647, %v4050
        %v4087 = vand.u32 2147483647, %v4051
        %v4088 = vand.u32 2147483647, %v4052
        %v4089 = vand.u32 2147483647, %v4053
        %v4090 = vand.u32 2147483647, %v4054
        %v4091 = vand.u32 2147483647, %v4055
        %v4092 = vand.u32 2147483647, %v4056
        %v4093 = vand.u32 2147483647, %v4057
        %v4094 = vand.u32 2147483647, %v4058
        %v4095 = vand.u32 2147483647, %v4059
        %v4096 = vand.u32 2147483647, %v4060
        %v4097 = vand.u32 2147483647, %v4061
        %v4098 = vsub.f32 1.0, %v4062
        %v4099 = vsub.f32 1.0, %v4063
        %v4100 = vsub.f32 1.0, %v4064
        %v4101 = vsub.f32 1.0, %v4065
        %v4102 = vsub.f32 1.0, %v4066
        %v4103 = vsub.f32 1.0, %v4067
        %v4104 = vsub.f32 1.0, %v4068
        %v4105 = vsub.f32 1.0, %v4069
        %v4106 = vsub.f32 1.0, %v4070
        %v4107 = vsub.f32 1.0, %v4071
        %v4108 = vsub.f32 1.0, %v4072
        %v4109 = vsub.f32 1.0, %v4073
        %v4110 = vsub.f32 1.0, %v4074
        %v4111 = vsub.f32 1.0, %v4075
        %v4112 = vsub.f32 1.0, %v4076
        %v4113 = vsub.f32 1.0, %v4077
        %v4114 = vsub.f32 1.0, %v4078
        %v4115 = vsub.f32 1.0, %v4079
        %v4116 = vsub.f32 1.0, %v4080
        %v4117 = vsub.f32 1.0, %v4081
        %v4118 = vsub.f32 1.0, %v4082
        %v4119 = vsub.f32 1.0, %v4083
        %v4120 = vsub.f32 1.0, %v4084
        %v4121 = vsub.f32 1.0, %v4085
        %v4122 = vsub.f32 1.0, %v4086
        %v4123 = vsub.f32 1.0, %v4087
        %v4124 = vsub.f32 1.0, %v4088
        %v4125 = vsub.f32 1.0, %v4089
        %v4126 = vsub.f32 1.0, %v4090
        %v4127 = vsub.f32 1.0, %v4091
        %v4128 = vsub.f32 1.0, %v4092
        %v4129 = vsub.f32 1.0, %v4093
        %v4130 = vsub.f32 1.0, %v4094
        %v4131 = vsub.f32 1.0, %v4095
        %v4132 = vsub.f32 1.0, %v4096
        %v4133 = vsub.f32 1.0, %v4097
        %v4134 = vmax.f32 %v4098, 0.0
        %v4135 = vmax.f32 %v4099, 0.0
        %v4136 = vmax.f32 %v4100, 0.0
        %v4137 = vmax.f32 %v4101, 0.0
        %v4138 = vmax.f32 %v4102, 0.0
        %v4139 = vmax.f32 %v4103, 0.0
        %v4140 = vmax.f32 %v4104, 0.0
        %v4141 = vmax.f32 %v4105, 0.0
        %v4142 = vmax.f32 %v4106, 0.0
        %v4143 = vmax.f32 %v4107, 0.0
        %v4144 = vmax.f32 %v4108, 0.0
        %v4145 = vmax.f32 %v4109, 0.0
        %v4146 = vmax.f32 %v4110, 0.0
        %v4147 = vmax.f32 %v4111, 0.0
        %v4148 = vmax.f32 %v4112, 0.0
        %v4149 = vmax.f32 %v4113, 0.0
        %v4150 = vmax.f32 %v4114, 0.0
        %v4151 = vmax.f32 %v4115, 0.0
        %v4152 = vmax.f32 %v4116, 0.0
        %v4153 = vmax.f32 %v4117, 0.0
        %v4154 = vmax.f32 %v4118, 0.0
        %v4155 = vmax.f32 %v4119, 0.0
        %v4156 = vmax.f32 %v4120, 0.0
        %v4157 = vmax.f32 %v4121, 0.0
        %v4158 = vmax.f32 %v4122, 0.0
        %v4159 = vmax.f32 %v4123, 0.0
        %v4160 = vmax.f32 %v4124, 0.0
        %v4161 = vmax.f32 %v4125, 0.0
        %v4162 = vmax.f32 %v4126, 0.0
        %v4163 = vmax.f32 %v4127, 0.0
        %v4164 = vmax.f32 %v4128, 0.0
        %v4165 = vmax.f32 %v4129, 0.0
        %v4166 = vmax.f32 %v4130, 0.0
        %v4167 = vmax.f32 %v4131, 0.0
        %v4168 = vmax.f32 %v4132, 0.0
        %v4169 = vmax.f32 %v4133, 0.0
        %v4170 = vpack.c.bf16 %v4152, %v4134
        %v4171 = vpack.c.bf16 %v4153, %v4135
        %v4172 = vpack.c.bf16 %v4154, %v4136
        %v4173 = vpack.c.bf16 %v4155, %v4137
        %v4174 = vpack.c.bf16 %v4156, %v4138
        %v4175 = vpack.c.bf16 %v4157, %v4139
        %v4176 = vpack.c.bf16 %v4158, %v4140
        %v4177 = vpack.c.bf16 %v4159, %v4141
        %v4178 = vpack.c.bf16 %v4160, %v4142
        %v4179 = vpack.c.bf16 %v4161, %v4143
        %v4180 = vpack.c.bf16 %v4162, %v4144
        %v4181 = vpack.c.bf16 %v4163, %v4145
        %v4182 = vpack.c.bf16 %v4164, %v4146
        %v4183 = vpack.c.bf16 %v4165, %v4147
        %v4184 = vpack.c.bf16 %v4166, %v4148
        %v4185 = vpack.c.bf16 %v4167, %v4149
        %v4186 = vpack.c.bf16 %v4168, %v4150
        %v4187 = vpack.c.bf16 %v4169, %v4151
        %v4190 = vunpack.c.l.b16 %v780
        %v4191 = vunpack.c.l.b16 %v781
        %v4192 = vpack.c.b16 %v4191, %v4190
        %v4194 = vsel %vm1437, %v4192, 0
        %4196 = vmatprep.subr.bf16.mxu0 0
        %4197 = vmatpush1.bf16.msra.mxu0 0
        %4198 = vmatprep.subr.bf16.mxu0 0
        %4199 = vmatpush1.bf16.msra.mxu0 0
        %4200 = vmatprep.subr.bf16.mxu0 0
        %4201 = vmatpush1.bf16.msra.mxu0 0
        %4202 = vmatprep.subr.bf16.mxu0 0
        %4203 = vmatpush1.bf16.msra.mxu0 0
        %4204 = vmatprep.subr.bf16.mxu0 0
        %4205 = vmatpush1.bf16.msra.mxu0 0
        %4206 = vmatprep.subr.bf16.mxu0 0
        %4207 = vmatpush1.bf16.msra.mxu0 0
        %4208 = vmatprep.subr.bf16.mxu0 0
        %4209 = vmatpush1.bf16.msra.mxu0 0
        %4210 = vmatprep.subr.bf16.mxu0 %v4171
        %4211 = vmatpush1.bf16.msra.mxu0 %v4170
        %4212 = vmatprep.subr.bf16.mxu0 0
        %4213 = vmatpush2.bf16.msra.mxu0 0
        %4214 = vmatprep.subr.bf16.mxu0 0
        %4215 = vmatpush2.bf16.msra.mxu0 0
        %4216 = vmatprep.subr.bf16.mxu0 0
        %4217 = vmatpush2.bf16.msra.mxu0 0
        %4218 = vmatprep.subr.bf16.mxu0 0
        %4219 = vmatpush2.bf16.msra.mxu0 0
        %4220 = vmatprep.subr.bf16.mxu0 0
        %4221 = vmatpush2.bf16.msra.mxu0 0
        %4222 = vmatprep.subr.bf16.mxu0 0
        %4223 = vmatpush2.bf16.msra.mxu0 0
        %4224 = vmatprep.subr.bf16.mxu0 0
        %4225 = vmatpush2.bf16.msra.mxu0 0
        %4226 = vmatprep.subr.bf16.mxu0 0
        %4227 = vmatpush2.bf16.msra.mxu0 0
        %4228 = vmatprep.mubr.bf16.mxu0 0
        %4229 = vmatmul.mubr.bf16.gmra.mxu0 %v4194
        %v4230 = vpop.f32.mrf.mxu0
        %v4231 = vadd.f32 0.0, %v4230
        %v4232 = vpop.f32.mrf.mxu0
        %v4233 = vadd.f32 0.0, %v4232
        %v4234 = vpop.f32.mrf.mxu0
        %v4235 = vadd.f32 0.0, %v4234
        %v4236 = vpop.f32.mrf.mxu0
        %v4237 = vadd.f32 0.0, %v4236
        %4238 = vdwg.mxu0
        %4239 = vmatprep.subr.bf16.mxu0 0
        %4240 = vmatpush1.bf16.msra.mxu0 0
        %4241 = vmatprep.subr.bf16.mxu0 0
        %4242 = vmatpush1.bf16.msra.mxu0 0
        %4243 = vmatprep.subr.bf16.mxu0 0
        %4244 = vmatpush1.bf16.msra.mxu0 0
        %4245 = vmatprep.subr.bf16.mxu0 0
        %4246 = vmatpush1.bf16.msra.mxu0 0
        %4247 = vmatprep.subr.bf16.mxu0 0
        %4248 = vmatpush1.bf16.msra.mxu0 0
        %4249 = vmatprep.subr.bf16.mxu0 0
        %4250 = vmatpush1.bf16.msra.mxu0 0
        %4251 = vmatprep.subr.bf16.mxu0 0
        %4252 = vmatpush1.bf16.msra.mxu0 0
        %4253 = vmatprep.subr.bf16.mxu0 %v4173
        %4254 = vmatpush1.bf16.msra.mxu0 %v4172
        %4255 = vmatprep.subr.bf16.mxu0 0
        %4256 = vmatpush2.bf16.msra.mxu0 0
        %4257 = vmatprep.subr.bf16.mxu0 0
        %4258 = vmatpush2.bf16.msra.mxu0 0
        %4259 = vmatprep.subr.bf16.mxu0 0
        %4260 = vmatpush2.bf16.msra.mxu0 0
        %4261 = vmatprep.subr.bf16.mxu0 0
        %4262 = vmatpush2.bf16.msra.mxu0 0
        %4263 = vmatprep.subr.bf16.mxu0 0
        %4264 = vmatpush2.bf16.msra.mxu0 0
        %4265 = vmatprep.subr.bf16.mxu0 0
        %4266 = vmatpush2.bf16.msra.mxu0 0
        %4267 = vmatprep.subr.bf16.mxu0 0
        %4268 = vmatpush2.bf16.msra.mxu0 0
        %4269 = vmatprep.subr.bf16.mxu0 0
        %4270 = vmatpush2.bf16.msra.mxu0 0
        %4271 = vmatprep.mubr.bf16.mxu0 0
        %4272 = vmatmul.mubr.bf16.gmra.mxu0 %v4194
        %v4273 = vpop.f32.mrf.mxu0
        %v4274 = vadd.f32 0.0, %v4273
        %v4275 = vpop.f32.mrf.mxu0
        %v4276 = vadd.f32 0.0, %v4275
        %v4277 = vpop.f32.mrf.mxu0
        %v4278 = vadd.f32 0.0, %v4277
        %v4279 = vpop.f32.mrf.mxu0
        %v4280 = vadd.f32 0.0, %v4279
        %4281 = vdwg.mxu0
        %4282 = vmatprep.subr.bf16.mxu0 0
        %4283 = vmatpush1.bf16.msra.mxu0 0
        %4284 = vmatprep.subr.bf16.mxu0 0
        %4285 = vmatpush1.bf16.msra.mxu0 0
        %4286 = vmatprep.subr.bf16.mxu0 0
        %4287 = vmatpush1.bf16.msra.mxu0 0
        %4288 = vmatprep.subr.bf16.mxu0 0
        %4289 = vmatpush1.bf16.msra.mxu0 0
        %4290 = vmatprep.subr.bf16.mxu0 0
        %4291 = vmatpush1.bf16.msra.mxu0 0
        %4292 = vmatprep.subr.bf16.mxu0 0
        %4293 = vmatpush1.bf16.msra.mxu0 0
        %4294 = vmatprep.subr.bf16.mxu0 0
        %4295 = vmatpush1.bf16.msra.mxu0 0
        %4296 = vmatprep.subr.bf16.mxu0 %v4175
        %4297 = vmatpush1.bf16.msra.mxu0 %v4174
        %4298 = vmatprep.subr.bf16.mxu0 0
        %4299 = vmatpush2.bf16.msra.mxu0 0
        %4300 = vmatprep.subr.bf16.mxu0 0
        %4301 = vmatpush2.bf16.msra.mxu0 0
        %4302 = vmatprep.subr.bf16.mxu0 0
        %4303 = vmatpush2.bf16.msra.mxu0 0
        %4304 = vmatprep.subr.bf16.mxu0 0
        %4305 = vmatpush2.bf16.msra.mxu0 0
        %4306 = vmatprep.subr.bf16.mxu0 0
        %4307 = vmatpush2.bf16.msra.mxu0 0
        %4308 = vmatprep.subr.bf16.mxu0 0
        %4309 = vmatpush2.bf16.msra.mxu0 0
        %4310 = vmatprep.subr.bf16.mxu0 0
        %4311 = vmatpush2.bf16.msra.mxu0 0
        %4312 = vmatprep.subr.bf16.mxu0 0
        %4313 = vmatpush2.bf16.msra.mxu0 0
        %4314 = vmatprep.mubr.bf16.mxu0 0
        %4315 = vmatmul.mubr.bf16.gmra.mxu0 %v4194
        %v4316 = vpop.f32.mrf.mxu0
        %v4317 = vadd.f32 0.0, %v4316
        %v4318 = vpop.f32.mrf.mxu0
        %v4319 = vadd.f32 0.0, %v4318
        %v4320 = vpop.f32.mrf.mxu0
        %v4321 = vadd.f32 0.0, %v4320
        %v4322 = vpop.f32.mrf.mxu0
        %v4323 = vadd.f32 0.0, %v4322
        %4324 = vdwg.mxu0
        %4325 = vmatprep.subr.bf16.mxu0 0
        %4326 = vmatpush1.bf16.msra.mxu0 0
        %4327 = vmatprep.subr.bf16.mxu0 0
        %4328 = vmatpush1.bf16.msra.mxu0 0
        %4329 = vmatprep.subr.bf16.mxu0 0
        %4330 = vmatpush1.bf16.msra.mxu0 0
        %4331 = vmatprep.subr.bf16.mxu0 0
        %4332 = vmatpush1.bf16.msra.mxu0 0
        %4333 = vmatprep.subr.bf16.mxu0 0
        %4334 = vmatpush1.bf16.msra.mxu0 0
        %4335 = vmatprep.subr.bf16.mxu0 0
        %4336 = vmatpush1.bf16.msra.mxu0 0
        %4337 = vmatprep.subr.bf16.mxu0 0
        %4338 = vmatpush1.bf16.msra.mxu0 0
        %4339 = vmatprep.subr.bf16.mxu0 %v4177
        %4340 = vmatpush1.bf16.msra.mxu0 %v4176
        %4341 = vmatprep.subr.bf16.mxu0 0
        %4342 = vmatpush2.bf16.msra.mxu0 0
        %4343 = vmatprep.subr.bf16.mxu0 0
        %4344 = vmatpush2.bf16.msra.mxu0 0
        %4345 = vmatprep.subr.bf16.mxu0 0
        %4346 = vmatpush2.bf16.msra.mxu0 0
        %4347 = vmatprep.subr.bf16.mxu0 0
        %4348 = vmatpush2.bf16.msra.mxu0 0
        %4349 = vmatprep.subr.bf16.mxu0 0
        %4350 = vmatpush2.bf16.msra.mxu0 0
        %4351 = vmatprep.subr.bf16.mxu0 0
        %4352 = vmatpush2.bf16.msra.mxu0 0
        %4353 = vmatprep.subr.bf16.mxu0 0
        %4354 = vmatpush2.bf16.msra.mxu0 0
        %4355 = vmatprep.subr.bf16.mxu0 0
        %4356 = vmatpush2.bf16.msra.mxu0 0
        %4357 = vmatprep.mubr.bf16.mxu0 0
        %4358 = vmatmul.mubr.bf16.gmra.mxu0 %v4194
        %v4359 = vpop.f32.mrf.mxu0
        %v4360 = vadd.f32 0.0, %v4359
        %v4361 = vpop.f32.mrf.mxu0
        %v4362 = vadd.f32 0.0, %v4361
        %v4363 = vpop.f32.mrf.mxu0
        %v4364 = vadd.f32 0.0, %v4363
        %v4365 = vpop.f32.mrf.mxu0
        %v4366 = vadd.f32 0.0, %v4365
        %4367 = vdwg.mxu0
        %4368 = vmatprep.subr.bf16.mxu0 0
        %4369 = vmatpush1.bf16.msra.mxu0 0
        %4370 = vmatprep.subr.bf16.mxu0 0
        %4371 = vmatpush1.bf16.msra.mxu0 0
        %4372 = vmatprep.subr.bf16.mxu0 0
        %4373 = vmatpush1.bf16.msra.mxu0 0
        %4374 = vmatprep.subr.bf16.mxu0 0
        %4375 = vmatpush1.bf16.msra.mxu0 0
        %4376 = vmatprep.subr.bf16.mxu0 0
        %4377 = vmatpush1.bf16.msra.mxu0 0
        %4378 = vmatprep.subr.bf16.mxu0 0
        %4379 = vmatpush1.bf16.msra.mxu0 0
        %4380 = vmatprep.subr.bf16.mxu0 0
        %4381 = vmatpush1.bf16.msra.mxu0 0
        %4382 = vmatprep.subr.bf16.mxu0 %v4179
        %4383 = vmatpush1.bf16.msra.mxu0 %v4178
        %4384 = vmatprep.subr.bf16.mxu0 0
        %4385 = vmatpush2.bf16.msra.mxu0 0
        %4386 = vmatprep.subr.bf16.mxu0 0
        %4387 = vmatpush2.bf16.msra.mxu0 0
        %4388 = vmatprep.subr.bf16.mxu0 0
        %4389 = vmatpush2.bf16.msra.mxu0 0
        %4390 = vmatprep.subr.bf16.mxu0 0
        %4391 = vmatpush2.bf16.msra.mxu0 0
        %4392 = vmatprep.subr.bf16.mxu0 0
        %4393 = vmatpush2.bf16.msra.mxu0 0
        %4394 = vmatprep.subr.bf16.mxu0 0
        %4395 = vmatpush2.bf16.msra.mxu0 0
        %4396 = vmatprep.subr.bf16.mxu0 0
        %4397 = vmatpush2.bf16.msra.mxu0 0
        %4398 = vmatprep.subr.bf16.mxu0 0
        %4399 = vmatpush2.bf16.msra.mxu0 0
        %4400 = vmatprep.mubr.bf16.mxu0 0
        %4401 = vmatmul.mubr.bf16.gmra.mxu0 %v4194
        %v4402 = vpop.f32.mrf.mxu0
        %v4403 = vadd.f32 0.0, %v4402
        %v4404 = vpop.f32.mrf.mxu0
        %v4405 = vadd.f32 0.0, %v4404
        %v4406 = vpop.f32.mrf.mxu0
        %v4407 = vadd.f32 0.0, %v4406
        %v4408 = vpop.f32.mrf.mxu0
        %v4409 = vadd.f32 0.0, %v4408
        %4410 = vdwg.mxu0
        %4411 = vmatprep.subr.bf16.mxu0 0
        %4412 = vmatpush1.bf16.msra.mxu0 0
        %4413 = vmatprep.subr.bf16.mxu0 0
        %4414 = vmatpush1.bf16.msra.mxu0 0
        %4415 = vmatprep.subr.bf16.mxu0 0
        %4416 = vmatpush1.bf16.msra.mxu0 0
        %4417 = vmatprep.subr.bf16.mxu0 0
        %4418 = vmatpush1.bf16.msra.mxu0 0
        %4419 = vmatprep.subr.bf16.mxu0 0
        %4420 = vmatpush1.bf16.msra.mxu0 0
        %4421 = vmatprep.subr.bf16.mxu0 0
        %4422 = vmatpush1.bf16.msra.mxu0 0
        %4423 = vmatprep.subr.bf16.mxu0 0
        %4424 = vmatpush1.bf16.msra.mxu0 0
        %4425 = vmatprep.subr.bf16.mxu0 %v4181
        %4426 = vmatpush1.bf16.msra.mxu0 %v4180
        %4427 = vmatprep.subr.bf16.mxu0 0
        %4428 = vmatpush2.bf16.msra.mxu0 0
        %4429 = vmatprep.subr.bf16.mxu0 0
        %4430 = vmatpush2.bf16.msra.mxu0 0
        %4431 = vmatprep.subr.bf16.mxu0 0
        %4432 = vmatpush2.bf16.msra.mxu0 0
        %4433 = vmatprep.subr.bf16.mxu0 0
        %4434 = vmatpush2.bf16.msra.mxu0 0
        %4435 = vmatprep.subr.bf16.mxu0 0
        %4436 = vmatpush2.bf16.msra.mxu0 0
        %4437 = vmatprep.subr.bf16.mxu0 0
        %4438 = vmatpush2.bf16.msra.mxu0 0
        %4439 = vmatprep.subr.bf16.mxu0 0
        %4440 = vmatpush2.bf16.msra.mxu0 0
        %4441 = vmatprep.subr.bf16.mxu0 0
        %4442 = vmatpush2.bf16.msra.mxu0 0
        %4443 = vmatprep.mubr.bf16.mxu0 0
        %4444 = vmatmul.mubr.bf16.gmra.mxu0 %v4194
        %v4445 = vpop.f32.mrf.mxu0
        %v4446 = vadd.f32 0.0, %v4445
        %v4447 = vpop.f32.mrf.mxu0
        %v4448 = vadd.f32 0.0, %v4447
        %v4449 = vpop.f32.mrf.mxu0
        %v4450 = vadd.f32 0.0, %v4449
        %v4451 = vpop.f32.mrf.mxu0
        %v4452 = vadd.f32 0.0, %v4451
        %4453 = vdwg.mxu0
        %4454 = vmatprep.subr.bf16.mxu0 0
        %4455 = vmatpush1.bf16.msra.mxu0 0
        %4456 = vmatprep.subr.bf16.mxu0 0
        %4457 = vmatpush1.bf16.msra.mxu0 0
        %4458 = vmatprep.subr.bf16.mxu0 0
        %4459 = vmatpush1.bf16.msra.mxu0 0
        %4460 = vmatprep.subr.bf16.mxu0 0
        %4461 = vmatpush1.bf16.msra.mxu0 0
        %4462 = vmatprep.subr.bf16.mxu0 0
        %4463 = vmatpush1.bf16.msra.mxu0 0
        %4464 = vmatprep.subr.bf16.mxu0 0
        %4465 = vmatpush1.bf16.msra.mxu0 0
        %4466 = vmatprep.subr.bf16.mxu0 0
        %4467 = vmatpush1.bf16.msra.mxu0 0
        %4468 = vmatprep.subr.bf16.mxu0 %v4183
        %4469 = vmatpush1.bf16.msra.mxu0 %v4182
        %4470 = vmatprep.subr.bf16.mxu0 0
        %4471 = vmatpush2.bf16.msra.mxu0 0
        %4472 = vmatprep.subr.bf16.mxu0 0
        %4473 = vmatpush2.bf16.msra.mxu0 0
        %4474 = vmatprep.subr.bf16.mxu0 0
        %4475 = vmatpush2.bf16.msra.mxu0 0
        %4476 = vmatprep.subr.bf16.mxu0 0
        %4477 = vmatpush2.bf16.msra.mxu0 0
        %4478 = vmatprep.subr.bf16.mxu0 0
        %4479 = vmatpush2.bf16.msra.mxu0 0
        %4480 = vmatprep.subr.bf16.mxu0 0
        %4481 = vmatpush2.bf16.msra.mxu0 0
        %4482 = vmatprep.subr.bf16.mxu0 0
        %4483 = vmatpush2.bf16.msra.mxu0 0
        %4484 = vmatprep.subr.bf16.mxu0 0
        %4485 = vmatpush2.bf16.msra.mxu0 0
        %4486 = vmatprep.mubr.bf16.mxu0 0
        %4487 = vmatmul.mubr.bf16.gmra.mxu0 %v4194
        %v4488 = vpop.f32.mrf.mxu0
        %v4489 = vadd.f32 0.0, %v4488
        %v4490 = vpop.f32.mrf.mxu0
        %v4491 = vadd.f32 0.0, %v4490
        %v4492 = vpop.f32.mrf.mxu0
        %v4493 = vadd.f32 0.0, %v4492
        %v4494 = vpop.f32.mrf.mxu0
        %v4495 = vadd.f32 0.0, %v4494
        %4496 = vdwg.mxu0
        %4497 = vmatprep.subr.bf16.mxu0 0
        %4498 = vmatpush1.bf16.msra.mxu0 0
        %4499 = vmatprep.subr.bf16.mxu0 0
        %4500 = vmatpush1.bf16.msra.mxu0 0
        %4501 = vmatprep.subr.bf16.mxu0 0
        %4502 = vmatpush1.bf16.msra.mxu0 0
        %4503 = vmatprep.subr.bf16.mxu0 0
        %4504 = vmatpush1.bf16.msra.mxu0 0
        %4505 = vmatprep.subr.bf16.mxu0 0
        %4506 = vmatpush1.bf16.msra.mxu0 0
        %4507 = vmatprep.subr.bf16.mxu0 0
        %4508 = vmatpush1.bf16.msra.mxu0 0
        %4509 = vmatprep.subr.bf16.mxu0 0
        %4510 = vmatpush1.bf16.msra.mxu0 0
        %4511 = vmatprep.subr.bf16.mxu0 %v4185
        %4512 = vmatpush1.bf16.msra.mxu0 %v4184
        %4513 = vmatprep.subr.bf16.mxu0 0
        %4514 = vmatpush2.bf16.msra.mxu0 0
        %4515 = vmatprep.subr.bf16.mxu0 0
        %4516 = vmatpush2.bf16.msra.mxu0 0
        %4517 = vmatprep.subr.bf16.mxu0 0
        %4518 = vmatpush2.bf16.msra.mxu0 0
        %4519 = vmatprep.subr.bf16.mxu0 0
        %4520 = vmatpush2.bf16.msra.mxu0 0
        %4521 = vmatprep.subr.bf16.mxu0 0
        %4522 = vmatpush2.bf16.msra.mxu0 0
        %4523 = vmatprep.subr.bf16.mxu0 0
        %4524 = vmatpush2.bf16.msra.mxu0 0
        %4525 = vmatprep.subr.bf16.mxu0 0
        %4526 = vmatpush2.bf16.msra.mxu0 0
        %4527 = vmatprep.subr.bf16.mxu0 0
        %4528 = vmatpush2.bf16.msra.mxu0 0
        %4529 = vmatprep.mubr.bf16.mxu0 0
        %4530 = vmatmul.mubr.bf16.gmra.mxu0 %v4194
        %v4531 = vpop.f32.mrf.mxu0
        %v4532 = vadd.f32 0.0, %v4531
        %v4533 = vpop.f32.mrf.mxu0
        %v4534 = vadd.f32 0.0, %v4533
        %v4535 = vpop.f32.mrf.mxu0
        %v4536 = vadd.f32 0.0, %v4535
        %v4537 = vpop.f32.mrf.mxu0
        %v4538 = vadd.f32 0.0, %v4537
        %4539 = vdwg.mxu0
        %4540 = vmatprep.subr.bf16.mxu0 0
        %4541 = vmatpush1.bf16.msra.mxu0 0
        %4542 = vmatprep.subr.bf16.mxu0 0
        %4543 = vmatpush1.bf16.msra.mxu0 0
        %4544 = vmatprep.subr.bf16.mxu0 0
        %4545 = vmatpush1.bf16.msra.mxu0 0
        %4546 = vmatprep.subr.bf16.mxu0 0
        %4547 = vmatpush1.bf16.msra.mxu0 0
        %4548 = vmatprep.subr.bf16.mxu0 0
        %4549 = vmatpush1.bf16.msra.mxu0 0
        %4550 = vmatprep.subr.bf16.mxu0 0
        %4551 = vmatpush1.bf16.msra.mxu0 0
        %4552 = vmatprep.subr.bf16.mxu0 0
        %4553 = vmatpush1.bf16.msra.mxu0 0
        %4554 = vmatprep.subr.bf16.mxu0 %v4187
        %4555 = vmatpush1.bf16.msra.mxu0 %v4186
        %4556 = vmatprep.subr.bf16.mxu0 0
        %4557 = vmatpush2.bf16.msra.mxu0 0
        %4558 = vmatprep.subr.bf16.mxu0 0
        %4559 = vmatpush2.bf16.msra.mxu0 0
        %4560 = vmatprep.subr.bf16.mxu0 0
        %4561 = vmatpush2.bf16.msra.mxu0 0
        %4562 = vmatprep.subr.bf16.mxu0 0
        %4563 = vmatpush2.bf16.msra.mxu0 0
        %4564 = vmatprep.subr.bf16.mxu0 0
        %4565 = vmatpush2.bf16.msra.mxu0 0
        %4566 = vmatprep.subr.bf16.mxu0 0
        %4567 = vmatpush2.bf16.msra.mxu0 0
        %4568 = vmatprep.subr.bf16.mxu0 0
        %4569 = vmatpush2.bf16.msra.mxu0 0
        %4570 = vmatprep.subr.bf16.mxu0 0
        %4571 = vmatpush2.bf16.msra.mxu0 0
        %4572 = vmatprep.mubr.bf16.mxu0 0
        %4573 = vmatmul.mubr.bf16.gmra.mxu0 %v4194
        %v4574 = vpop.f32.mrf.mxu0
        %v4575 = vadd.f32 0.0, %v4574
        %v4576 = vpop.f32.mrf.mxu0
        %v4577 = vadd.f32 0.0, %v4576
        %v4578 = vpop.f32.mrf.mxu0
        %v4579 = vadd.f32 0.0, %v4578
        %v4580 = vpop.f32.mrf.mxu0
        %v4581 = vadd.f32 0.0, %v4580
        %4582 = vdwg.mxu0
        %v4583 = vmul.f32 %v4231, %v3828
        %v4584 = vmul.f32 %v4233, %v3829
        %v4585 = vmul.f32 %v4274, %v3830
        %v4586 = vmul.f32 %v4276, %v3831
        %v4587 = vmul.f32 %v4317, %v3832
        %v4588 = vmul.f32 %v4319, %v3833
        %v4589 = vmul.f32 %v4360, %v3834
        %v4590 = vmul.f32 %v4362, %v3835
        %v4591 = vmul.f32 %v4403, %v3836
        %v4592 = vmul.f32 %v4405, %v3837
        %v4593 = vmul.f32 %v4446, %v3838
        %v4594 = vmul.f32 %v4448, %v3839
        %v4595 = vmul.f32 %v4489, %v3840
        %v4596 = vmul.f32 %v4491, %v3841
        %v4597 = vmul.f32 %v4532, %v3842
        %v4598 = vmul.f32 %v4534, %v3843
        %v4599 = vmul.f32 %v4575, %v3844
        %v4600 = vmul.f32 %v4577, %v3845
        %v4601 = vmul.f32 %v4235, %v3846
        %v4602 = vmul.f32 %v4237, %v3847
        %v4603 = vmul.f32 %v4278, %v3848
        %v4604 = vmul.f32 %v4280, %v3849
        %v4605 = vmul.f32 %v4321, %v3850
        %v4606 = vmul.f32 %v4323, %v3851
        %v4607 = vmul.f32 %v4364, %v3852
        %v4608 = vmul.f32 %v4366, %v3853
        %v4609 = vmul.f32 %v4407, %v3854
        %v4610 = vmul.f32 %v4409, %v3855
        %v4611 = vmul.f32 %v4450, %v3856
        %v4612 = vmul.f32 %v4452, %v3857
        %v4613 = vmul.f32 %v4493, %v3858
        %v4614 = vmul.f32 %v4495, %v3859
        %v4615 = vmul.f32 %v4536, %v3860
        %v4616 = vmul.f32 %v4538, %v3861
        %v4617 = vmul.f32 %v4579, %v3862
        %v4618 = vmul.f32 %v4581, %v3863
        %v4619 = vadd.f32 %v4583, %v4601
        %v4620 = vrot.slane %v4619, 4
        %v4621 = vadd.f32 %v4619, %v4620
        %v4622 = vrot.slane %v4621, 2
        %v4623 = vadd.f32 %v4621, %v4622
        %v4624 = vrot.slane %v4623, 1
        %v4625 = vadd.f32 %v4623, %v4624
        %v4626 = vadd.f32 %v4584, %v4602
        %v4627 = vrot.slane %v4626, 4
        %v4628 = vadd.f32 %v4626, %v4627
        %v4629 = vrot.slane %v4628, 2
        %v4630 = vadd.f32 %v4628, %v4629
        %v4631 = vrot.slane %v4630, 1
        %v4632 = vadd.f32 %v4630, %v4631
        %v4633 = vadd.f32 %v4585, %v4603
        %v4634 = vrot.slane %v4633, 4
        %v4635 = vadd.f32 %v4633, %v4634
        %v4636 = vrot.slane %v4635, 2
        %v4637 = vadd.f32 %v4635, %v4636
        %v4638 = vrot.slane %v4637, 1
        %v4639 = vadd.f32 %v4637, %v4638
        %v4640 = vadd.f32 %v4586, %v4604
        %v4641 = vrot.slane %v4640, 4
        %v4642 = vadd.f32 %v4640, %v4641
        %v4643 = vrot.slane %v4642, 2
        %v4644 = vadd.f32 %v4642, %v4643
        %v4645 = vrot.slane %v4644, 1
        %v4646 = vadd.f32 %v4644, %v4645
        %v4647 = vadd.f32 %v4587, %v4605
        %v4648 = vrot.slane %v4647, 4
        %v4649 = vadd.f32 %v4647, %v4648
        %v4650 = vrot.slane %v4649, 2
        %v4651 = vadd.f32 %v4649, %v4650
        %v4652 = vrot.slane %v4651, 1
        %v4653 = vadd.f32 %v4651, %v4652
        %v4654 = vadd.f32 %v4588, %v4606
        %v4655 = vrot.slane %v4654, 4
        %v4656 = vadd.f32 %v4654, %v4655
        %v4657 = vrot.slane %v4656, 2
        %v4658 = vadd.f32 %v4656, %v4657
        %v4659 = vrot.slane %v4658, 1
        %v4660 = vadd.f32 %v4658, %v4659
        %v4661 = vadd.f32 %v4589, %v4607
        %v4662 = vrot.slane %v4661, 4
        %v4663 = vadd.f32 %v4661, %v4662
        %v4664 = vrot.slane %v4663, 2
        %v4665 = vadd.f32 %v4663, %v4664
        %v4666 = vrot.slane %v4665, 1
        %v4667 = vadd.f32 %v4665, %v4666
        %v4668 = vadd.f32 %v4590, %v4608
        %v4669 = vrot.slane %v4668, 4
        %v4670 = vadd.f32 %v4668, %v4669
        %v4671 = vrot.slane %v4670, 2
        %v4672 = vadd.f32 %v4670, %v4671
        %v4673 = vrot.slane %v4672, 1
        %v4674 = vadd.f32 %v4672, %v4673
        %v4675 = vadd.f32 %v4591, %v4609
        %v4676 = vrot.slane %v4675, 4
        %v4677 = vadd.f32 %v4675, %v4676
        %v4678 = vrot.slane %v4677, 2
        %v4679 = vadd.f32 %v4677, %v4678
        %v4680 = vrot.slane %v4679, 1
        %v4681 = vadd.f32 %v4679, %v4680
        %v4682 = vadd.f32 %v4592, %v4610
        %v4683 = vrot.slane %v4682, 4
        %v4684 = vadd.f32 %v4682, %v4683
        %v4685 = vrot.slane %v4684, 2
        %v4686 = vadd.f32 %v4684, %v4685
        %v4687 = vrot.slane %v4686, 1
        %v4688 = vadd.f32 %v4686, %v4687
        %v4689 = vadd.f32 %v4593, %v4611
        %v4690 = vrot.slane %v4689, 4
        %v4691 = vadd.f32 %v4689, %v4690
        %v4692 = vrot.slane %v4691, 2
        %v4693 = vadd.f32 %v4691, %v4692
        %v4694 = vrot.slane %v4693, 1
        %v4695 = vadd.f32 %v4693, %v4694
        %v4696 = vadd.f32 %v4594, %v4612
        %v4697 = vrot.slane %v4696, 4
        %v4698 = vadd.f32 %v4696, %v4697
        %v4699 = vrot.slane %v4698, 2
        %v4700 = vadd.f32 %v4698, %v4699
        %v4701 = vrot.slane %v4700, 1
        %v4702 = vadd.f32 %v4700, %v4701
        %v4703 = vadd.f32 %v4595, %v4613
        %v4704 = vrot.slane %v4703, 4
        %v4705 = vadd.f32 %v4703, %v4704
        %v4706 = vrot.slane %v4705, 2
        %v4707 = vadd.f32 %v4705, %v4706
        %v4708 = vrot.slane %v4707, 1
        %v4709 = vadd.f32 %v4707, %v4708
        %v4710 = vadd.f32 %v4596, %v4614
        %v4711 = vrot.slane %v4710, 4
        %v4712 = vadd.f32 %v4710, %v4711
        %v4713 = vrot.slane %v4712, 2
        %v4714 = vadd.f32 %v4712, %v4713
        %v4715 = vrot.slane %v4714, 1
        %v4716 = vadd.f32 %v4714, %v4715
        %v4717 = vadd.f32 %v4597, %v4615
        %v4718 = vrot.slane %v4717, 4
        %v4719 = vadd.f32 %v4717, %v4718
        %v4720 = vrot.slane %v4719, 2
        %v4721 = vadd.f32 %v4719, %v4720
        %v4722 = vrot.slane %v4721, 1
        %v4723 = vadd.f32 %v4721, %v4722
        %v4724 = vadd.f32 %v4598, %v4616
        %v4725 = vrot.slane %v4724, 4
        %v4726 = vadd.f32 %v4724, %v4725
        %v4727 = vrot.slane %v4726, 2
        %v4728 = vadd.f32 %v4726, %v4727
        %v4729 = vrot.slane %v4728, 1
        %v4730 = vadd.f32 %v4728, %v4729
        %v4731 = vadd.f32 %v4599, %v4617
        %v4732 = vrot.slane %v4731, 4
        %v4733 = vadd.f32 %v4731, %v4732
        %v4734 = vrot.slane %v4733, 2
        %v4735 = vadd.f32 %v4733, %v4734
        %v4736 = vrot.slane %v4735, 1
        %v4737 = vadd.f32 %v4735, %v4736
        %v4738 = vadd.f32 %v4600, %v4618
        %v4739 = vrot.slane %v4738, 4
        %v4740 = vadd.f32 %v4738, %v4739
        %v4741 = vrot.slane %v4740, 2
        %v4742 = vadd.f32 %v4740, %v4741
        %v4743 = vrot.slane %v4742, 1
        %v4744 = vadd.f32 %v4742, %v4743
        %v4747 = vcombine.low %v4625, %v4632
        %v4749 = vunpack.c.l.s4 1966171168
        %v4750 = vunpack.c.0.s8 %v4749
        %v4751 = vlaneseq
        %v4752 = vshrl.u32 %v4751, 7
        %v4753 = vsub.s32 %v4750, %v4752
        %v4754 = vrot.slane %v4747, %v4753
        %v4756 = vunpack.c.l.s4 1966171168
        %v4757 = vunpack.c.0.s8 %v4756
        %v4758 = vlaneseq
        %v4759 = vshrl.u32 %v4758, 7
        %v4760 = vsub.s32 %v4757, %v4759
        %v4761 = vrot.slane %v4754, %v4760
        %s4763 = scalar_lea.vmem [#allocation2], 34
        %4764 = vst.msk [vmem:[%s4763] ss:$8 sm:$0x3] %vm2011, %v4761
        %4765 = vst.msk [vmem:[%s4763] ss:$8 sm:$0x0] %vm2011, %v4761
        %v4768 = vcombine.low %v4639, %v4646
        %v4770 = vunpack.c.l.s4 1966171168
        %v4771 = vunpack.c.0.s8 %v4770
        %v4772 = vlaneseq
        %v4773 = vshrl.u32 %v4772, 7
        %v4774 = vsub.s32 %v4771, %v4773
        %v4775 = vrot.slane %v4768, %v4774
        %v4777 = vunpack.c.l.s4 1966171168
        %v4778 = vunpack.c.0.s8 %v4777
        %v4779 = vlaneseq
        %v4780 = vshrl.u32 %v4779, 7
        %v4781 = vsub.s32 %v4778, %v4780
        %v4782 = vrot.slane %v4775, %v4781
        %s4784 = scalar_lea.vmem [#allocation2], 35
        %4785 = vst.msk [vmem:[%s4784] ss:$8 sm:$0x3] %vm2011, %v4782
        %4786 = vst.msk [vmem:[%s4784] ss:$8 sm:$0x0] %vm2011, %v4782
        %v4789 = vcombine.low %v4653, %v4660
        %v4791 = vunpack.c.l.s4 1966171168
        %v4792 = vunpack.c.0.s8 %v4791
        %v4793 = vlaneseq
        %v4794 = vshrl.u32 %v4793, 7
        %v4795 = vsub.s32 %v4792, %v4794
        %v4796 = vrot.slane %v4789, %v4795
        %v4798 = vunpack.c.l.s4 1966171168
        %v4799 = vunpack.c.0.s8 %v4798
        %v4800 = vlaneseq
        %v4801 = vshrl.u32 %v4800, 7
        %v4802 = vsub.s32 %v4799, %v4801
        %v4803 = vrot.slane %v4796, %v4802
        %s4805 = scalar_lea.vmem [#allocation2], 36
        %4806 = vst.msk [vmem:[%s4805] ss:$8 sm:$0x3] %vm2011, %v4803
        %4807 = vst.msk [vmem:[%s4805] ss:$8 sm:$0x0] %vm2011, %v4803
        %v4810 = vcombine.low %v4667, %v4674
        %v4812 = vunpack.c.l.s4 1966171168
        %v4813 = vunpack.c.0.s8 %v4812
        %v4814 = vlaneseq
        %v4815 = vshrl.u32 %v4814, 7
        %v4816 = vsub.s32 %v4813, %v4815
        %v4817 = vrot.slane %v4810, %v4816
        %v4819 = vunpack.c.l.s4 1966171168
        %v4820 = vunpack.c.0.s8 %v4819
        %v4821 = vlaneseq
        %v4822 = vshrl.u32 %v4821, 7
        %v4823 = vsub.s32 %v4820, %v4822
        %v4824 = vrot.slane %v4817, %v4823
        %s4826 = scalar_lea.vmem [#allocation2], 37
        %4827 = vst.msk [vmem:[%s4826] ss:$8 sm:$0x3] %vm2011, %v4824
        %4828 = vst.msk [vmem:[%s4826] ss:$8 sm:$0x0] %vm2011, %v4824
        %v4831 = vcombine.low %v4681, %v4688
        %v4833 = vunpack.c.l.s4 1966171168
        %v4834 = vunpack.c.0.s8 %v4833
        %v4835 = vlaneseq
        %v4836 = vshrl.u32 %v4835, 7
        %v4837 = vsub.s32 %v4834, %v4836
        %v4838 = vrot.slane %v4831, %v4837
        %v4840 = vunpack.c.l.s4 1966171168
        %v4841 = vunpack.c.0.s8 %v4840
        %v4842 = vlaneseq
        %v4843 = vshrl.u32 %v4842, 7
        %v4844 = vsub.s32 %v4841, %v4843
        %v4845 = vrot.slane %v4838, %v4844
        %s4847 = scalar_lea.vmem [#allocation2], 38
        %4848 = vst.msk [vmem:[%s4847] ss:$8 sm:$0x3] %vm2011, %v4845
        %4849 = vst.msk [vmem:[%s4847] ss:$8 sm:$0x0] %vm2011, %v4845
        %v4852 = vcombine.low %v4695, %v4702
        %v4854 = vunpack.c.l.s4 1966171168
        %v4855 = vunpack.c.0.s8 %v4854
        %v4856 = vlaneseq
        %v4857 = vshrl.u32 %v4856, 7
        %v4858 = vsub.s32 %v4855, %v4857
        %v4859 = vrot.slane %v4852, %v4858
        %v4861 = vunpack.c.l.s4 1966171168
        %v4862 = vunpack.c.0.s8 %v4861
        %v4863 = vlaneseq
        %v4864 = vshrl.u32 %v4863, 7
        %v4865 = vsub.s32 %v4862, %v4864
        %v4866 = vrot.slane %v4859, %v4865
        %s4868 = scalar_lea.vmem [#allocation2], 39
        %4869 = vst.msk [vmem:[%s4868] ss:$8 sm:$0x3] %vm2011, %v4866
        %4870 = vst.msk [vmem:[%s4868] ss:$8 sm:$0x0] %vm2011, %v4866
        %v4873 = vcombine.low %v4709, %v4716
        %v4875 = vunpack.c.l.s4 1966171168
        %v4876 = vunpack.c.0.s8 %v4875
        %v4877 = vlaneseq
        %v4878 = vshrl.u32 %v4877, 7
        %v4879 = vsub.s32 %v4876, %v4878
        %v4880 = vrot.slane %v4873, %v4879
        %v4882 = vunpack.c.l.s4 1966171168
        %v4883 = vunpack.c.0.s8 %v4882
        %v4884 = vlaneseq
        %v4885 = vshrl.u32 %v4884, 7
        %v4886 = vsub.s32 %v4883, %v4885
        %v4887 = vrot.slane %v4880, %v4886
        %s4889 = scalar_lea.vmem [#allocation2], 48
        %4890 = vst.msk [vmem:[%s4889] ss:$8 sm:$0x3] %vm2011, %v4887
        %4891 = vst.msk [vmem:[%s4889] ss:$8 sm:$0x0] %vm2011, %v4887
        %v4894 = vcombine.low %v4723, %v4730
        %v4896 = vunpack.c.l.s4 1966171168
        %v4897 = vunpack.c.0.s8 %v4896
        %v4898 = vlaneseq
        %v4899 = vshrl.u32 %v4898, 7
        %v4900 = vsub.s32 %v4897, %v4899
        %v4901 = vrot.slane %v4894, %v4900
        %v4903 = vunpack.c.l.s4 1966171168
        %v4904 = vunpack.c.0.s8 %v4903
        %v4905 = vlaneseq
        %v4906 = vshrl.u32 %v4905, 7
        %v4907 = vsub.s32 %v4904, %v4906
        %v4908 = vrot.slane %v4901, %v4907
        %s4910 = scalar_lea.vmem [#allocation2], 49
        %4911 = vst.msk [vmem:[%s4910] ss:$8 sm:$0x3] %vm2011, %v4908
        %4912 = vst.msk [vmem:[%s4910] ss:$8 sm:$0x0] %vm2011, %v4908
        %v4915 = vcombine.low %v4737, %v4744
        %v4917 = vunpack.c.l.s4 1966171168
        %v4918 = vunpack.c.0.s8 %v4917
        %v4919 = vlaneseq
        %v4920 = vshrl.u32 %v4919, 7
        %v4921 = vsub.s32 %v4918, %v4920
        %v4922 = vrot.slane %v4915, %v4921
        %v4924 = vunpack.c.l.s4 1966171168
        %v4925 = vunpack.c.0.s8 %v4924
        %v4926 = vlaneseq
        %v4927 = vshrl.u32 %v4926, 7
        %v4928 = vsub.s32 %v4925, %v4927
        %v4929 = vrot.slane %v4922, %v4928
        %s4931 = scalar_lea.vmem [#allocation2], 50
        %4932 = vst.msk [vmem:[%s4931] ss:$8 sm:$0x3] %vm2011, %v4929
        %4933 = vst.msk [vmem:[%s4931] ss:$8 sm:$0x0] %vm2011, %v4929
        %v4934 = vlaneseq
        %v4935 = vshrl.u32 %v4934, 7
        %v4936 = vsub.s32 3, %v4935
        %v4937 = vrot.slane %v726, %v4936
        %v4938 = vlaneseq
        %v4939 = vshrl.u32 %v4938, 7
        %v4940 = vsub.s32 7, %v4939
        %v4941 = vrot.slane %v726, %v4940
        %v4942 = vlaneseq
        %v4943 = vshrl.u32 %v4942, 7
        %v4944 = vsub.s32 3, %v4943
        %v4945 = vrot.slane %v727, %v4944
        %v4946 = vlaneseq
        %v4947 = vshrl.u32 %v4946, 7
        %v4948 = vsub.s32 7, %v4947
        %v4949 = vrot.slane %v727, %v4948
        %v4950 = vlaneseq
        %v4951 = vshrl.u32 %v4950, 7
        %v4952 = vsub.s32 3, %v4951
        %v4953 = vrot.slane %v728, %v4952
        %v4954 = vlaneseq
        %v4955 = vshrl.u32 %v4954, 7
        %v4956 = vsub.s32 7, %v4955
        %v4957 = vrot.slane %v728, %v4956
        %v4958 = vlaneseq
        %v4959 = vshrl.u32 %v4958, 7
        %v4960 = vsub.s32 3, %v4959
        %v4961 = vrot.slane %v729, %v4960
        %v4962 = vlaneseq
        %v4963 = vshrl.u32 %v4962, 7
        %v4964 = vsub.s32 7, %v4963
        %v4965 = vrot.slane %v729, %v4964
        %v4966 = vlaneseq
        %v4967 = vshrl.u32 %v4966, 7
        %v4968 = vsub.s32 3, %v4967
        %v4969 = vrot.slane %v730, %v4968
        %v4970 = vlaneseq
        %v4971 = vshrl.u32 %v4970, 7
        %v4972 = vsub.s32 7, %v4971
        %v4973 = vrot.slane %v730, %v4972
        %v4974 = vlaneseq
        %v4975 = vshrl.u32 %v4974, 7
        %v4976 = vsub.s32 3, %v4975
        %v4977 = vrot.slane %v731, %v4976
        %v4978 = vlaneseq
        %v4979 = vshrl.u32 %v4978, 7
        %v4980 = vsub.s32 7, %v4979
        %v4981 = vrot.slane %v731, %v4980
        %v4982 = vlaneseq
        %v4983 = vshrl.u32 %v4982, 7
        %v4984 = vsub.s32 3, %v4983
        %v4985 = vrot.slane %v732, %v4984
        %v4986 = vlaneseq
        %v4987 = vshrl.u32 %v4986, 7
        %v4988 = vsub.s32 7, %v4987
        %v4989 = vrot.slane %v732, %v4988
        %v4990 = vlaneseq
        %v4991 = vshrl.u32 %v4990, 7
        %v4992 = vsub.s32 3, %v4991
        %v4993 = vrot.slane %v733, %v4992
        %v4994 = vlaneseq
        %v4995 = vshrl.u32 %v4994, 7
        %v4996 = vsub.s32 7, %v4995
        %v4997 = vrot.slane %v733, %v4996
        %v4998 = vlaneseq
        %v4999 = vshrl.u32 %v4998, 7
        %v5000 = vsub.s32 3, %v4999
        %v5001 = vrot.slane %v734, %v5000
        %v5002 = vlaneseq
        %v5003 = vshrl.u32 %v5002, 7
        %v5004 = vsub.s32 7, %v5003
        %v5005 = vrot.slane %v734, %v5004
        %v5024 = vlaneseq
        %v5025 = vshrl.u32 %v5024, 7
        %v5026 = vsub.s32 3, %v5025
        %v5027 = vrot.slane %v4937, %v5026
        %v5028 = vlaneseq
        %v5029 = vshrl.u32 %v5028, 7
        %v5030 = vsub.s32 3, %v5029
        %v5031 = vrot.slane %v4941, %v5030
        %v5032 = vlaneseq
        %v5033 = vshrl.u32 %v5032, 7
        %v5034 = vsub.s32 3, %v5033
        %v5035 = vrot.slane %v4945, %v5034
        %v5036 = vlaneseq
        %v5037 = vshrl.u32 %v5036, 7
        %v5038 = vsub.s32 3, %v5037
        %v5039 = vrot.slane %v4949, %v5038
        %v5040 = vlaneseq
        %v5041 = vshrl.u32 %v5040, 7
        %v5042 = vsub.s32 3, %v5041
        %v5043 = vrot.slane %v4953, %v5042
        %v5044 = vlaneseq
        %v5045 = vshrl.u32 %v5044, 7
        %v5046 = vsub.s32 3, %v5045
        %v5047 = vrot.slane %v4957, %v5046
        %v5048 = vlaneseq
        %v5049 = vshrl.u32 %v5048, 7
        %v5050 = vsub.s32 3, %v5049
        %v5051 = vrot.slane %v4961, %v5050
        %v5052 = vlaneseq
        %v5053 = vshrl.u32 %v5052, 7
        %v5054 = vsub.s32 3, %v5053
        %v5055 = vrot.slane %v4965, %v5054
        %v5056 = vlaneseq
        %v5057 = vshrl.u32 %v5056, 7
        %v5058 = vsub.s32 3, %v5057
        %v5059 = vrot.slane %v4969, %v5058
        %v5060 = vlaneseq
        %v5061 = vshrl.u32 %v5060, 7
        %v5062 = vsub.s32 3, %v5061
        %v5063 = vrot.slane %v4973, %v5062
        %v5064 = vlaneseq
        %v5065 = vshrl.u32 %v5064, 7
        %v5066 = vsub.s32 3, %v5065
        %v5067 = vrot.slane %v4977, %v5066
        %v5068 = vlaneseq
        %v5069 = vshrl.u32 %v5068, 7
        %v5070 = vsub.s32 3, %v5069
        %v5071 = vrot.slane %v4981, %v5070
        %v5072 = vlaneseq
        %v5073 = vshrl.u32 %v5072, 7
        %v5074 = vsub.s32 3, %v5073
        %v5075 = vrot.slane %v4985, %v5074
        %v5076 = vlaneseq
        %v5077 = vshrl.u32 %v5076, 7
        %v5078 = vsub.s32 3, %v5077
        %v5079 = vrot.slane %v4989, %v5078
        %v5080 = vlaneseq
        %v5081 = vshrl.u32 %v5080, 7
        %v5082 = vsub.s32 3, %v5081
        %v5083 = vrot.slane %v4993, %v5082
        %v5084 = vlaneseq
        %v5085 = vshrl.u32 %v5084, 7
        %v5086 = vsub.s32 3, %v5085
        %v5087 = vrot.slane %v4997, %v5086
        %v5088 = vlaneseq
        %v5089 = vshrl.u32 %v5088, 7
        %v5090 = vsub.s32 3, %v5089
        %v5091 = vrot.slane %v5001, %v5090
        %v5092 = vlaneseq
        %v5093 = vshrl.u32 %v5092, 7
        %v5094 = vsub.s32 3, %v5093
        %v5095 = vrot.slane %v5005, %v5094
        %v5096 = vsub.f32 %v5027, %v774
        %v5097 = vsub.f32 %v5031, %v774
        %v5098 = vsub.f32 %v5035, %v774
        %v5099 = vsub.f32 %v5039, %v774
        %v5100 = vsub.f32 %v5043, %v774
        %v5101 = vsub.f32 %v5047, %v774
        %v5102 = vsub.f32 %v5051, %v774
        %v5103 = vsub.f32 %v5055, %v774
        %v5104 = vsub.f32 %v5059, %v774
        %v5105 = vsub.f32 %v5063, %v774
        %v5106 = vsub.f32 %v5067, %v774
        %v5107 = vsub.f32 %v5071, %v774
        %v5108 = vsub.f32 %v5075, %v774
        %v5109 = vsub.f32 %v5079, %v774
        %v5110 = vsub.f32 %v5083, %v774
        %v5111 = vsub.f32 %v5087, %v774
        %v5112 = vsub.f32 %v5091, %v774
        %v5113 = vsub.f32 %v5095, %v774
        %v5114 = vsub.f32 %v5027, %v775
        %v5115 = vsub.f32 %v5031, %v775
        %v5116 = vsub.f32 %v5035, %v775
        %v5117 = vsub.f32 %v5039, %v775
        %v5118 = vsub.f32 %v5043, %v775
        %v5119 = vsub.f32 %v5047, %v775
        %v5120 = vsub.f32 %v5051, %v775
        %v5121 = vsub.f32 %v5055, %v775
        %v5122 = vsub.f32 %v5059, %v775
        %v5123 = vsub.f32 %v5063, %v775
        %v5124 = vsub.f32 %v5067, %v775
        %v5125 = vsub.f32 %v5071, %v775
        %v5126 = vsub.f32 %v5075, %v775
        %v5127 = vsub.f32 %v5079, %v775
        %v5128 = vsub.f32 %v5083, %v775
        %v5129 = vsub.f32 %v5087, %v775
        %v5130 = vsub.f32 %v5091, %v775
        %v5131 = vsub.f32 %v5095, %v775
        %v5132 = vand.u32 2147483647, %v5096
        %v5133 = vand.u32 2147483647, %v5097
        %v5134 = vand.u32 2147483647, %v5098
        %v5135 = vand.u32 2147483647, %v5099
        %v5136 = vand.u32 2147483647, %v5100
        %v5137 = vand.u32 2147483647, %v5101
        %v5138 = vand.u32 2147483647, %v5102
        %v5139 = vand.u32 2147483647, %v5103
        %v5140 = vand.u32 2147483647, %v5104
        %v5141 = vand.u32 2147483647, %v5105
        %v5142 = vand.u32 2147483647, %v5106
        %v5143 = vand.u32 2147483647, %v5107
        %v5144 = vand.u32 2147483647, %v5108
        %v5145 = vand.u32 2147483647, %v5109
        %v5146 = vand.u32 2147483647, %v5110
        %v5147 = vand.u32 2147483647, %v5111
        %v5148 = vand.u32 2147483647, %v5112
        %v5149 = vand.u32 2147483647, %v5113
        %v5150 = vand.u32 2147483647, %v5114
        %v5151 = vand.u32 2147483647, %v5115
        %v5152 = vand.u32 2147483647, %v5116
        %v5153 = vand.u32 2147483647, %v5117
        %v5154 = vand.u32 2147483647, %v5118
        %v5155 = vand.u32 2147483647, %v5119
        %v5156 = vand.u32 2147483647, %v5120
        %v5157 = vand.u32 2147483647, %v5121
        %v5158 = vand.u32 2147483647, %v5122
        %v5159 = vand.u32 2147483647, %v5123
        %v5160 = vand.u32 2147483647, %v5124
        %v5161 = vand.u32 2147483647, %v5125
        %v5162 = vand.u32 2147483647, %v5126
        %v5163 = vand.u32 2147483647, %v5127
        %v5164 = vand.u32 2147483647, %v5128
        %v5165 = vand.u32 2147483647, %v5129
        %v5166 = vand.u32 2147483647, %v5130
        %v5167 = vand.u32 2147483647, %v5131
        %v5168 = vsub.f32 1.0, %v5132
        %v5169 = vsub.f32 1.0, %v5133
        %v5170 = vsub.f32 1.0, %v5134
        %v5171 = vsub.f32 1.0, %v5135
        %v5172 = vsub.f32 1.0, %v5136
        %v5173 = vsub.f32 1.0, %v5137
        %v5174 = vsub.f32 1.0, %v5138
        %v5175 = vsub.f32 1.0, %v5139
        %v5176 = vsub.f32 1.0, %v5140
        %v5177 = vsub.f32 1.0, %v5141
        %v5178 = vsub.f32 1.0, %v5142
        %v5179 = vsub.f32 1.0, %v5143
        %v5180 = vsub.f32 1.0, %v5144
        %v5181 = vsub.f32 1.0, %v5145
        %v5182 = vsub.f32 1.0, %v5146
        %v5183 = vsub.f32 1.0, %v5147
        %v5184 = vsub.f32 1.0, %v5148
        %v5185 = vsub.f32 1.0, %v5149
        %v5186 = vsub.f32 1.0, %v5150
        %v5187 = vsub.f32 1.0, %v5151
        %v5188 = vsub.f32 1.0, %v5152
        %v5189 = vsub.f32 1.0, %v5153
        %v5190 = vsub.f32 1.0, %v5154
        %v5191 = vsub.f32 1.0, %v5155
        %v5192 = vsub.f32 1.0, %v5156
        %v5193 = vsub.f32 1.0, %v5157
        %v5194 = vsub.f32 1.0, %v5158
        %v5195 = vsub.f32 1.0, %v5159
        %v5196 = vsub.f32 1.0, %v5160
        %v5197 = vsub.f32 1.0, %v5161
        %v5198 = vsub.f32 1.0, %v5162
        %v5199 = vsub.f32 1.0, %v5163
        %v5200 = vsub.f32 1.0, %v5164
        %v5201 = vsub.f32 1.0, %v5165
        %v5202 = vsub.f32 1.0, %v5166
        %v5203 = vsub.f32 1.0, %v5167
        %v5204 = vmax.f32 %v5168, 0.0
        %v5205 = vmax.f32 %v5169, 0.0
        %v5206 = vmax.f32 %v5170, 0.0
        %v5207 = vmax.f32 %v5171, 0.0
        %v5208 = vmax.f32 %v5172, 0.0
        %v5209 = vmax.f32 %v5173, 0.0
        %v5210 = vmax.f32 %v5174, 0.0
        %v5211 = vmax.f32 %v5175, 0.0
        %v5212 = vmax.f32 %v5176, 0.0
        %v5213 = vmax.f32 %v5177, 0.0
        %v5214 = vmax.f32 %v5178, 0.0
        %v5215 = vmax.f32 %v5179, 0.0
        %v5216 = vmax.f32 %v5180, 0.0
        %v5217 = vmax.f32 %v5181, 0.0
        %v5218 = vmax.f32 %v5182, 0.0
        %v5219 = vmax.f32 %v5183, 0.0
        %v5220 = vmax.f32 %v5184, 0.0
        %v5221 = vmax.f32 %v5185, 0.0
        %v5222 = vmax.f32 %v5186, 0.0
        %v5223 = vmax.f32 %v5187, 0.0
        %v5224 = vmax.f32 %v5188, 0.0
        %v5225 = vmax.f32 %v5189, 0.0
        %v5226 = vmax.f32 %v5190, 0.0
        %v5227 = vmax.f32 %v5191, 0.0
        %v5228 = vmax.f32 %v5192, 0.0
        %v5229 = vmax.f32 %v5193, 0.0
        %v5230 = vmax.f32 %v5194, 0.0
        %v5231 = vmax.f32 %v5195, 0.0
        %v5232 = vmax.f32 %v5196, 0.0
        %v5233 = vmax.f32 %v5197, 0.0
        %v5234 = vmax.f32 %v5198, 0.0
        %v5235 = vmax.f32 %v5199, 0.0
        %v5236 = vmax.f32 %v5200, 0.0
        %v5237 = vmax.f32 %v5201, 0.0
        %v5238 = vmax.f32 %v5202, 0.0
        %v5239 = vmax.f32 %v5203, 0.0
        %v5240 = vlaneseq
        %v5241 = vshrl.u32 %v5240, 7
        %v5242 = vsub.s32 3, %v5241
        %v5243 = vrot.slane %v762, %v5242
        %v5244 = vlaneseq
        %v5245 = vshrl.u32 %v5244, 7
        %v5246 = vsub.s32 7, %v5245
        %v5247 = vrot.slane %v762, %v5246
        %v5248 = vlaneseq
        %v5249 = vshrl.u32 %v5248, 7
        %v5250 = vsub.s32 3, %v5249
        %v5251 = vrot.slane %v763, %v5250
        %v5252 = vlaneseq
        %v5253 = vshrl.u32 %v5252, 7
        %v5254 = vsub.s32 7, %v5253
        %v5255 = vrot.slane %v763, %v5254
        %v5256 = vlaneseq
        %v5257 = vshrl.u32 %v5256, 7
        %v5258 = vsub.s32 3, %v5257
        %v5259 = vrot.slane %v764, %v5258
        %v5260 = vlaneseq
        %v5261 = vshrl.u32 %v5260, 7
        %v5262 = vsub.s32 7, %v5261
        %v5263 = vrot.slane %v764, %v5262
        %v5264 = vlaneseq
        %v5265 = vshrl.u32 %v5264, 7
        %v5266 = vsub.s32 3, %v5265
        %v5267 = vrot.slane %v765, %v5266
        %v5268 = vlaneseq
        %v5269 = vshrl.u32 %v5268, 7
        %v5270 = vsub.s32 7, %v5269
        %v5271 = vrot.slane %v765, %v5270
        %v5272 = vlaneseq
        %v5273 = vshrl.u32 %v5272, 7
        %v5274 = vsub.s32 3, %v5273
        %v5275 = vrot.slane %v766, %v5274
        %v5276 = vlaneseq
        %v5277 = vshrl.u32 %v5276, 7
        %v5278 = vsub.s32 7, %v5277
        %v5279 = vrot.slane %v766, %v5278
        %v5280 = vlaneseq
        %v5281 = vshrl.u32 %v5280, 7
        %v5282 = vsub.s32 3, %v5281
        %v5283 = vrot.slane %v767, %v5282
        %v5284 = vlaneseq
        %v5285 = vshrl.u32 %v5284, 7
        %v5286 = vsub.s32 7, %v5285
        %v5287 = vrot.slane %v767, %v5286
        %v5288 = vlaneseq
        %v5289 = vshrl.u32 %v5288, 7
        %v5290 = vsub.s32 3, %v5289
        %v5291 = vrot.slane %v768, %v5290
        %v5292 = vlaneseq
        %v5293 = vshrl.u32 %v5292, 7
        %v5294 = vsub.s32 7, %v5293
        %v5295 = vrot.slane %v768, %v5294
        %v5296 = vlaneseq
        %v5297 = vshrl.u32 %v5296, 7
        %v5298 = vsub.s32 3, %v5297
        %v5299 = vrot.slane %v769, %v5298
        %v5300 = vlaneseq
        %v5301 = vshrl.u32 %v5300, 7
        %v5302 = vsub.s32 7, %v5301
        %v5303 = vrot.slane %v769, %v5302
        %v5304 = vlaneseq
        %v5305 = vshrl.u32 %v5304, 7
        %v5306 = vsub.s32 3, %v5305
        %v5307 = vrot.slane %v770, %v5306
        %v5308 = vlaneseq
        %v5309 = vshrl.u32 %v5308, 7
        %v5310 = vsub.s32 7, %v5309
        %v5311 = vrot.slane %v770, %v5310
        %v5330 = vlaneseq
        %v5331 = vshrl.u32 %v5330, 7
        %v5332 = vsub.s32 3, %v5331
        %v5333 = vrot.slane %v5243, %v5332
        %v5334 = vlaneseq
        %v5335 = vshrl.u32 %v5334, 7
        %v5336 = vsub.s32 3, %v5335
        %v5337 = vrot.slane %v5247, %v5336
        %v5338 = vlaneseq
        %v5339 = vshrl.u32 %v5338, 7
        %v5340 = vsub.s32 3, %v5339
        %v5341 = vrot.slane %v5251, %v5340
        %v5342 = vlaneseq
        %v5343 = vshrl.u32 %v5342, 7
        %v5344 = vsub.s32 3, %v5343
        %v5345 = vrot.slane %v5255, %v5344
        %v5346 = vlaneseq
        %v5347 = vshrl.u32 %v5346, 7
        %v5348 = vsub.s32 3, %v5347
        %v5349 = vrot.slane %v5259, %v5348
        %v5350 = vlaneseq
        %v5351 = vshrl.u32 %v5350, 7
        %v5352 = vsub.s32 3, %v5351
        %v5353 = vrot.slane %v5263, %v5352
        %v5354 = vlaneseq
        %v5355 = vshrl.u32 %v5354, 7
        %v5356 = vsub.s32 3, %v5355
        %v5357 = vrot.slane %v5267, %v5356
        %v5358 = vlaneseq
        %v5359 = vshrl.u32 %v5358, 7
        %v5360 = vsub.s32 3, %v5359
        %v5361 = vrot.slane %v5271, %v5360
        %v5362 = vlaneseq
        %v5363 = vshrl.u32 %v5362, 7
        %v5364 = vsub.s32 3, %v5363
        %v5365 = vrot.slane %v5275, %v5364
        %v5366 = vlaneseq
        %v5367 = vshrl.u32 %v5366, 7
        %v5368 = vsub.s32 3, %v5367
        %v5369 = vrot.slane %v5279, %v5368
        %v5370 = vlaneseq
        %v5371 = vshrl.u32 %v5370, 7
        %v5372 = vsub.s32 3, %v5371
        %v5373 = vrot.slane %v5283, %v5372
        %v5374 = vlaneseq
        %v5375 = vshrl.u32 %v5374, 7
        %v5376 = vsub.s32 3, %v5375
        %v5377 = vrot.slane %v5287, %v5376
        %v5378 = vlaneseq
        %v5379 = vshrl.u32 %v5378, 7
        %v5380 = vsub.s32 3, %v5379
        %v5381 = vrot.slane %v5291, %v5380
        %v5382 = vlaneseq
        %v5383 = vshrl.u32 %v5382, 7
        %v5384 = vsub.s32 3, %v5383
        %v5385 = vrot.slane %v5295, %v5384
        %v5386 = vlaneseq
        %v5387 = vshrl.u32 %v5386, 7
        %v5388 = vsub.s32 3, %v5387
        %v5389 = vrot.slane %v5299, %v5388
        %v5390 = vlaneseq
        %v5391 = vshrl.u32 %v5390, 7
        %v5392 = vsub.s32 3, %v5391
        %v5393 = vrot.slane %v5303, %v5392
        %v5394 = vlaneseq
        %v5395 = vshrl.u32 %v5394, 7
        %v5396 = vsub.s32 3, %v5395
        %v5397 = vrot.slane %v5307, %v5396
        %v5398 = vlaneseq
        %v5399 = vshrl.u32 %v5398, 7
        %v5400 = vsub.s32 3, %v5399
        %v5401 = vrot.slane %v5311, %v5400
        %v5402 = vsub.f32 %v5333, %v774
        %v5403 = vsub.f32 %v5337, %v774
        %v5404 = vsub.f32 %v5341, %v774
        %v5405 = vsub.f32 %v5345, %v774
        %v5406 = vsub.f32 %v5349, %v774
        %v5407 = vsub.f32 %v5353, %v774
        %v5408 = vsub.f32 %v5357, %v774
        %v5409 = vsub.f32 %v5361, %v774
        %v5410 = vsub.f32 %v5365, %v774
        %v5411 = vsub.f32 %v5369, %v774
        %v5412 = vsub.f32 %v5373, %v774
        %v5413 = vsub.f32 %v5377, %v774
        %v5414 = vsub.f32 %v5381, %v774
        %v5415 = vsub.f32 %v5385, %v774
        %v5416 = vsub.f32 %v5389, %v774
        %v5417 = vsub.f32 %v5393, %v774
        %v5418 = vsub.f32 %v5397, %v774
        %v5419 = vsub.f32 %v5401, %v774
        %v5420 = vsub.f32 %v5333, %v775
        %v5421 = vsub.f32 %v5337, %v775
        %v5422 = vsub.f32 %v5341, %v775
        %v5423 = vsub.f32 %v5345, %v775
        %v5424 = vsub.f32 %v5349, %v775
        %v5425 = vsub.f32 %v5353, %v775
        %v5426 = vsub.f32 %v5357, %v775
        %v5427 = vsub.f32 %v5361, %v775
        %v5428 = vsub.f32 %v5365, %v775
        %v5429 = vsub.f32 %v5369, %v775
        %v5430 = vsub.f32 %v5373, %v775
        %v5431 = vsub.f32 %v5377, %v775
        %v5432 = vsub.f32 %v5381, %v775
        %v5433 = vsub.f32 %v5385, %v775
        %v5434 = vsub.f32 %v5389, %v775
        %v5435 = vsub.f32 %v5393, %v775
        %v5436 = vsub.f32 %v5397, %v775
        %v5437 = vsub.f32 %v5401, %v775
        %v5438 = vand.u32 2147483647, %v5402
        %v5439 = vand.u32 2147483647, %v5403
        %v5440 = vand.u32 2147483647, %v5404
        %v5441 = vand.u32 2147483647, %v5405
        %v5442 = vand.u32 2147483647, %v5406
        %v5443 = vand.u32 2147483647, %v5407
        %v5444 = vand.u32 2147483647, %v5408
        %v5445 = vand.u32 2147483647, %v5409
        %v5446 = vand.u32 2147483647, %v5410
        %v5447 = vand.u32 2147483647, %v5411
        %v5448 = vand.u32 2147483647, %v5412
        %v5449 = vand.u32 2147483647, %v5413
        %v5450 = vand.u32 2147483647, %v5414
        %v5451 = vand.u32 2147483647, %v5415
        %v5452 = vand.u32 2147483647, %v5416
        %v5453 = vand.u32 2147483647, %v5417
        %v5454 = vand.u32 2147483647, %v5418
        %v5455 = vand.u32 2147483647, %v5419
        %v5456 = vand.u32 2147483647, %v5420
        %v5457 = vand.u32 2147483647, %v5421
        %v5458 = vand.u32 2147483647, %v5422
        %v5459 = vand.u32 2147483647, %v5423
        %v5460 = vand.u32 2147483647, %v5424
        %v5461 = vand.u32 2147483647, %v5425
        %v5462 = vand.u32 2147483647, %v5426
        %v5463 = vand.u32 2147483647, %v5427
        %v5464 = vand.u32 2147483647, %v5428
        %v5465 = vand.u32 2147483647, %v5429
        %v5466 = vand.u32 2147483647, %v5430
        %v5467 = vand.u32 2147483647, %v5431
        %v5468 = vand.u32 2147483647, %v5432
        %v5469 = vand.u32 2147483647, %v5433
        %v5470 = vand.u32 2147483647, %v5434
        %v5471 = vand.u32 2147483647, %v5435
        %v5472 = vand.u32 2147483647, %v5436
        %v5473 = vand.u32 2147483647, %v5437
        %v5474 = vsub.f32 1.0, %v5438
        %v5475 = vsub.f32 1.0, %v5439
        %v5476 = vsub.f32 1.0, %v5440
        %v5477 = vsub.f32 1.0, %v5441
        %v5478 = vsub.f32 1.0, %v5442
        %v5479 = vsub.f32 1.0, %v5443
        %v5480 = vsub.f32 1.0, %v5444
        %v5481 = vsub.f32 1.0, %v5445
        %v5482 = vsub.f32 1.0, %v5446
        %v5483 = vsub.f32 1.0, %v5447
        %v5484 = vsub.f32 1.0, %v5448
        %v5485 = vsub.f32 1.0, %v5449
        %v5486 = vsub.f32 1.0, %v5450
        %v5487 = vsub.f32 1.0, %v5451
        %v5488 = vsub.f32 1.0, %v5452
        %v5489 = vsub.f32 1.0, %v5453
        %v5490 = vsub.f32 1.0, %v5454
        %v5491 = vsub.f32 1.0, %v5455
        %v5492 = vsub.f32 1.0, %v5456
        %v5493 = vsub.f32 1.0, %v5457
        %v5494 = vsub.f32 1.0, %v5458
        %v5495 = vsub.f32 1.0, %v5459
        %v5496 = vsub.f32 1.0, %v5460
        %v5497 = vsub.f32 1.0, %v5461
        %v5498 = vsub.f32 1.0, %v5462
        %v5499 = vsub.f32 1.0, %v5463
        %v5500 = vsub.f32 1.0, %v5464
        %v5501 = vsub.f32 1.0, %v5465
        %v5502 = vsub.f32 1.0, %v5466
        %v5503 = vsub.f32 1.0, %v5467
        %v5504 = vsub.f32 1.0, %v5468
        %v5505 = vsub.f32 1.0, %v5469
        %v5506 = vsub.f32 1.0, %v5470
        %v5507 = vsub.f32 1.0, %v5471
        %v5508 = vsub.f32 1.0, %v5472
        %v5509 = vsub.f32 1.0, %v5473
        %v5510 = vmax.f32 %v5474, 0.0
        %v5511 = vmax.f32 %v5475, 0.0
        %v5512 = vmax.f32 %v5476, 0.0
        %v5513 = vmax.f32 %v5477, 0.0
        %v5514 = vmax.f32 %v5478, 0.0
        %v5515 = vmax.f32 %v5479, 0.0
        %v5516 = vmax.f32 %v5480, 0.0
        %v5517 = vmax.f32 %v5481, 0.0
        %v5518 = vmax.f32 %v5482, 0.0
        %v5519 = vmax.f32 %v5483, 0.0
        %v5520 = vmax.f32 %v5484, 0.0
        %v5521 = vmax.f32 %v5485, 0.0
        %v5522 = vmax.f32 %v5486, 0.0
        %v5523 = vmax.f32 %v5487, 0.0
        %v5524 = vmax.f32 %v5488, 0.0
        %v5525 = vmax.f32 %v5489, 0.0
        %v5526 = vmax.f32 %v5490, 0.0
        %v5527 = vmax.f32 %v5491, 0.0
        %v5528 = vmax.f32 %v5492, 0.0
        %v5529 = vmax.f32 %v5493, 0.0
        %v5530 = vmax.f32 %v5494, 0.0
        %v5531 = vmax.f32 %v5495, 0.0
        %v5532 = vmax.f32 %v5496, 0.0
        %v5533 = vmax.f32 %v5497, 0.0
        %v5534 = vmax.f32 %v5498, 0.0
        %v5535 = vmax.f32 %v5499, 0.0
        %v5536 = vmax.f32 %v5500, 0.0
        %v5537 = vmax.f32 %v5501, 0.0
        %v5538 = vmax.f32 %v5502, 0.0
        %v5539 = vmax.f32 %v5503, 0.0
        %v5540 = vmax.f32 %v5504, 0.0
        %v5541 = vmax.f32 %v5505, 0.0
        %v5542 = vmax.f32 %v5506, 0.0
        %v5543 = vmax.f32 %v5507, 0.0
        %v5544 = vmax.f32 %v5508, 0.0
        %v5545 = vmax.f32 %v5509, 0.0
        %v5546 = vpack.c.bf16 %v5528, %v5510
        %v5547 = vpack.c.bf16 %v5529, %v5511
        %v5548 = vpack.c.bf16 %v5530, %v5512
        %v5549 = vpack.c.bf16 %v5531, %v5513
        %v5550 = vpack.c.bf16 %v5532, %v5514
        %v5551 = vpack.c.bf16 %v5533, %v5515
        %v5552 = vpack.c.bf16 %v5534, %v5516
        %v5553 = vpack.c.bf16 %v5535, %v5517
        %v5554 = vpack.c.bf16 %v5536, %v5518
        %v5555 = vpack.c.bf16 %v5537, %v5519
        %v5556 = vpack.c.bf16 %v5538, %v5520
        %v5557 = vpack.c.bf16 %v5539, %v5521
        %v5558 = vpack.c.bf16 %v5540, %v5522
        %v5559 = vpack.c.bf16 %v5541, %v5523
        %v5560 = vpack.c.bf16 %v5542, %v5524
        %v5561 = vpack.c.bf16 %v5543, %v5525
        %v5562 = vpack.c.bf16 %v5544, %v5526
        %v5563 = vpack.c.bf16 %v5545, %v5527
        %v5566 = vunpack.c.l.b16 %v782
        %v5567 = vunpack.c.l.b16 %v783
        %v5568 = vpack.c.b16 %v5567, %v5566
        %v5570 = vsel %vm1437, %v5568, 0
        %5572 = vmatprep.subr.bf16.mxu0 0
        %5573 = vmatpush1.bf16.msra.mxu0 0
        %5574 = vmatprep.subr.bf16.mxu0 0
        %5575 = vmatpush1.bf16.msra.mxu0 0
        %5576 = vmatprep.subr.bf16.mxu0 0
        %5577 = vmatpush1.bf16.msra.mxu0 0
        %5578 = vmatprep.subr.bf16.mxu0 0
        %5579 = vmatpush1.bf16.msra.mxu0 0
        %5580 = vmatprep.subr.bf16.mxu0 0
        %5581 = vmatpush1.bf16.msra.mxu0 0
        %5582 = vmatprep.subr.bf16.mxu0 0
        %5583 = vmatpush1.bf16.msra.mxu0 0
        %5584 = vmatprep.subr.bf16.mxu0 0
        %5585 = vmatpush1.bf16.msra.mxu0 0
        %5586 = vmatprep.subr.bf16.mxu0 %v5547
        %5587 = vmatpush1.bf16.msra.mxu0 %v5546
        %5588 = vmatprep.subr.bf16.mxu0 0
        %5589 = vmatpush2.bf16.msra.mxu0 0
        %5590 = vmatprep.subr.bf16.mxu0 0
        %5591 = vmatpush2.bf16.msra.mxu0 0
        %5592 = vmatprep.subr.bf16.mxu0 0
        %5593 = vmatpush2.bf16.msra.mxu0 0
        %5594 = vmatprep.subr.bf16.mxu0 0
        %5595 = vmatpush2.bf16.msra.mxu0 0
        %5596 = vmatprep.subr.bf16.mxu0 0
        %5597 = vmatpush2.bf16.msra.mxu0 0
        %5598 = vmatprep.subr.bf16.mxu0 0
        %5599 = vmatpush2.bf16.msra.mxu0 0
        %5600 = vmatprep.subr.bf16.mxu0 0
        %5601 = vmatpush2.bf16.msra.mxu0 0
        %5602 = vmatprep.subr.bf16.mxu0 0
        %5603 = vmatpush2.bf16.msra.mxu0 0
        %5604 = vmatprep.mubr.bf16.mxu0 0
        %5605 = vmatmul.mubr.bf16.gmra.mxu0 %v5570
        %v5606 = vpop.f32.mrf.mxu0
        %v5607 = vadd.f32 0.0, %v5606
        %v5608 = vpop.f32.mrf.mxu0
        %v5609 = vadd.f32 0.0, %v5608
        %v5610 = vpop.f32.mrf.mxu0
        %v5611 = vadd.f32 0.0, %v5610
        %v5612 = vpop.f32.mrf.mxu0
        %v5613 = vadd.f32 0.0, %v5612
        %5614 = vdwg.mxu0
        %5615 = vmatprep.subr.bf16.mxu0 0
        %5616 = vmatpush1.bf16.msra.mxu0 0
        %5617 = vmatprep.subr.bf16.mxu0 0
        %5618 = vmatpush1.bf16.msra.mxu0 0
        %5619 = vmatprep.subr.bf16.mxu0 0
        %5620 = vmatpush1.bf16.msra.mxu0 0
        %5621 = vmatprep.subr.bf16.mxu0 0
        %5622 = vmatpush1.bf16.msra.mxu0 0
        %5623 = vmatprep.subr.bf16.mxu0 0
        %5624 = vmatpush1.bf16.msra.mxu0 0
        %5625 = vmatprep.subr.bf16.mxu0 0
        %5626 = vmatpush1.bf16.msra.mxu0 0
        %5627 = vmatprep.subr.bf16.mxu0 0
        %5628 = vmatpush1.bf16.msra.mxu0 0
        %5629 = vmatprep.subr.bf16.mxu0 %v5549
        %5630 = vmatpush1.bf16.msra.mxu0 %v5548
        %5631 = vmatprep.subr.bf16.mxu0 0
        %5632 = vmatpush2.bf16.msra.mxu0 0
        %5633 = vmatprep.subr.bf16.mxu0 0
        %5634 = vmatpush2.bf16.msra.mxu0 0
        %5635 = vmatprep.subr.bf16.mxu0 0
        %5636 = vmatpush2.bf16.msra.mxu0 0
        %5637 = vmatprep.subr.bf16.mxu0 0
        %5638 = vmatpush2.bf16.msra.mxu0 0
        %5639 = vmatprep.subr.bf16.mxu0 0
        %5640 = vmatpush2.bf16.msra.mxu0 0
        %5641 = vmatprep.subr.bf16.mxu0 0
        %5642 = vmatpush2.bf16.msra.mxu0 0
        %5643 = vmatprep.subr.bf16.mxu0 0
        %5644 = vmatpush2.bf16.msra.mxu0 0
        %5645 = vmatprep.subr.bf16.mxu0 0
        %5646 = vmatpush2.bf16.msra.mxu0 0
        %5647 = vmatprep.mubr.bf16.mxu0 0
        %5648 = vmatmul.mubr.bf16.gmra.mxu0 %v5570
        %v5649 = vpop.f32.mrf.mxu0
        %v5650 = vadd.f32 0.0, %v5649
        %v5651 = vpop.f32.mrf.mxu0
        %v5652 = vadd.f32 0.0, %v5651
        %v5653 = vpop.f32.mrf.mxu0
        %v5654 = vadd.f32 0.0, %v5653
        %v5655 = vpop.f32.mrf.mxu0
        %v5656 = vadd.f32 0.0, %v5655
        %5657 = vdwg.mxu0
        %5658 = vmatprep.subr.bf16.mxu0 0
        %5659 = vmatpush1.bf16.msra.mxu0 0
        %5660 = vmatprep.subr.bf16.mxu0 0
        %5661 = vmatpush1.bf16.msra.mxu0 0
        %5662 = vmatprep.subr.bf16.mxu0 0
        %5663 = vmatpush1.bf16.msra.mxu0 0
        %5664 = vmatprep.subr.bf16.mxu0 0
        %5665 = vmatpush1.bf16.msra.mxu0 0
        %5666 = vmatprep.subr.bf16.mxu0 0
        %5667 = vmatpush1.bf16.msra.mxu0 0
        %5668 = vmatprep.subr.bf16.mxu0 0
        %5669 = vmatpush1.bf16.msra.mxu0 0
        %5670 = vmatprep.subr.bf16.mxu0 0
        %5671 = vmatpush1.bf16.msra.mxu0 0
        %5672 = vmatprep.subr.bf16.mxu0 %v5551
        %5673 = vmatpush1.bf16.msra.mxu0 %v5550
        %5674 = vmatprep.subr.bf16.mxu0 0
        %5675 = vmatpush2.bf16.msra.mxu0 0
        %5676 = vmatprep.subr.bf16.mxu0 0
        %5677 = vmatpush2.bf16.msra.mxu0 0
        %5678 = vmatprep.subr.bf16.mxu0 0
        %5679 = vmatpush2.bf16.msra.mxu0 0
        %5680 = vmatprep.subr.bf16.mxu0 0
        %5681 = vmatpush2.bf16.msra.mxu0 0
        %5682 = vmatprep.subr.bf16.mxu0 0
        %5683 = vmatpush2.bf16.msra.mxu0 0
        %5684 = vmatprep.subr.bf16.mxu0 0
        %5685 = vmatpush2.bf16.msra.mxu0 0
        %5686 = vmatprep.subr.bf16.mxu0 0
        %5687 = vmatpush2.bf16.msra.mxu0 0
        %5688 = vmatprep.subr.bf16.mxu0 0
        %5689 = vmatpush2.bf16.msra.mxu0 0
        %5690 = vmatprep.mubr.bf16.mxu0 0
        %5691 = vmatmul.mubr.bf16.gmra.mxu0 %v5570
        %v5692 = vpop.f32.mrf.mxu0
        %v5693 = vadd.f32 0.0, %v5692
        %v5694 = vpop.f32.mrf.mxu0
        %v5695 = vadd.f32 0.0, %v5694
        %v5696 = vpop.f32.mrf.mxu0
        %v5697 = vadd.f32 0.0, %v5696
        %v5698 = vpop.f32.mrf.mxu0
        %v5699 = vadd.f32 0.0, %v5698
        %5700 = vdwg.mxu0
        %5701 = vmatprep.subr.bf16.mxu0 0
        %5702 = vmatpush1.bf16.msra.mxu0 0
        %5703 = vmatprep.subr.bf16.mxu0 0
        %5704 = vmatpush1.bf16.msra.mxu0 0
        %5705 = vmatprep.subr.bf16.mxu0 0
        %5706 = vmatpush1.bf16.msra.mxu0 0
        %5707 = vmatprep.subr.bf16.mxu0 0
        %5708 = vmatpush1.bf16.msra.mxu0 0
        %5709 = vmatprep.subr.bf16.mxu0 0
        %5710 = vmatpush1.bf16.msra.mxu0 0
        %5711 = vmatprep.subr.bf16.mxu0 0
        %5712 = vmatpush1.bf16.msra.mxu0 0
        %5713 = vmatprep.subr.bf16.mxu0 0
        %5714 = vmatpush1.bf16.msra.mxu0 0
        %5715 = vmatprep.subr.bf16.mxu0 %v5553
        %5716 = vmatpush1.bf16.msra.mxu0 %v5552
        %5717 = vmatprep.subr.bf16.mxu0 0
        %5718 = vmatpush2.bf16.msra.mxu0 0
        %5719 = vmatprep.subr.bf16.mxu0 0
        %5720 = vmatpush2.bf16.msra.mxu0 0
        %5721 = vmatprep.subr.bf16.mxu0 0
        %5722 = vmatpush2.bf16.msra.mxu0 0
        %5723 = vmatprep.subr.bf16.mxu0 0
        %5724 = vmatpush2.bf16.msra.mxu0 0
        %5725 = vmatprep.subr.bf16.mxu0 0
        %5726 = vmatpush2.bf16.msra.mxu0 0
        %5727 = vmatprep.subr.bf16.mxu0 0
        %5728 = vmatpush2.bf16.msra.mxu0 0
        %5729 = vmatprep.subr.bf16.mxu0 0
        %5730 = vmatpush2.bf16.msra.mxu0 0
        %5731 = vmatprep.subr.bf16.mxu0 0
        %5732 = vmatpush2.bf16.msra.mxu0 0
        %5733 = vmatprep.mubr.bf16.mxu0 0
        %5734 = vmatmul.mubr.bf16.gmra.mxu0 %v5570
        %v5735 = vpop.f32.mrf.mxu0
        %v5736 = vadd.f32 0.0, %v5735
        %v5737 = vpop.f32.mrf.mxu0
        %v5738 = vadd.f32 0.0, %v5737
        %v5739 = vpop.f32.mrf.mxu0
        %v5740 = vadd.f32 0.0, %v5739
        %v5741 = vpop.f32.mrf.mxu0
        %v5742 = vadd.f32 0.0, %v5741
        %5743 = vdwg.mxu0
        %5744 = vmatprep.subr.bf16.mxu0 0
        %5745 = vmatpush1.bf16.msra.mxu0 0
        %5746 = vmatprep.subr.bf16.mxu0 0
        %5747 = vmatpush1.bf16.msra.mxu0 0
        %5748 = vmatprep.subr.bf16.mxu0 0
        %5749 = vmatpush1.bf16.msra.mxu0 0
        %5750 = vmatprep.subr.bf16.mxu0 0
        %5751 = vmatpush1.bf16.msra.mxu0 0
        %5752 = vmatprep.subr.bf16.mxu0 0
        %5753 = vmatpush1.bf16.msra.mxu0 0
        %5754 = vmatprep.subr.bf16.mxu0 0
        %5755 = vmatpush1.bf16.msra.mxu0 0
        %5756 = vmatprep.subr.bf16.mxu0 0
        %5757 = vmatpush1.bf16.msra.mxu0 0
        %5758 = vmatprep.subr.bf16.mxu0 %v5555
        %5759 = vmatpush1.bf16.msra.mxu0 %v5554
        %5760 = vmatprep.subr.bf16.mxu0 0
        %5761 = vmatpush2.bf16.msra.mxu0 0
        %5762 = vmatprep.subr.bf16.mxu0 0
        %5763 = vmatpush2.bf16.msra.mxu0 0
        %5764 = vmatprep.subr.bf16.mxu0 0
        %5765 = vmatpush2.bf16.msra.mxu0 0
        %5766 = vmatprep.subr.bf16.mxu0 0
        %5767 = vmatpush2.bf16.msra.mxu0 0
        %5768 = vmatprep.subr.bf16.mxu0 0
        %5769 = vmatpush2.bf16.msra.mxu0 0
        %5770 = vmatprep.subr.bf16.mxu0 0
        %5771 = vmatpush2.bf16.msra.mxu0 0
        %5772 = vmatprep.subr.bf16.mxu0 0
        %5773 = vmatpush2.bf16.msra.mxu0 0
        %5774 = vmatprep.subr.bf16.mxu0 0
        %5775 = vmatpush2.bf16.msra.mxu0 0
        %5776 = vmatprep.mubr.bf16.mxu0 0
        %5777 = vmatmul.mubr.bf16.gmra.mxu0 %v5570
        %v5778 = vpop.f32.mrf.mxu0
        %v5779 = vadd.f32 0.0, %v5778
        %v5780 = vpop.f32.mrf.mxu0
        %v5781 = vadd.f32 0.0, %v5780
        %v5782 = vpop.f32.mrf.mxu0
        %v5783 = vadd.f32 0.0, %v5782
        %v5784 = vpop.f32.mrf.mxu0
        %v5785 = vadd.f32 0.0, %v5784
        %5786 = vdwg.mxu0
        %5787 = vmatprep.subr.bf16.mxu0 0
        %5788 = vmatpush1.bf16.msra.mxu0 0
        %5789 = vmatprep.subr.bf16.mxu0 0
        %5790 = vmatpush1.bf16.msra.mxu0 0
        %5791 = vmatprep.subr.bf16.mxu0 0
        %5792 = vmatpush1.bf16.msra.mxu0 0
        %5793 = vmatprep.subr.bf16.mxu0 0
        %5794 = vmatpush1.bf16.msra.mxu0 0
        %5795 = vmatprep.subr.bf16.mxu0 0
        %5796 = vmatpush1.bf16.msra.mxu0 0
        %5797 = vmatprep.subr.bf16.mxu0 0
        %5798 = vmatpush1.bf16.msra.mxu0 0
        %5799 = vmatprep.subr.bf16.mxu0 0
        %5800 = vmatpush1.bf16.msra.mxu0 0
        %5801 = vmatprep.subr.bf16.mxu0 %v5557
        %5802 = vmatpush1.bf16.msra.mxu0 %v5556
        %5803 = vmatprep.subr.bf16.mxu0 0
        %5804 = vmatpush2.bf16.msra.mxu0 0
        %5805 = vmatprep.subr.bf16.mxu0 0
        %5806 = vmatpush2.bf16.msra.mxu0 0
        %5807 = vmatprep.subr.bf16.mxu0 0
        %5808 = vmatpush2.bf16.msra.mxu0 0
        %5809 = vmatprep.subr.bf16.mxu0 0
        %5810 = vmatpush2.bf16.msra.mxu0 0
        %5811 = vmatprep.subr.bf16.mxu0 0
        %5812 = vmatpush2.bf16.msra.mxu0 0
        %5813 = vmatprep.subr.bf16.mxu0 0
        %5814 = vmatpush2.bf16.msra.mxu0 0
        %5815 = vmatprep.subr.bf16.mxu0 0
        %5816 = vmatpush2.bf16.msra.mxu0 0
        %5817 = vmatprep.subr.bf16.mxu0 0
        %5818 = vmatpush2.bf16.msra.mxu0 0
        %5819 = vmatprep.mubr.bf16.mxu0 0
        %5820 = vmatmul.mubr.bf16.gmra.mxu0 %v5570
        %v5821 = vpop.f32.mrf.mxu0
        %v5822 = vadd.f32 0.0, %v5821
        %v5823 = vpop.f32.mrf.mxu0
        %v5824 = vadd.f32 0.0, %v5823
        %v5825 = vpop.f32.mrf.mxu0
        %v5826 = vadd.f32 0.0, %v5825
        %v5827 = vpop.f32.mrf.mxu0
        %v5828 = vadd.f32 0.0, %v5827
        %5829 = vdwg.mxu0
        %5830 = vmatprep.subr.bf16.mxu0 0
        %5831 = vmatpush1.bf16.msra.mxu0 0
        %5832 = vmatprep.subr.bf16.mxu0 0
        %5833 = vmatpush1.bf16.msra.mxu0 0
        %5834 = vmatprep.subr.bf16.mxu0 0
        %5835 = vmatpush1.bf16.msra.mxu0 0
        %5836 = vmatprep.subr.bf16.mxu0 0
        %5837 = vmatpush1.bf16.msra.mxu0 0
        %5838 = vmatprep.subr.bf16.mxu0 0
        %5839 = vmatpush1.bf16.msra.mxu0 0
        %5840 = vmatprep.subr.bf16.mxu0 0
        %5841 = vmatpush1.bf16.msra.mxu0 0
        %5842 = vmatprep.subr.bf16.mxu0 0
        %5843 = vmatpush1.bf16.msra.mxu0 0
        %5844 = vmatprep.subr.bf16.mxu0 %v5559
        %5845 = vmatpush1.bf16.msra.mxu0 %v5558
        %5846 = vmatprep.subr.bf16.mxu0 0
        %5847 = vmatpush2.bf16.msra.mxu0 0
        %5848 = vmatprep.subr.bf16.mxu0 0
        %5849 = vmatpush2.bf16.msra.mxu0 0
        %5850 = vmatprep.subr.bf16.mxu0 0
        %5851 = vmatpush2.bf16.msra.mxu0 0
        %5852 = vmatprep.subr.bf16.mxu0 0
        %5853 = vmatpush2.bf16.msra.mxu0 0
        %5854 = vmatprep.subr.bf16.mxu0 0
        %5855 = vmatpush2.bf16.msra.mxu0 0
        %5856 = vmatprep.subr.bf16.mxu0 0
        %5857 = vmatpush2.bf16.msra.mxu0 0
        %5858 = vmatprep.subr.bf16.mxu0 0
        %5859 = vmatpush2.bf16.msra.mxu0 0
        %5860 = vmatprep.subr.bf16.mxu0 0
        %5861 = vmatpush2.bf16.msra.mxu0 0
        %5862 = vmatprep.mubr.bf16.mxu0 0
        %5863 = vmatmul.mubr.bf16.gmra.mxu0 %v5570
        %v5864 = vpop.f32.mrf.mxu0
        %v5865 = vadd.f32 0.0, %v5864
        %v5866 = vpop.f32.mrf.mxu0
        %v5867 = vadd.f32 0.0, %v5866
        %v5868 = vpop.f32.mrf.mxu0
        %v5869 = vadd.f32 0.0, %v5868
        %v5870 = vpop.f32.mrf.mxu0
        %v5871 = vadd.f32 0.0, %v5870
        %5872 = vdwg.mxu0
        %5873 = vmatprep.subr.bf16.mxu0 0
        %5874 = vmatpush1.bf16.msra.mxu0 0
        %5875 = vmatprep.subr.bf16.mxu0 0
        %5876 = vmatpush1.bf16.msra.mxu0 0
        %5877 = vmatprep.subr.bf16.mxu0 0
        %5878 = vmatpush1.bf16.msra.mxu0 0
        %5879 = vmatprep.subr.bf16.mxu0 0
        %5880 = vmatpush1.bf16.msra.mxu0 0
        %5881 = vmatprep.subr.bf16.mxu0 0
        %5882 = vmatpush1.bf16.msra.mxu0 0
        %5883 = vmatprep.subr.bf16.mxu0 0
        %5884 = vmatpush1.bf16.msra.mxu0 0
        %5885 = vmatprep.subr.bf16.mxu0 0
        %5886 = vmatpush1.bf16.msra.mxu0 0
        %5887 = vmatprep.subr.bf16.mxu0 %v5561
        %5888 = vmatpush1.bf16.msra.mxu0 %v5560
        %5889 = vmatprep.subr.bf16.mxu0 0
        %5890 = vmatpush2.bf16.msra.mxu0 0
        %5891 = vmatprep.subr.bf16.mxu0 0
        %5892 = vmatpush2.bf16.msra.mxu0 0
        %5893 = vmatprep.subr.bf16.mxu0 0
        %5894 = vmatpush2.bf16.msra.mxu0 0
        %5895 = vmatprep.subr.bf16.mxu0 0
        %5896 = vmatpush2.bf16.msra.mxu0 0
        %5897 = vmatprep.subr.bf16.mxu0 0
        %5898 = vmatpush2.bf16.msra.mxu0 0
        %5899 = vmatprep.subr.bf16.mxu0 0
        %5900 = vmatpush2.bf16.msra.mxu0 0
        %5901 = vmatprep.subr.bf16.mxu0 0
        %5902 = vmatpush2.bf16.msra.mxu0 0
        %5903 = vmatprep.subr.bf16.mxu0 0
        %5904 = vmatpush2.bf16.msra.mxu0 0
        %5905 = vmatprep.mubr.bf16.mxu0 0
        %5906 = vmatmul.mubr.bf16.gmra.mxu0 %v5570
        %v5907 = vpop.f32.mrf.mxu0
        %v5908 = vadd.f32 0.0, %v5907
        %v5909 = vpop.f32.mrf.mxu0
        %v5910 = vadd.f32 0.0, %v5909
        %v5911 = vpop.f32.mrf.mxu0
        %v5912 = vadd.f32 0.0, %v5911
        %v5913 = vpop.f32.mrf.mxu0
        %v5914 = vadd.f32 0.0, %v5913
        %5915 = vdwg.mxu0
        %5916 = vmatprep.subr.bf16.mxu0 0
        %5917 = vmatpush1.bf16.msra.mxu0 0
        %5918 = vmatprep.subr.bf16.mxu0 0
        %5919 = vmatpush1.bf16.msra.mxu0 0
        %5920 = vmatprep.subr.bf16.mxu0 0
        %5921 = vmatpush1.bf16.msra.mxu0 0
        %5922 = vmatprep.subr.bf16.mxu0 0
        %5923 = vmatpush1.bf16.msra.mxu0 0
        %5924 = vmatprep.subr.bf16.mxu0 0
        %5925 = vmatpush1.bf16.msra.mxu0 0
        %5926 = vmatprep.subr.bf16.mxu0 0
        %5927 = vmatpush1.bf16.msra.mxu0 0
        %5928 = vmatprep.subr.bf16.mxu0 0
        %5929 = vmatpush1.bf16.msra.mxu0 0
        %5930 = vmatprep.subr.bf16.mxu0 %v5563
        %5931 = vmatpush1.bf16.msra.mxu0 %v5562
        %5932 = vmatprep.subr.bf16.mxu0 0
        %5933 = vmatpush2.bf16.msra.mxu0 0
        %5934 = vmatprep.subr.bf16.mxu0 0
        %5935 = vmatpush2.bf16.msra.mxu0 0
        %5936 = vmatprep.subr.bf16.mxu0 0
        %5937 = vmatpush2.bf16.msra.mxu0 0
        %5938 = vmatprep.subr.bf16.mxu0 0
        %5939 = vmatpush2.bf16.msra.mxu0 0
        %5940 = vmatprep.subr.bf16.mxu0 0
        %5941 = vmatpush2.bf16.msra.mxu0 0
        %5942 = vmatprep.subr.bf16.mxu0 0
        %5943 = vmatpush2.bf16.msra.mxu0 0
        %5944 = vmatprep.subr.bf16.mxu0 0
        %5945 = vmatpush2.bf16.msra.mxu0 0
        %5946 = vmatprep.subr.bf16.mxu0 0
        %5947 = vmatpush2.bf16.msra.mxu0 0
        %5948 = vmatprep.mubr.bf16.mxu0 0
        %5949 = vmatmul.mubr.bf16.gmra.mxu0 %v5570
        %v5950 = vpop.f32.mrf.mxu0
        %v5951 = vadd.f32 0.0, %v5950
        %v5952 = vpop.f32.mrf.mxu0
        %v5953 = vadd.f32 0.0, %v5952
        %v5954 = vpop.f32.mrf.mxu0
        %v5955 = vadd.f32 0.0, %v5954
        %v5956 = vpop.f32.mrf.mxu0
        %v5957 = vadd.f32 0.0, %v5956
        %5958 = vdwg.mxu0
        %v5959 = vmul.f32 %v5607, %v5204
        %v5960 = vmul.f32 %v5609, %v5205
        %v5961 = vmul.f32 %v5650, %v5206
        %v5962 = vmul.f32 %v5652, %v5207
        %v5963 = vmul.f32 %v5693, %v5208
        %v5964 = vmul.f32 %v5695, %v5209
        %v5965 = vmul.f32 %v5736, %v5210
        %v5966 = vmul.f32 %v5738, %v5211
        %v5967 = vmul.f32 %v5779, %v5212
        %v5968 = vmul.f32 %v5781, %v5213
        %v5969 = vmul.f32 %v5822, %v5214
        %v5970 = vmul.f32 %v5824, %v5215
        %v5971 = vmul.f32 %v5865, %v5216
        %v5972 = vmul.f32 %v5867, %v5217
        %v5973 = vmul.f32 %v5908, %v5218
        %v5974 = vmul.f32 %v5910, %v5219
        %v5975 = vmul.f32 %v5951, %v5220
        %v5976 = vmul.f32 %v5953, %v5221
        %v5977 = vmul.f32 %v5611, %v5222
        %v5978 = vmul.f32 %v5613, %v5223
        %v5979 = vmul.f32 %v5654, %v5224
        %v5980 = vmul.f32 %v5656, %v5225
        %v5981 = vmul.f32 %v5697, %v5226
        %v5982 = vmul.f32 %v5699, %v5227
        %v5983 = vmul.f32 %v5740, %v5228
        %v5984 = vmul.f32 %v5742, %v5229
        %v5985 = vmul.f32 %v5783, %v5230
        %v5986 = vmul.f32 %v5785, %v5231
        %v5987 = vmul.f32 %v5826, %v5232
        %v5988 = vmul.f32 %v5828, %v5233
        %v5989 = vmul.f32 %v5869, %v5234
        %v5990 = vmul.f32 %v5871, %v5235
        %v5991 = vmul.f32 %v5912, %v5236
        %v5992 = vmul.f32 %v5914, %v5237
        %v5993 = vmul.f32 %v5955, %v5238
        %v5994 = vmul.f32 %v5957, %v5239
        %v5995 = vadd.f32 %v5959, %v5977
        %v5996 = vrot.slane %v5995, 4
        %v5997 = vadd.f32 %v5995, %v5996
        %v5998 = vrot.slane %v5997, 2
        %v5999 = vadd.f32 %v5997, %v5998
        %v6000 = vrot.slane %v5999, 1
        %v6001 = vadd.f32 %v5999, %v6000
        %v6002 = vadd.f32 %v5960, %v5978
        %v6003 = vrot.slane %v6002, 4
        %v6004 = vadd.f32 %v6002, %v6003
        %v6005 = vrot.slane %v6004, 2
        %v6006 = vadd.f32 %v6004, %v6005
        %v6007 = vrot.slane %v6006, 1
        %v6008 = vadd.f32 %v6006, %v6007
        %v6009 = vadd.f32 %v5961, %v5979
        %v6010 = vrot.slane %v6009, 4
        %v6011 = vadd.f32 %v6009, %v6010
        %v6012 = vrot.slane %v6011, 2
        %v6013 = vadd.f32 %v6011, %v6012
        %v6014 = vrot.slane %v6013, 1
        %v6015 = vadd.f32 %v6013, %v6014
        %v6016 = vadd.f32 %v5962, %v5980
        %v6017 = vrot.slane %v6016, 4
        %v6018 = vadd.f32 %v6016, %v6017
        %v6019 = vrot.slane %v6018, 2
        %v6020 = vadd.f32 %v6018, %v6019
        %v6021 = vrot.slane %v6020, 1
        %v6022 = vadd.f32 %v6020, %v6021
        %v6023 = vadd.f32 %v5963, %v5981
        %v6024 = vrot.slane %v6023, 4
        %v6025 = vadd.f32 %v6023, %v6024
        %v6026 = vrot.slane %v6025, 2
        %v6027 = vadd.f32 %v6025, %v6026
        %v6028 = vrot.slane %v6027, 1
        %v6029 = vadd.f32 %v6027, %v6028
        %v6030 = vadd.f32 %v5964, %v5982
        %v6031 = vrot.slane %v6030, 4
        %v6032 = vadd.f32 %v6030, %v6031
        %v6033 = vrot.slane %v6032, 2
        %v6034 = vadd.f32 %v6032, %v6033
        %v6035 = vrot.slane %v6034, 1
        %v6036 = vadd.f32 %v6034, %v6035
        %v6037 = vadd.f32 %v5965, %v5983
        %v6038 = vrot.slane %v6037, 4
        %v6039 = vadd.f32 %v6037, %v6038
        %v6040 = vrot.slane %v6039, 2
        %v6041 = vadd.f32 %v6039, %v6040
        %v6042 = vrot.slane %v6041, 1
        %v6043 = vadd.f32 %v6041, %v6042
        %v6044 = vadd.f32 %v5966, %v5984
        %v6045 = vrot.slane %v6044, 4
        %v6046 = vadd.f32 %v6044, %v6045
        %v6047 = vrot.slane %v6046, 2
        %v6048 = vadd.f32 %v6046, %v6047
        %v6049 = vrot.slane %v6048, 1
        %v6050 = vadd.f32 %v6048, %v6049
        %v6051 = vadd.f32 %v5967, %v5985
        %v6052 = vrot.slane %v6051, 4
        %v6053 = vadd.f32 %v6051, %v6052
        %v6054 = vrot.slane %v6053, 2
        %v6055 = vadd.f32 %v6053, %v6054
        %v6056 = vrot.slane %v6055, 1
        %v6057 = vadd.f32 %v6055, %v6056
        %v6058 = vadd.f32 %v5968, %v5986
        %v6059 = vrot.slane %v6058, 4
        %v6060 = vadd.f32 %v6058, %v6059
        %v6061 = vrot.slane %v6060, 2
        %v6062 = vadd.f32 %v6060, %v6061
        %v6063 = vrot.slane %v6062, 1
        %v6064 = vadd.f32 %v6062, %v6063
        %v6065 = vadd.f32 %v5969, %v5987
        %v6066 = vrot.slane %v6065, 4
        %v6067 = vadd.f32 %v6065, %v6066
        %v6068 = vrot.slane %v6067, 2
        %v6069 = vadd.f32 %v6067, %v6068
        %v6070 = vrot.slane %v6069, 1
        %v6071 = vadd.f32 %v6069, %v6070
        %v6072 = vadd.f32 %v5970, %v5988
        %v6073 = vrot.slane %v6072, 4
        %v6074 = vadd.f32 %v6072, %v6073
        %v6075 = vrot.slane %v6074, 2
        %v6076 = vadd.f32 %v6074, %v6075
        %v6077 = vrot.slane %v6076, 1
        %v6078 = vadd.f32 %v6076, %v6077
        %v6079 = vadd.f32 %v5971, %v5989
        %v6080 = vrot.slane %v6079, 4
        %v6081 = vadd.f32 %v6079, %v6080
        %v6082 = vrot.slane %v6081, 2
        %v6083 = vadd.f32 %v6081, %v6082
        %v6084 = vrot.slane %v6083, 1
        %v6085 = vadd.f32 %v6083, %v6084
        %v6086 = vadd.f32 %v5972, %v5990
        %v6087 = vrot.slane %v6086, 4
        %v6088 = vadd.f32 %v6086, %v6087
        %v6089 = vrot.slane %v6088, 2
        %v6090 = vadd.f32 %v6088, %v6089
        %v6091 = vrot.slane %v6090, 1
        %v6092 = vadd.f32 %v6090, %v6091
        %v6093 = vadd.f32 %v5973, %v5991
        %v6094 = vrot.slane %v6093, 4
        %v6095 = vadd.f32 %v6093, %v6094
        %v6096 = vrot.slane %v6095, 2
        %v6097 = vadd.f32 %v6095, %v6096
        %v6098 = vrot.slane %v6097, 1
        %v6099 = vadd.f32 %v6097, %v6098
        %v6100 = vadd.f32 %v5974, %v5992
        %v6101 = vrot.slane %v6100, 4
        %v6102 = vadd.f32 %v6100, %v6101
        %v6103 = vrot.slane %v6102, 2
        %v6104 = vadd.f32 %v6102, %v6103
        %v6105 = vrot.slane %v6104, 1
        %v6106 = vadd.f32 %v6104, %v6105
        %v6107 = vadd.f32 %v5975, %v5993
        %v6108 = vrot.slane %v6107, 4
        %v6109 = vadd.f32 %v6107, %v6108
        %v6110 = vrot.slane %v6109, 2
        %v6111 = vadd.f32 %v6109, %v6110
        %v6112 = vrot.slane %v6111, 1
        %v6113 = vadd.f32 %v6111, %v6112
        %v6114 = vadd.f32 %v5976, %v5994
        %v6115 = vrot.slane %v6114, 4
        %v6116 = vadd.f32 %v6114, %v6115
        %v6117 = vrot.slane %v6116, 2
        %v6118 = vadd.f32 %v6116, %v6117
        %v6119 = vrot.slane %v6118, 1
        %v6120 = vadd.f32 %v6118, %v6119
        %v6123 = vcombine.low %v6001, %v6008
        %v6125 = vunpack.c.l.s4 1966171168
        %v6126 = vunpack.c.0.s8 %v6125
        %v6127 = vlaneseq
        %v6128 = vshrl.u32 %v6127, 7
        %v6129 = vsub.s32 %v6126, %v6128
        %v6130 = vrot.slane %v6123, %v6129
        %v6132 = vunpack.c.l.s4 1966171168
        %v6133 = vunpack.c.0.s8 %v6132
        %v6134 = vlaneseq
        %v6135 = vshrl.u32 %v6134, 7
        %v6136 = vsub.s32 %v6133, %v6135
        %v6137 = vrot.slane %v6130, %v6136
        %s6139 = scalar_lea.vmem [#allocation2], 51
        %6140 = vst.msk [vmem:[%s6139] ss:$8 sm:$0x3] %vm2011, %v6137
        %6141 = vst.msk [vmem:[%s6139] ss:$8 sm:$0x0] %vm2011, %v6137
        %v6144 = vcombine.low %v6015, %v6022
        %v6146 = vunpack.c.l.s4 1966171168
        %v6147 = vunpack.c.0.s8 %v6146
        %v6148 = vlaneseq
        %v6149 = vshrl.u32 %v6148, 7
        %v6150 = vsub.s32 %v6147, %v6149
        %v6151 = vrot.slane %v6144, %v6150
        %v6153 = vunpack.c.l.s4 1966171168
        %v6154 = vunpack.c.0.s8 %v6153
        %v6155 = vlaneseq
        %v6156 = vshrl.u32 %v6155, 7
        %v6157 = vsub.s32 %v6154, %v6156
        %v6158 = vrot.slane %v6151, %v6157
        %s6160 = scalar_lea.vmem [#allocation2], 52
        %6161 = vst.msk [vmem:[%s6160] ss:$8 sm:$0x3] %vm2011, %v6158
        %6162 = vst.msk [vmem:[%s6160] ss:$8 sm:$0x0] %vm2011, %v6158
        %v6165 = vcombine.low %v6029, %v6036
        %v6167 = vunpack.c.l.s4 1966171168
        %v6168 = vunpack.c.0.s8 %v6167
        %v6169 = vlaneseq
        %v6170 = vshrl.u32 %v6169, 7
        %v6171 = vsub.s32 %v6168, %v6170
        %v6172 = vrot.slane %v6165, %v6171
        %v6174 = vunpack.c.l.s4 1966171168
        %v6175 = vunpack.c.0.s8 %v6174
        %v6176 = vlaneseq
        %v6177 = vshrl.u32 %v6176, 7
        %v6178 = vsub.s32 %v6175, %v6177
        %v6179 = vrot.slane %v6172, %v6178
        %s6181 = scalar_lea.vmem [#allocation2], 53
        %6182 = vst.msk [vmem:[%s6181] ss:$8 sm:$0x3] %vm2011, %v6179
        %6183 = vst.msk [vmem:[%s6181] ss:$8 sm:$0x0] %vm2011, %v6179
        %v6186 = vcombine.low %v6043, %v6050
        %v6188 = vunpack.c.l.s4 1966171168
        %v6189 = vunpack.c.0.s8 %v6188
        %v6190 = vlaneseq
        %v6191 = vshrl.u32 %v6190, 7
        %v6192 = vsub.s32 %v6189, %v6191
        %v6193 = vrot.slane %v6186, %v6192
        %v6195 = vunpack.c.l.s4 1966171168
        %v6196 = vunpack.c.0.s8 %v6195
        %v6197 = vlaneseq
        %v6198 = vshrl.u32 %v6197, 7
        %v6199 = vsub.s32 %v6196, %v6198
        %v6200 = vrot.slane %v6193, %v6199
        %s6202 = scalar_lea.vmem [#allocation2], 54
        %6203 = vst.msk [vmem:[%s6202] ss:$8 sm:$0x3] %vm2011, %v6200
        %6204 = vst.msk [vmem:[%s6202] ss:$8 sm:$0x0] %vm2011, %v6200
        %v6207 = vcombine.low %v6057, %v6064
        %v6209 = vunpack.c.l.s4 1966171168
        %v6210 = vunpack.c.0.s8 %v6209
        %v6211 = vlaneseq
        %v6212 = vshrl.u32 %v6211, 7
        %v6213 = vsub.s32 %v6210, %v6212
        %v6214 = vrot.slane %v6207, %v6213
        %v6216 = vunpack.c.l.s4 1966171168
        %v6217 = vunpack.c.0.s8 %v6216
        %v6218 = vlaneseq
        %v6219 = vshrl.u32 %v6218, 7
        %v6220 = vsub.s32 %v6217, %v6219
        %v6221 = vrot.slane %v6214, %v6220
        %s6223 = scalar_lea.vmem [#allocation2], 55
        %6224 = vst.msk [vmem:[%s6223] ss:$8 sm:$0x3] %vm2011, %v6221
        %6225 = vst.msk [vmem:[%s6223] ss:$8 sm:$0x0] %vm2011, %v6221
        %v6228 = vcombine.low %v6071, %v6078
        %v6230 = vunpack.c.l.s4 1966171168
        %v6231 = vunpack.c.0.s8 %v6230
        %v6232 = vlaneseq
        %v6233 = vshrl.u32 %v6232, 7
        %v6234 = vsub.s32 %v6231, %v6233
        %v6235 = vrot.slane %v6228, %v6234
        %v6237 = vunpack.c.l.s4 1966171168
        %v6238 = vunpack.c.0.s8 %v6237
        %v6239 = vlaneseq
        %v6240 = vshrl.u32 %v6239, 7
        %v6241 = vsub.s32 %v6238, %v6240
        %v6242 = vrot.slane %v6235, %v6241
        %s6244 = scalar_lea.vmem [#allocation2], 64
        %6245 = vst.msk [vmem:[%s6244] ss:$8 sm:$0x3] %vm2011, %v6242
        %6246 = vst.msk [vmem:[%s6244] ss:$8 sm:$0x0] %vm2011, %v6242
        %v6249 = vcombine.low %v6085, %v6092
        %v6251 = vunpack.c.l.s4 1966171168
        %v6252 = vunpack.c.0.s8 %v6251
        %v6253 = vlaneseq
        %v6254 = vshrl.u32 %v6253, 7
        %v6255 = vsub.s32 %v6252, %v6254
        %v6256 = vrot.slane %v6249, %v6255
        %v6258 = vunpack.c.l.s4 1966171168
        %v6259 = vunpack.c.0.s8 %v6258
        %v6260 = vlaneseq
        %v6261 = vshrl.u32 %v6260, 7
        %v6262 = vsub.s32 %v6259, %v6261
        %v6263 = vrot.slane %v6256, %v6262
        %s6265 = scalar_lea.vmem [#allocation2], 65
        %6266 = vst.msk [vmem:[%s6265] ss:$8 sm:$0x3] %vm2011, %v6263
        %6267 = vst.msk [vmem:[%s6265] ss:$8 sm:$0x0] %vm2011, %v6263
        %v6270 = vcombine.low %v6099, %v6106
        %v6272 = vunpack.c.l.s4 1966171168
        %v6273 = vunpack.c.0.s8 %v6272
        %v6274 = vlaneseq
        %v6275 = vshrl.u32 %v6274, 7
        %v6276 = vsub.s32 %v6273, %v6275
        %v6277 = vrot.slane %v6270, %v6276
        %v6279 = vunpack.c.l.s4 1966171168
        %v6280 = vunpack.c.0.s8 %v6279
        %v6281 = vlaneseq
        %v6282 = vshrl.u32 %v6281, 7
        %v6283 = vsub.s32 %v6280, %v6282
        %v6284 = vrot.slane %v6277, %v6283
        %s6286 = scalar_lea.vmem [#allocation2], 66
        %6287 = vst.msk [vmem:[%s6286] ss:$8 sm:$0x3] %vm2011, %v6284
        %6288 = vst.msk [vmem:[%s6286] ss:$8 sm:$0x0] %vm2011, %v6284
        %v6291 = vcombine.low %v6113, %v6120
        %v6293 = vunpack.c.l.s4 1966171168
        %v6294 = vunpack.c.0.s8 %v6293
        %v6295 = vlaneseq
        %v6296 = vshrl.u32 %v6295, 7
        %v6297 = vsub.s32 %v6294, %v6296
        %v6298 = vrot.slane %v6291, %v6297
        %v6300 = vunpack.c.l.s4 1966171168
        %v6301 = vunpack.c.0.s8 %v6300
        %v6302 = vlaneseq
        %v6303 = vshrl.u32 %v6302, 7
        %v6304 = vsub.s32 %v6301, %v6303
        %v6305 = vrot.slane %v6298, %v6304
        %s6307 = scalar_lea.vmem [#allocation2], 67
        %6308 = vst.msk [vmem:[%s6307] ss:$8 sm:$0x3] %vm2011, %v6305
        %6309 = vst.msk [vmem:[%s6307] ss:$8 sm:$0x0] %vm2011, %v6305
        %v6310 = vld [vmem:[%s3] sm:$0xff]
        %v6311 = vld [vmem:[#allocation2] sm:$0xff]
        %v6312 = vld [vmem:[#allocation2 + $0x8] sm:$0xff]
        %v6313 = vld [vmem:[#allocation2 + $0x10] sm:$0xff]
        %v6314 = vld [vmem:[#allocation2 + $0x18] sm:$0xff]
        %v6315 = vld [vmem:[#allocation2 + $0x20] sm:$0xff]
        %v6316 = vld [vmem:[#allocation2 + $0x28] sm:$0xff]
        %v6317 = vld [vmem:[#allocation2 + $0x30] sm:$0xff]
        %v6318 = vld [vmem:[#allocation2 + $0x38] sm:$0xff]
        %v6319 = vld [vmem:[#allocation2 + $0x40] sm:$0xff]
        %v6320 = vld [vmem:[#allocation2 + $0x48] sm:$0xff]
        %vm6321 = vcmask 326656
        %v6323 = vsel %vm6321, %v6310, 0
        %6325 = vmatprep.subr.mxu0 0.0
        %6326 = vmatpush1.msra.mxu0 0.0
        %6327 = vmatprep.subr.mxu0 0.0
        %6328 = vmatpush1.msra.mxu0 0.0
        %6329 = vmatprep.subr.mxu0 0.0
        %6330 = vmatpush1.msra.mxu0 0.0
        %6331 = vmatprep.subr.mxu0 0.0
        %6332 = vmatpush1.msra.mxu0 0.0
        %6333 = vmatprep.subr.mxu0 0.0
        %6334 = vmatpush1.msra.mxu0 0.0
        %6335 = vmatprep.subr.mxu0 0.0
        %6336 = vmatpush1.msra.mxu0 0.0
        %6337 = vmatprep.subr.mxu0 0.0
        %6338 = vmatpush1.msra.mxu0 0.0
        %6339 = vmatprep.subr.mxu0 0.0
        %6340 = vmatpush1.msra.mxu0 0.0
        %6341 = vmatprep.subr.mxu0 0.0
        %6342 = vmatpush1.msra.mxu0 0.0
        %6343 = vmatprep.subr.mxu0 0.0
        %6344 = vmatpush1.msra.mxu0 0.0
        %6345 = vmatprep.subr.mxu0 0.0
        %6346 = vmatpush1.msra.mxu0 0.0
        %6347 = vmatprep.subr.mxu0 %v6320
        %6348 = vmatpush1.msra.mxu0 %v6319
        %6349 = vmatprep.subr.mxu0 %v6318
        %6350 = vmatpush1.msra.mxu0 %v6317
        %6351 = vmatprep.subr.mxu0 %v6316
        %6352 = vmatpush1.msra.mxu0 %v6315
        %6353 = vmatprep.subr.mxu0 %v6314
        %6354 = vmatpush1.msra.mxu0 %v6313
        %6355 = vmatprep.subr.mxu0 %v6312
        %6356 = vmatpush1.msra.mxu0 %v6311
        %6357 = vmatprep.subr.mxu0 0.0
        %6358 = vmatpush2.msra.mxu0 0.0
        %6359 = vmatprep.subr.mxu0 0.0
        %6360 = vmatpush2.msra.mxu0 0.0
        %6361 = vmatprep.subr.mxu0 0.0
        %6362 = vmatpush2.msra.mxu0 0.0
        %6363 = vmatprep.subr.mxu0 0.0
        %6364 = vmatpush2.msra.mxu0 0.0
        %6365 = vmatprep.subr.mxu0 0.0
        %6366 = vmatpush2.msra.mxu0 0.0
        %6367 = vmatprep.subr.mxu0 0.0
        %6368 = vmatpush2.msra.mxu0 0.0
        %6369 = vmatprep.subr.mxu0 0.0
        %6370 = vmatpush2.msra.mxu0 0.0
        %6371 = vmatprep.subr.mxu0 0.0
        %6372 = vmatpush2.msra.mxu0 0.0
        %6373 = vmatprep.subr.mxu0 0.0
        %6374 = vmatpush2.msra.mxu0 0.0
        %6375 = vmatprep.subr.mxu0 0.0
        %6376 = vmatpush2.msra.mxu0 0.0
        %6377 = vmatprep.subr.mxu0 0.0
        %6378 = vmatpush2.msra.mxu0 0.0
        %6379 = vmatprep.subr.mxu0 0.0
        %6380 = vmatpush2.msra.mxu0 0.0
        %6381 = vmatprep.subr.mxu0 0.0
        %6382 = vmatpush2.msra.mxu0 0.0
        %6383 = vmatprep.subr.mxu0 0.0
        %6384 = vmatpush2.msra.mxu0 0.0
        %6385 = vmatprep.subr.mxu0 0.0
        %6386 = vmatpush2.msra.mxu0 0.0
        %6387 = vmatprep.subr.mxu0 0.0
        %6388 = vmatpush2.msra.mxu0 0.0
        %6389 = vmatprep.mubr.f32.mxu0 0.0
        %6390 = vmatmul.mubr.f32.gmra.mxu0 %v6323
        %v6391 = vpop.f32.mrf.mxu0
        %v6392 = vadd.f32 0.0, %v6391
        %v6393 = vpop.f32.mrf.mxu0
        %v6394 = vadd.f32 0.0, %v6393
        %6395 = vdwg.mxu0
        %v6396 = vmax.f32 %v6392, 0.0
        %v6397 = vmax.f32 %v6394, 0.0
        %6398 = vst [vmem:[%s220] sm:$0xff] %v6396
        %6399 = vst [vmem:[%s220 + $0x8] sm:$0xff] %v6397
        %s6400 = sand.u32 %s121, 1
        %s6401 = scalar_lea.sflag [#allocation5], %s6400
        %s6402 = sand.u32 %s121, 1
        %s6403 = smul.addr %s6402, 16
        %s6404 = scalar_lea.vmem [#allocation6], %s6403
        // Predicated region
        $region41: #{tpu_custom_call.1} parent=35 // pred_check
          %p6405 = pneg %p131
        $region42: #{tpu_custom_call.1} parent=35 // pred_check_branch
          %6407 = sbr.rel (%p6405) target = $region44
        $region43: #{tpu_custom_call.1} parent=35 // pred_region
          %s6409 = ssub.s32 256, 256
          %6410 = vsyncadd %s6401, %s6409
          %s6411 = smul.addr %s19, 2
          %s6412 = smul.addr %s6411, 128
          %s6413 = scalar_lea.hbm %s4, %s6412
          %s6415 = sshll.u32 %s6404, 4
          %s6416 = int_to_ptr.vmem [resolvable:$true] %s6415
          %6418 = dma.vmem_to_hbm [thread:$0]  %s6416, 256, %s6413, %s6401
        $region44: #{tpu_custom_call.1} parent=35 // pred_fallthru
          _
      $region36: #{tpu_custom_call.1} parent=5 // pred_fallthru
        _
      %p6419 = scmp.le.s32.totalorder 2, %s14
      // Predicated region
      $region45: #{tpu_custom_call.1} parent=5 // pred_check
        %p6420 = pneg %p6419
      $region46: #{tpu_custom_call.1} parent=5 // pred_check_branch
        %6422 = sbr.rel (%p6420) target = $region48
      $region47: #{tpu_custom_call.1} parent=5 // pred_region
        %s6423 = ssub.s32 %s14, 2
        // Predicated region
        $region49: #{tpu_custom_call.1} parent=47 // pred_check
          %p6424 = pneg %p137
        $region50: #{tpu_custom_call.1} parent=47 // pred_check_branch
          %6426 = sbr.rel (%p6424) target = $region52
        $region51: #{tpu_custom_call.1} parent=47 // pred_region
          %s6427 = sand.u32 %s122, 1
          %s6428 = scalar_lea.sflag [#allocation5], %s6427
          %s6429 = sand.u32 %s122, 1
          %s6430 = smul.addr %s6429, 16
          %s6431 = scalar_lea.vmem [#allocation6], %s6430
          %6432 = dma.done %s6428, 256
        $region52: #{tpu_custom_call.1} parent=47 // pred_fallthru
          _
      $region48: #{tpu_custom_call.1} parent=5 // pred_fallthru
        _
    $region6: #{tpu_custom_call.1} parent=1 // loop_footer
      %s18 = sadd.s32 1, %s14
    $region7: #{tpu_custom_call.1} parent=1 // loop_footer_branch
      %13 = sbr.rel target = $region3
    $region8: #{tpu_custom_call.1} parent=1 // loop_exit
      _
    %6433 = vsyncpa [#allocation4], 1
    %s6434 = scalar_lea.sflag [#allocation4], 1
    %6435 = vsyncpa %s6434, 1
    %6436 = vsyncpa [#allocation5], 1
    %s6437 = scalar_lea.sflag [#allocation5], 1
    %6438 = vsyncpa %s6437, 1

</llo_original>
